<compile_context>
chip_gen: v6e
topology: v6e:2x2x1
jax: 0.10.0
libtpu: 0.0.40
codegen_flags: <defaults>
</compile_context>

<pallas_src>
import functools

import numpy as np

import jax
import jax.numpy as jnp
from jax.experimental import pallas as pl
from jax.experimental.pallas import tpu as pltpu


HIDDEN = 12          # LSTM hidden size
GATE_BLOCK = 32      # per-gate lane block: 4 gates -> one 128-lane vreg
LSTM_W = 4 * GATE_BLOCK   # 128


# --------------------------------------------------------------------------
# Fused Pallas kernel
# --------------------------------------------------------------------------
def _fused_forward_kernel(state_ref, act_ref,
                          cw1, cb1, cw2, cb2, cw3, cb3, cw4, cb4,
                          lw1, lb1, lw2, lb2,
                          wih, whh, blstm,
                          dw1, db1, dw2, db2, dw3, db3,
                          out_ref, *, seq_len):
    f32 = jnp.float32

    def mm(a, w_ref):
        return jnp.dot(a, w_ref[...], preferred_element_type=f32)

    # ---- encoder: 4 Conv1d layers as block-Toeplitz dense matmuls ----
    x = state_ref[...]                                   # (bb, 64)
    x = jnp.maximum(mm(x, cw1) + cb1[...], 0.0)          # (bb, 20*8)
    x = jnp.maximum(mm(x, cw2) + cb2[...], 0.0)          # (bb, 8*16)
    x = jnp.maximum(mm(x, cw3) + cb3[...], 0.0)          # (bb, 4*32)
    x = mm(x, cw4) + cb4[...]                            # (bb, 48), no ReLU

    # ---- self.l ----
    x = jnp.maximum(mm(x, lw1) + lb1[...], 0.0)          # (bb, 24)
    h = mm(x, lw2) + lb2[...]                            # (bb, 32); lanes >= 12 exactly 0
    c = h                                                # PyTorch: (h0, c0) = (x, x)

    bb = h.shape[0]
    G = GATE_BLOCK

    # ---- LSTM: same action every step -> x_t @ W_ih is loop-invariant ----
    xpart = mm(act_ref[...], wih) + blstm[...]           # (bb, 128)
    whh_v = whh[...]                                     # (32, 128) = 4 vregs, resident
    lane = jax.lax.broadcasted_iota(jnp.int32, (bb, LSTM_W), 1)
    g_mask = (lane >= 2 * G) & (lane < 3 * G)            # "g" gate block -> tanh

    for t in range(seq_len):                             # static unroll (seq_len = 8)
        z = xpart + jnp.dot(h, whh_v, preferred_element_type=f32)   # (bb, 128)
        # One EUP tanh over the packed vreg: sigmoid(x) = 0.5*tanh(0.5x)+0.5
        zh = jnp.where(g_mask, z, 0.5 * z)
        th = jnp.tanh(zh)
        zn = jnp.where(g_mask, th, 0.5 * th + 0.5)
        i_g = zn[:, 0 * G:1 * G]
        f_g = zn[:, 1 * G:2 * G]
        g_g = zn[:, 2 * G:3 * G]
        o_g = zn[:, 3 * G:4 * G]
        c = f_g * c + i_g * g_g                          # pad lanes stay exactly 0 in h
        h = o_g * jnp.tanh(c)
        # decoder of step t depends only on h_t -> scheduler overlaps it with
        # step t+1's recurrence; nothing round-trips through VMEM scratch.
        d = jnp.maximum(mm(h, dw1) + db1[...], 0.0)      # (bb, 24)
        d = jnp.maximum(mm(d, dw2) + db2[...], 0.0)      # (bb, 48)
        d = mm(d, dw3) + db3[...]                        # (bb, 64)
        out_ref[:, t, :] = d                             # batch-major output


# --------------------------------------------------------------------------
# Wrapper
# --------------------------------------------------------------------------
def forward(prepped, state, act, seq_len):
    """Mirrors fake_ks_env.forward(state, act).

    state: (B, 64) f32, act: (B, 4) f32.
    Returns (result[:, -1], result) with result: (B, seq_len, 64).
    """
    b = state.shape[0]
    # Batch-block the grid; at bb=128 the MXU M-dim is full and the grid
    # shards across v7x's two TensorCores via dimension_semantics.
    bb = b if (b <= 128 or b % 128 != 0) else 128
    nb = b // bb

    param_specs = [pl.BlockSpec(p.shape, lambda i: (0, 0)) for p in prepped]
    out = pl.pallas_call(
        functools.partial(_fused_forward_kernel, seq_len=seq_len),
        out_shape=jax.ShapeDtypeStruct((b, seq_len, 64), jnp.float32),
        grid=(nb,),
        in_specs=[pl.BlockSpec((bb, state.shape[1]), lambda i: (i, 0)),
                  pl.BlockSpec((bb, act.shape[1]), lambda i: (i, 0))] + param_specs,
        out_specs=pl.BlockSpec((bb, seq_len, 64), lambda i: (i, 0, 0)),
        compiler_params=pltpu.CompilerParams(
            dimension_semantics=("parallel",)),
    )(state, act, *prepped)
    return out[:, -1], out


# --------------------------------------------------------------------------
# Parameter preparation (done ONCE, outside jit; pure layout transforms)
# --------------------------------------------------------------------------
def prepare_params(params, meshx=64):
    conv_cfg = [(7, 3), (6, 2), (5, 1), (4, 1)]      # (kernel, stride)
    arrs = []

    # encoder convs -> block-Toeplitz dense weights on channels-last-flattened acts
    L, cin = meshx, 1
    for (wc, bc), (k, s) in zip(params["conv"], conv_cfg):
        wc = np.asarray(wc)
        bc = np.asarray(bc)
        cout = wc.shape[0]
        T = (L - k) // s + 1
        wt = np.zeros((L * cin, T * cout), np.float32)
        wk = np.transpose(wc, (2, 1, 0))             # (K, Cin, Cout)
        for t in range(T):
            for kk in range(k):
                l = t * s + kk
                wt[l * cin:(l + 1) * cin, t * cout:(t + 1) * cout] = wk[kk]
        arrs += [wt, np.tile(bc, T).reshape(1, T * cout)]
        L, cin = T, cout

    # self.l : Linear(48,24)+ReLU, Linear(24,12); second output padded to GATE_BLOCK
    (wl1, bl1), (wl2, bl2) = params["l"]
    arrs += [np.asarray(wl1).T.astype(np.float32),
             np.asarray(bl1).reshape(1, -1).astype(np.float32)]
    wl2p = np.zeros((24, GATE_BLOCK), np.float32)
    wl2p[:, :HIDDEN] = np.asarray(wl2).T
    bl2p = np.zeros((1, GATE_BLOCK), np.float32)
    bl2p[0, :HIDDEN] = np.asarray(bl2)
    arrs += [wl2p, bl2p]

    # LSTM: gates i,f,g,o packed into ONE 128-lane block, 32 lanes per gate
    lp = params["lstm"]
    wih = np.asarray(lp["w_ih"])                      # (48, 4)
    whh = np.asarray(lp["w_hh"])                      # (48, 12)
    bsum = np.asarray(lp["b_ih"]) + np.asarray(lp["b_hh"])
    wih_p = np.zeros((4, LSTM_W), np.float32)
    whh_p = np.zeros((GATE_BLOCK, LSTM_W), np.float32)
    b_p = np.zeros((1, LSTM_W), np.float32)
    for g in range(4):
        c0 = g * GATE_BLOCK
        wih_p[:, c0:c0 + HIDDEN] = wih[g * HIDDEN:(g + 1) * HIDDEN, :].T
        whh_p[:HIDDEN, c0:c0 + HIDDEN] = whh[g * HIDDEN:(g + 1) * HIDDEN, :].T
        b_p[0, c0:c0 + HIDDEN] = bsum[g * HIDDEN:(g + 1) * HIDDEN]
    arrs += [wih_p, whh_p, b_p]

    # decoder: Linear(12,24)+ReLU, Linear(24,48)+ReLU, Linear(48,64)
    (wd1, bd1), (wd2, bd2), (wd3, bd3) = params["dec"]
    wd1p = np.zeros((GATE_BLOCK, 24), np.float32)
    wd1p[:HIDDEN, :] = np.asarray(wd1).T
    arrs += [wd1p, np.asarray(bd1).reshape(1, -1).astype(np.float32),
             np.asarray(wd2).T.astype(np.float32),
             np.asarray(bd2).reshape(1, -1).astype(np.float32),
             np.asarray(wd3).T.astype(np.float32),
             np.asarray(bd3).reshape(1, -1).astype(np.float32)]

    # Pad-lane invariants the kernel relies on (keeps pad lanes of h exactly 0
    # and keeps them out of W_hh / decoder):
    assert not wl2p[:, HIDDEN:].any() and not bl2p[:, HIDDEN:].any()
    assert not whh_p[HIDDEN:, :].any()
    assert not wd1p[HIDDEN:, :].any()
    for g in range(4):
        c0 = g * GATE_BLOCK
        assert not wih_p[:, c0 + HIDDEN:c0 + GATE_BLOCK].any()
        assert not whh_p[:, c0 + HIDDEN:c0 + GATE_BLOCK].any()
        assert not b_p[:, c0 + HIDDEN:c0 + GATE_BLOCK].any()

    return tuple(jnp.asarray(a, dtype=jnp.float32) for a in arrs)


# --------------------------------------------------------------------------
# Parameter init (PyTorch layouts) + pure-JAX reference of the module
# --------------------------------------------------------------------------
def init_params(key):
    keys = iter(jax.random.split(key, 32))

    def w(shape, scale=0.1):
        return jax.random.normal(next(keys), shape, jnp.float32) * scale

    params = {}
    # encoder: Conv1d(1,8,7,s=3) ReLU Conv1d(8,16,6,s=2) ReLU Conv1d(16,32,5) ReLU Conv1d(32,48,4)
    params["conv"] = [
        (w((8, 1, 7)), w((8,))),
        (w((16, 8, 6)), w((16,))),
        (w((32, 16, 5)), w((32,))),
        (w((48, 32, 4)), w((48,))),
    ]
    # l: Linear(48,24) ReLU Linear(24,12)   (PyTorch (out,in) layout)
    params["l"] = [(w((24, 48)), w((24,))), (w((12, 24)), w((12,)))]
    # lstm: LSTM(4, 12, 1, batch_first=True)
    params["lstm"] = dict(w_ih=w((48, 4)), w_hh=w((48, 12)),
                          b_ih=w((48,)), b_hh=w((48,)))
    # decoder: Linear(12,24) ReLU Linear(24,48) ReLU Linear(48,64)
    params["dec"] = [(w((24, 12)), w((24,))),
                     (w((48, 24)), w((48,))),
                     (w((64, 48)), w((64,)))]
    return params


def reference_forward(params, state, act, seq_len):
    """Plain-JAX mirror of the PyTorch forward() (for correctness check)."""
    hp = jax.lax.Precision.HIGHEST
    x = state[:, None, :]                              # (B, 1, 64) NCW
    strides = [3, 2, 1, 1]
    for li, ((wc, bc), s) in enumerate(zip(params["conv"], strides)):
        x = jax.lax.conv_general_dilated(
            x, wc, (s,), "VALID",
            dimension_numbers=("NCH", "OIH", "NCH"), precision=hp)
        x = x + bc[None, :, None]
        if li < 3:
            x = jnp.maximum(x, 0.0)
    x = x[:, :, 0]                                     # (B, 48)
    (wl1, bl1), (wl2, bl2) = params["l"]
    x = jnp.maximum(jnp.dot(x, wl1.T, precision=hp) + bl1, 0.0)
    h = jnp.dot(x, wl2.T, precision=hp) + bl2
    c = h
    lp = params["lstm"]
    xpart = jnp.dot(act, lp["w_ih"].T, precision=hp) + lp["b_ih"] + lp["b_hh"]
    H = HIDDEN
    outs = []
    for _ in range(seq_len):
        z = xpart + jnp.dot(h, lp["w_hh"].T, precision=hp)
        i = jax.nn.sigmoid(z[:, :H])
        f = jax.nn.sigmoid(z[:, H:2 * H])
        g = jnp.tanh(z[:, 2 * H:3 * H])
        o = jax.nn.sigmoid(z[:, 3 * H:])
        c = f * c + i * g
        h = o * jnp.tanh(c)
        d = h
        for li, (wd, bd) in enumerate(params["dec"]):
            d = jnp.dot(d, wd.T, precision=hp) + bd
            if li < 2:
                d = jnp.maximum(d, 0.0)
        outs.append(d)
    result = jnp.stack(outs, axis=1)                   # (B, seq_len, 64)
    return result[:, -1], result


if __name__ == "__main__":
    # meshx = 64 is implied by the conv-encoder arithmetic (64 -> 20 -> 8 -> 4 -> 1)
    # and by the decoder's 64-wide output being re-fed as state.
    B, MESHX, ACT_DIM, SEQ_LEN = 2, 64, 4, 8

    key = jax.random.PRNGKey(0)
    k_state, k_act, k_param = jax.random.split(key, 3)
    state = jax.random.normal(k_state, (B, MESHX), jnp.float32)
    act = jax.random.normal(k_act, (B, ACT_DIM), jnp.float32)
    params = init_params(k_param)

    prepped = prepare_params(params, meshx=MESHX)      # once, outside jit

    fwd = jax.jit(functools.partial(forward, seq_len=SEQ_LEN))
    out, result = fwd(prepped, state, act)
    jax.block_until_ready(out)

    assert out.shape == (B, 64)
    assert result.shape == (B, SEQ_LEN, 64)
    assert out.dtype == jnp.float32

    # correctness vs plain-JAX reference of the PyTorch module
    ref_out, ref_result = reference_forward(params, state, act, SEQ_LEN)
    np.testing.assert_allclose(np.asarray(result), np.asarray(ref_result),
                               rtol=1e-2, atol=1e-2)
    np.testing.assert_allclose(np.asarray(out), np.asarray(ref_out),
                               rtol=1e-2, atol=1e-2)

    print("KERNEL_OK")
</pallas_src>

<mosaic_0001>
module attributes {stable_mosaic.version = 11 : i64} {
  func.func @_fused_forward_kernel(%arg0: i32, %arg1: memref<2x64xf32, #tpu.memory_space<vmem>>, %arg2: memref<2x4xf32, #tpu.memory_space<vmem>>, %arg3: memref<64x160xf32, #tpu.memory_space<vmem>>, %arg4: memref<1x160xf32, #tpu.memory_space<vmem>>, %arg5: memref<160x128xf32, #tpu.memory_space<vmem>>, %arg6: memref<1x128xf32, #tpu.memory_space<vmem>>, %arg7: memref<128x128xf32, #tpu.memory_space<vmem>>, %arg8: memref<1x128xf32, #tpu.memory_space<vmem>>, %arg9: memref<128x48xf32, #tpu.memory_space<vmem>>, %arg10: memref<1x48xf32, #tpu.memory_space<vmem>>, %arg11: memref<48x24xf32, #tpu.memory_space<vmem>>, %arg12: memref<1x24xf32, #tpu.memory_space<vmem>>, %arg13: memref<24x32xf32, #tpu.memory_space<vmem>>, %arg14: memref<1x32xf32, #tpu.memory_space<vmem>>, %arg15: memref<4x128xf32, #tpu.memory_space<vmem>>, %arg16: memref<32x128xf32, #tpu.memory_space<vmem>>, %arg17: memref<1x128xf32, #tpu.memory_space<vmem>>, %arg18: memref<32x24xf32, #tpu.memory_space<vmem>>, %arg19: memref<1x24xf32, #tpu.memory_space<vmem>>, %arg20: memref<24x48xf32, #tpu.memory_space<vmem>>, %arg21: memref<1x48xf32, #tpu.memory_space<vmem>>, %arg22: memref<48x64xf32, #tpu.memory_space<vmem>>, %arg23: memref<1x64xf32, #tpu.memory_space<vmem>>, %arg24: memref<2x8x64xf32, #tpu.memory_space<vmem>>) attributes {dimension_semantics = [#tpu.dimension_semantics<parallel>], iteration_bounds = array<i64: 1>, scalar_prefetch = 0 : i64, scratch_operands = 0 : i64, tpu.core_type = #tpu.core_type<tc>, window_params = [{transform_indices = @transform_0, window_bounds = array<i64: 2, 64>}, {transform_indices = @transform_1, window_bounds = array<i64: 2, 4>}, {pipeline_mode = #tpu.pipeline_mode<synchronous>, transform_indices = @transform_2, window_bounds = array<i64: 64, 160>}, {pipeline_mode = #tpu.pipeline_mode<synchronous>, transform_indices = @transform_3, window_bounds = array<i64: 1, 160>}, {pipeline_mode = #tpu.pipeline_mode<synchronous>, transform_indices = @transform_4, window_bounds = array<i64: 160, 128>}, {pipeline_mode = #tpu.pipeline_mode<synchronous>, transform_indices = @transform_5, window_bounds = array<i64: 1, 128>}, {pipeline_mode = #tpu.pipeline_mode<synchronous>, transform_indices = @transform_6, window_bounds = array<i64: 128, 128>}, {pipeline_mode = #tpu.pipeline_mode<synchronous>, transform_indices = @transform_7, window_bounds = array<i64: 1, 128>}, {pipeline_mode = #tpu.pipeline_mode<synchronous>, transform_indices = @transform_8, window_bounds = array<i64: 128, 48>}, {pipeline_mode = #tpu.pipeline_mode<synchronous>, transform_indices = @transform_9, window_bounds = array<i64: 1, 48>}, {pipeline_mode = #tpu.pipeline_mode<synchronous>, transform_indices = @transform_10, window_bounds = array<i64: 48, 24>}, {pipeline_mode = #tpu.pipeline_mode<synchronous>, transform_indices = @transform_11, window_bounds = array<i64: 1, 24>}, {pipeline_mode = #tpu.pipeline_mode<synchronous>, transform_indices = @transform_12, window_bounds = array<i64: 24, 32>}, {pipeline_mode = #tpu.pipeline_mode<synchronous>, transform_indices = @transform_13, window_bounds = array<i64: 1, 32>}, {pipeline_mode = #tpu.pipeline_mode<synchronous>, transform_indices = @transform_14, window_bounds = array<i64: 4, 128>}, {pipeline_mode = #tpu.pipeline_mode<synchronous>, transform_indices = @transform_15, window_bounds = array<i64: 32, 128>}, {pipeline_mode = #tpu.pipeline_mode<synchronous>, transform_indices = @transform_16, window_bounds = array<i64: 1, 128>}, {pipeline_mode = #tpu.pipeline_mode<synchronous>, transform_indices = @transform_17, window_bounds = array<i64: 32, 24>}, {pipeline_mode = #tpu.pipeline_mode<synchronous>, transform_indices = @transform_18, window_bounds = array<i64: 1, 24>}, {pipeline_mode = #tpu.pipeline_mode<synchronous>, transform_indices = @transform_19, window_bounds = array<i64: 24, 48>}, {pipeline_mode = #tpu.pipeline_mode<synchronous>, transform_indices = @transform_20, window_bounds = array<i64: 1, 48>}, {pipeline_mode = #tpu.pipeline_mode<synchronous>, transform_indices = @transform_21, window_bounds = array<i64: 48, 64>}, {pipeline_mode = #tpu.pipeline_mode<synchronous>, transform_indices = @transform_22, window_bounds = array<i64: 1, 64>}, {transform_indices = @transform_23, window_bounds = array<i64: 2, 8, 64>}]} {
    %c0 = arith.constant 0 : index
    %c0_0 = arith.constant 0 : index
    %0 = vector.load %arg1[%c0, %c0_0] : memref<2x64xf32, #tpu.memory_space<vmem>>, vector<2x64xf32>
    %c0_1 = arith.constant 0 : index
    %c0_2 = arith.constant 0 : index
    %1 = vector.load %arg3[%c0_1, %c0_2] : memref<64x160xf32, #tpu.memory_space<vmem>>, vector<64x160xf32>
    %cst = arith.constant dense<0.000000e+00> : vector<2x160xf32>
    %2 = tpu.matmul %0, %1, %cst {dimension_numbers = #tpu.dot_dimension_numbers<[1], [0], [0], [1], [0, 0, 1, 1], [], []>} : vector<2x64xf32>, vector<64x160xf32>, vector<2x160xf32> -> vector<2x160xf32>
    %c0_3 = arith.constant 0 : index
    %c0_4 = arith.constant 0 : index
    %3 = vector.load %arg4[%c0_3, %c0_4] : memref<1x160xf32, #tpu.memory_space<vmem>>, vector<1x160xf32>
    %4 = vector.broadcast %3 : vector<1x160xf32> to vector<2x160xf32>
    %5 = arith.addf %2, %4 : vector<2x160xf32>
    %cst_5 = arith.constant 0.000000e+00 : f32
    %6 = vector.broadcast %cst_5 : f32 to vector<2x160xf32>
    %7 = arith.maximumf %5, %6 : vector<2x160xf32>
    %c0_6 = arith.constant 0 : index
    %c0_7 = arith.constant 0 : index
    %8 = vector.load %arg5[%c0_6, %c0_7] : memref<160x128xf32, #tpu.memory_space<vmem>>, vector<160x128xf32>
    %cst_8 = arith.constant dense<0.000000e+00> : vector<2x128xf32>
    %9 = tpu.matmul %7, %8, %cst_8 {dimension_numbers = #tpu.dot_dimension_numbers<[1], [0], [0], [1], [0, 0, 1, 1], [], []>} : vector<2x160xf32>, vector<160x128xf32>, vector<2x128xf32> -> vector<2x128xf32>
    %c0_9 = arith.constant 0 : index
    %c0_10 = arith.constant 0 : index
    %10 = vector.load %arg6[%c0_9, %c0_10] : memref<1x128xf32, #tpu.memory_space<vmem>>, vector<1x128xf32>
    %11 = vector.broadcast %10 : vector<1x128xf32> to vector<2x128xf32>
    %12 = arith.addf %9, %11 : vector<2x128xf32>
    %cst_11 = arith.constant 0.000000e+00 : f32
    %13 = vector.broadcast %cst_11 : f32 to vector<2x128xf32>
    %14 = arith.maximumf %12, %13 : vector<2x128xf32>
    %c0_12 = arith.constant 0 : index
    %c0_13 = arith.constant 0 : index
    %15 = vector.load %arg7[%c0_12, %c0_13] : memref<128x128xf32, #tpu.memory_space<vmem>>, vector<128x128xf32>
    %cst_14 = arith.constant dense<0.000000e+00> : vector<2x128xf32>
    %16 = tpu.matmul %14, %15, %cst_14 {dimension_numbers = #tpu.dot_dimension_numbers<[1], [0], [0], [1], [0, 0, 1, 1], [], []>} : vector<2x128xf32>, vector<128x128xf32>, vector<2x128xf32> -> vector<2x128xf32>
    %c0_15 = arith.constant 0 : index
    %c0_16 = arith.constant 0 : index
    %17 = vector.load %arg8[%c0_15, %c0_16] : memref<1x128xf32, #tpu.memory_space<vmem>>, vector<1x128xf32>
    %18 = vector.broadcast %17 : vector<1x128xf32> to vector<2x128xf32>
    %19 = arith.addf %16, %18 : vector<2x128xf32>
    %cst_17 = arith.constant 0.000000e+00 : f32
    %20 = vector.broadcast %cst_17 : f32 to vector<2x128xf32>
    %21 = arith.maximumf %19, %20 : vector<2x128xf32>
    %c0_18 = arith.constant 0 : index
    %c0_19 = arith.constant 0 : index
    %22 = vector.load %arg9[%c0_18, %c0_19] : memref<128x48xf32, #tpu.memory_space<vmem>>, vector<128x48xf32>
    %cst_20 = arith.constant dense<0.000000e+00> : vector<2x48xf32>
    %23 = tpu.matmul %21, %22, %cst_20 {dimension_numbers = #tpu.dot_dimension_numbers<[1], [0], [0], [1], [0, 0, 1, 1], [], []>} : vector<2x128xf32>, vector<128x48xf32>, vector<2x48xf32> -> vector<2x48xf32>
    %c0_21 = arith.constant 0 : index
    %c0_22 = arith.constant 0 : index
    %24 = vector.load %arg10[%c0_21, %c0_22] : memref<1x48xf32, #tpu.memory_space<vmem>>, vector<1x48xf32>
    %25 = vector.broadcast %24 : vector<1x48xf32> to vector<2x48xf32>
    %26 = arith.addf %23, %25 : vector<2x48xf32>
    %c0_23 = arith.constant 0 : index
    %c0_24 = arith.constant 0 : index
    %27 = vector.load %arg11[%c0_23, %c0_24] : memref<48x24xf32, #tpu.memory_space<vmem>>, vector<48x24xf32>
    %cst_25 = arith.constant dense<0.000000e+00> : vector<2x24xf32>
    %28 = tpu.matmul %26, %27, %cst_25 {dimension_numbers = #tpu.dot_dimension_numbers<[1], [0], [0], [1], [0, 0, 1, 1], [], []>} : vector<2x48xf32>, vector<48x24xf32>, vector<2x24xf32> -> vector<2x24xf32>
    %c0_26 = arith.constant 0 : index
    %c0_27 = arith.constant 0 : index
    %29 = vector.load %arg12[%c0_26, %c0_27] : memref<1x24xf32, #tpu.memory_space<vmem>>, vector<1x24xf32>
    %30 = vector.broadcast %29 : vector<1x24xf32> to vector<2x24xf32>
    %31 = arith.addf %28, %30 : vector<2x24xf32>
    %cst_28 = arith.constant 0.000000e+00 : f32
    %32 = vector.broadcast %cst_28 : f32 to vector<2x24xf32>
    %33 = arith.maximumf %31, %32 : vector<2x24xf32>
    %c0_29 = arith.constant 0 : index
    %c0_30 = arith.constant 0 : index
    %34 = vector.load %arg13[%c0_29, %c0_30] : memref<24x32xf32, #tpu.memory_space<vmem>>, vector<24x32xf32>
    %cst_31 = arith.constant dense<0.000000e+00> : vector<2x32xf32>
    %35 = tpu.matmul %33, %34, %cst_31 {dimension_numbers = #tpu.dot_dimension_numbers<[1], [0], [0], [1], [0, 0, 1, 1], [], []>} : vector<2x24xf32>, vector<24x32xf32>, vector<2x32xf32> -> vector<2x32xf32>
    %c0_32 = arith.constant 0 : index
    %c0_33 = arith.constant 0 : index
    %36 = vector.load %arg14[%c0_32, %c0_33] : memref<1x32xf32, #tpu.memory_space<vmem>>, vector<1x32xf32>
    %37 = vector.broadcast %36 : vector<1x32xf32> to vector<2x32xf32>
    %38 = arith.addf %35, %37 : vector<2x32xf32>
    %c0_34 = arith.constant 0 : index
    %c0_35 = arith.constant 0 : index
    %39 = vector.load %arg2[%c0_34, %c0_35] : memref<2x4xf32, #tpu.memory_space<vmem>>, vector<2x4xf32>
    %c0_36 = arith.constant 0 : index
    %c0_37 = arith.constant 0 : index
    %40 = vector.load %arg15[%c0_36, %c0_37] : memref<4x128xf32, #tpu.memory_space<vmem>>, vector<4x128xf32>
    %cst_38 = arith.constant dense<0.000000e+00> : vector<2x128xf32>
    %41 = tpu.matmul %39, %40, %cst_38 {dimension_numbers = #tpu.dot_dimension_numbers<[1], [0], [0], [1], [0, 0, 1, 1], [], []>} : vector<2x4xf32>, vector<4x128xf32>, vector<2x128xf32> -> vector<2x128xf32>
    %c0_39 = arith.constant 0 : index
    %c0_40 = arith.constant 0 : index
    %42 = vector.load %arg17[%c0_39, %c0_40] : memref<1x128xf32, #tpu.memory_space<vmem>>, vector<1x128xf32>
    %43 = vector.broadcast %42 : vector<1x128xf32> to vector<2x128xf32>
    %44 = arith.addf %41, %43 : vector<2x128xf32>
    %c0_41 = arith.constant 0 : index
    %c0_42 = arith.constant 0 : index
    %45 = vector.load %arg16[%c0_41, %c0_42] : memref<32x128xf32, #tpu.memory_space<vmem>>, vector<32x128xf32>
    %46 = tpu.iota {dimensions = array<i32: 1>} : vector<2x128xi32>
    %c64_i32 = arith.constant 64 : i32
    %47 = vector.broadcast %c64_i32 : i32 to vector<2x128xi32>
    %48 = arith.cmpi sge, %46, %47 : vector<2x128xi32>
    %c96_i32 = arith.constant 96 : i32
    %49 = vector.broadcast %c96_i32 : i32 to vector<2x128xi32>
    %50 = arith.cmpi slt, %46, %49 : vector<2x128xi32>
    %51 = arith.andi %48, %50 : vector<2x128xi1>
    %cst_43 = arith.constant dense<0.000000e+00> : vector<2x128xf32>
    %52 = tpu.matmul %38, %45, %cst_43 {dimension_numbers = #tpu.dot_dimension_numbers<[1], [0], [0], [1], [0, 0, 1, 1], [], []>} : vector<2x32xf32>, vector<32x128xf32>, vector<2x128xf32> -> vector<2x128xf32>
    %53 = arith.addf %44, %52 : vector<2x128xf32>
    %cst_44 = arith.constant 5.000000e-01 : f32
    %54 = vector.broadcast %cst_44 : f32 to vector<2x128xf32>
    %55 = arith.mulf %54, %53 : vector<2x128xf32>
    %56 = arith.select %51, %53, %55 : vector<2x128xi1>, vector<2x128xf32>
    %57 = math.tanh %56 : vector<2x128xf32>
    %cst_45 = arith.constant 5.000000e-01 : f32
    %58 = vector.broadcast %cst_45 : f32 to vector<2x128xf32>
    %59 = arith.mulf %58, %57 : vector<2x128xf32>
    %cst_46 = arith.constant 5.000000e-01 : f32
    %60 = vector.broadcast %cst_46 : f32 to vector<2x128xf32>
    %61 = arith.addf %59, %60 : vector<2x128xf32>
    %62 = arith.select %51, %57, %61 : vector<2x128xi1>, vector<2x128xf32>
    %63 = vector.extract_strided_slice %62 {offsets = [0, 0], sizes = [2, 32], strides = [1, 1]} : vector<2x128xf32> to vector<2x32xf32>
    %64 = vector.extract_strided_slice %62 {offsets = [0, 32], sizes = [2, 32], strides = [1, 1]} : vector<2x128xf32> to vector<2x32xf32>
    %65 = vector.extract_strided_slice %62 {offsets = [0, 64], sizes = [2, 32], strides = [1, 1]} : vector<2x128xf32> to vector<2x32xf32>
    %66 = vector.extract_strided_slice %62 {offsets = [0, 96], sizes = [2, 32], strides = [1, 1]} : vector<2x128xf32> to vector<2x32xf32>
    %67 = arith.mulf %64, %38 : vector<2x32xf32>
    %68 = arith.mulf %63, %65 : vector<2x32xf32>
    %69 = arith.addf %67, %68 : vector<2x32xf32>
    %70 = math.tanh %69 : vector<2x32xf32>
    %71 = arith.mulf %66, %70 : vector<2x32xf32>
    %c0_47 = arith.constant 0 : index
    %c0_48 = arith.constant 0 : index
    %72 = vector.load %arg18[%c0_47, %c0_48] : memref<32x24xf32, #tpu.memory_space<vmem>>, vector<32x24xf32>
    %cst_49 = arith.constant dense<0.000000e+00> : vector<2x24xf32>
    %73 = tpu.matmul %71, %72, %cst_49 {dimension_numbers = #tpu.dot_dimension_numbers<[1], [0], [0], [1], [0, 0, 1, 1], [], []>} : vector<2x32xf32>, vector<32x24xf32>, vector<2x24xf32> -> vector<2x24xf32>
    %c0_50 = arith.constant 0 : index
    %c0_51 = arith.constant 0 : index
    %74 = vector.load %arg19[%c0_50, %c0_51] : memref<1x24xf32, #tpu.memory_space<vmem>>, vector<1x24xf32>
    %75 = vector.broadcast %74 : vector<1x24xf32> to vector<2x24xf32>
    %76 = arith.addf %73, %75 : vector<2x24xf32>
    %cst_52 = arith.constant 0.000000e+00 : f32
    %77 = vector.broadcast %cst_52 : f32 to vector<2x24xf32>
    %78 = arith.maximumf %76, %77 : vector<2x24xf32>
    %c0_53 = arith.constant 0 : index
    %c0_54 = arith.constant 0 : index
    %79 = vector.load %arg20[%c0_53, %c0_54] : memref<24x48xf32, #tpu.memory_space<vmem>>, vector<24x48xf32>
    %cst_55 = arith.constant dense<0.000000e+00> : vector<2x48xf32>
    %80 = tpu.matmul %78, %79, %cst_55 {dimension_numbers = #tpu.dot_dimension_numbers<[1], [0], [0], [1], [0, 0, 1, 1], [], []>} : vector<2x24xf32>, vector<24x48xf32>, vector<2x48xf32> -> vector<2x48xf32>
    %c0_56 = arith.constant 0 : index
    %c0_57 = arith.constant 0 : index
    %81 = vector.load %arg21[%c0_56, %c0_57] : memref<1x48xf32, #tpu.memory_space<vmem>>, vector<1x48xf32>
    %82 = vector.broadcast %81 : vector<1x48xf32> to vector<2x48xf32>
    %83 = arith.addf %80, %82 : vector<2x48xf32>
    %cst_58 = arith.constant 0.000000e+00 : f32
    %84 = vector.broadcast %cst_58 : f32 to vector<2x48xf32>
    %85 = arith.maximumf %83, %84 : vector<2x48xf32>
    %c0_59 = arith.constant 0 : index
    %c0_60 = arith.constant 0 : index
    %86 = vector.load %arg22[%c0_59, %c0_60] : memref<48x64xf32, #tpu.memory_space<vmem>>, vector<48x64xf32>
    %cst_61 = arith.constant dense<0.000000e+00> : vector<2x64xf32>
    %87 = tpu.matmul %85, %86, %cst_61 {dimension_numbers = #tpu.dot_dimension_numbers<[1], [0], [0], [1], [0, 0, 1, 1], [], []>} : vector<2x48xf32>, vector<48x64xf32>, vector<2x64xf32> -> vector<2x64xf32>
    %c0_62 = arith.constant 0 : index
    %c0_63 = arith.constant 0 : index
    %88 = vector.load %arg23[%c0_62, %c0_63] : memref<1x64xf32, #tpu.memory_space<vmem>>, vector<1x64xf32>
    %89 = vector.broadcast %88 : vector<1x64xf32> to vector<2x64xf32>
    %90 = arith.addf %87, %89 : vector<2x64xf32>
    %c0_64 = arith.constant 0 : index
    %c0_65 = arith.constant 0 : index
    %c0_66 = arith.constant 0 : index
    %91 = vector.load %arg24[%c0_64, %c0_65, %c0_66] : memref<2x8x64xf32, #tpu.memory_space<vmem>>, vector<2x1x64xf32>
    %92 = vector.shape_cast %91 : vector<2x1x64xf32> to vector<2x64xf32>
    %93 = vector.shape_cast %90 : vector<2x64xf32> to vector<2x1x64xf32>
    tpu.vector_store %arg24[%c0_64, %c0_65, %c0_66], %93 {strides = array<i32>} : memref<2x8x64xf32, #tpu.memory_space<vmem>>, vector<2x1x64xf32>,
    %cst_67 = arith.constant dense<0.000000e+00> : vector<2x128xf32>
    %94 = tpu.matmul %71, %45, %cst_67 {dimension_numbers = #tpu.dot_dimension_numbers<[1], [0], [0], [1], [0, 0, 1, 1], [], []>} : vector<2x32xf32>, vector<32x128xf32>, vector<2x128xf32> -> vector<2x128xf32>
    %95 = arith.addf %44, %94 : vector<2x128xf32>
    %cst_68 = arith.constant 5.000000e-01 : f32
    %96 = vector.broadcast %cst_68 : f32 to vector<2x128xf32>
    %97 = arith.mulf %96, %95 : vector<2x128xf32>
    %98 = arith.select %51, %95, %97 : vector<2x128xi1>, vector<2x128xf32>
    %99 = math.tanh %98 : vector<2x128xf32>
    %cst_69 = arith.constant 5.000000e-01 : f32
    %100 = vector.broadcast %cst_69 : f32 to vector<2x128xf32>
    %101 = arith.mulf %100, %99 : vector<2x128xf32>
    %cst_70 = arith.constant 5.000000e-01 : f32
    %102 = vector.broadcast %cst_70 : f32 to vector<2x128xf32>
    %103 = arith.addf %101, %102 : vector<2x128xf32>
    %104 = arith.select %51, %99, %103 : vector<2x128xi1>, vector<2x128xf32>
    %105 = vector.extract_strided_slice %104 {offsets = [0, 0], sizes = [2, 32], strides = [1, 1]} : vector<2x128xf32> to vector<2x32xf32>
    %106 = vector.extract_strided_slice %104 {offsets = [0, 32], sizes = [2, 32], strides = [1, 1]} : vector<2x128xf32> to vector<2x32xf32>
    %107 = vector.extract_strided_slice %104 {offsets = [0, 64], sizes = [2, 32], strides = [1, 1]} : vector<2x128xf32> to vector<2x32xf32>
    %108 = vector.extract_strided_slice %104 {offsets = [0, 96], sizes = [2, 32], strides = [1, 1]} : vector<2x128xf32> to vector<2x32xf32>
    %109 = arith.mulf %106, %69 : vector<2x32xf32>
    %110 = arith.mulf %105, %107 : vector<2x32xf32>
    %111 = arith.addf %109, %110 : vector<2x32xf32>
    %112 = math.tanh %111 : vector<2x32xf32>
    %113 = arith.mulf %108, %112 : vector<2x32xf32>
    %c0_71 = arith.constant 0 : index
    %c0_72 = arith.constant 0 : index
    %114 = vector.load %arg18[%c0_71, %c0_72] : memref<32x24xf32, #tpu.memory_space<vmem>>, vector<32x24xf32>
    %cst_73 = arith.constant dense<0.000000e+00> : vector<2x24xf32>
    %115 = tpu.matmul %113, %114, %cst_73 {dimension_numbers = #tpu.dot_dimension_numbers<[1], [0], [0], [1], [0, 0, 1, 1], [], []>} : vector<2x32xf32>, vector<32x24xf32>, vector<2x24xf32> -> vector<2x24xf32>
    %c0_74 = arith.constant 0 : index
    %c0_75 = arith.constant 0 : index
    %116 = vector.load %arg19[%c0_74, %c0_75] : memref<1x24xf32, #tpu.memory_space<vmem>>, vector<1x24xf32>
    %117 = vector.broadcast %116 : vector<1x24xf32> to vector<2x24xf32>
    %118 = arith.addf %115, %117 : vector<2x24xf32>
    %cst_76 = arith.constant 0.000000e+00 : f32
    %119 = vector.broadcast %cst_76 : f32 to vector<2x24xf32>
    %120 = arith.maximumf %118, %119 : vector<2x24xf32>
    %c0_77 = arith.constant 0 : index
    %c0_78 = arith.constant 0 : index
    %121 = vector.load %arg20[%c0_77, %c0_78] : memref<24x48xf32, #tpu.memory_space<vmem>>, vector<24x48xf32>
    %cst_79 = arith.constant dense<0.000000e+00> : vector<2x48xf32>
    %122 = tpu.matmul %120, %121, %cst_79 {dimension_numbers = #tpu.dot_dimension_numbers<[1], [0], [0], [1], [0, 0, 1, 1], [], []>} : vector<2x24xf32>, vector<24x48xf32>, vector<2x48xf32> -> vector<2x48xf32>
    %c0_80 = arith.constant 0 : index
    %c0_81 = arith.constant 0 : index
    %123 = vector.load %arg21[%c0_80, %c0_81] : memref<1x48xf32, #tpu.memory_space<vmem>>, vector<1x48xf32>
    %124 = vector.broadcast %123 : vector<1x48xf32> to vector<2x48xf32>
    %125 = arith.addf %122, %124 : vector<2x48xf32>
    %cst_82 = arith.constant 0.000000e+00 : f32
    %126 = vector.broadcast %cst_82 : f32 to vector<2x48xf32>
    %127 = arith.maximumf %125, %126 : vector<2x48xf32>
    %c0_83 = arith.constant 0 : index
    %c0_84 = arith.constant 0 : index
    %128 = vector.load %arg22[%c0_83, %c0_84] : memref<48x64xf32, #tpu.memory_space<vmem>>, vector<48x64xf32>
    %cst_85 = arith.constant dense<0.000000e+00> : vector<2x64xf32>
    %129 = tpu.matmul %127, %128, %cst_85 {dimension_numbers = #tpu.dot_dimension_numbers<[1], [0], [0], [1], [0, 0, 1, 1], [], []>} : vector<2x48xf32>, vector<48x64xf32>, vector<2x64xf32> -> vector<2x64xf32>
    %c0_86 = arith.constant 0 : index
    %c0_87 = arith.constant 0 : index
    %130 = vector.load %arg23[%c0_86, %c0_87] : memref<1x64xf32, #tpu.memory_space<vmem>>, vector<1x64xf32>
    %131 = vector.broadcast %130 : vector<1x64xf32> to vector<2x64xf32>
    %132 = arith.addf %129, %131 : vector<2x64xf32>
    %c0_88 = arith.constant 0 : index
    %c1 = arith.constant 1 : index
    %c0_89 = arith.constant 0 : index
    %133 = vector.load %arg24[%c0_88, %c1, %c0_89] : memref<2x8x64xf32, #tpu.memory_space<vmem>>, vector<2x1x64xf32>
    %134 = vector.shape_cast %133 : vector<2x1x64xf32> to vector<2x64xf32>
    %135 = vector.shape_cast %132 : vector<2x64xf32> to vector<2x1x64xf32>
    tpu.vector_store %arg24[%c0_88, %c1, %c0_89], %135 {strides = array<i32>} : memref<2x8x64xf32, #tpu.memory_space<vmem>>, vector<2x1x64xf32>,
    %cst_90 = arith.constant dense<0.000000e+00> : vector<2x128xf32>
    %136 = tpu.matmul %113, %45, %cst_90 {dimension_numbers = #tpu.dot_dimension_numbers<[1], [0], [0], [1], [0, 0, 1, 1], [], []>} : vector<2x32xf32>, vector<32x128xf32>, vector<2x128xf32> -> vector<2x128xf32>
    %137 = arith.addf %44, %136 : vector<2x128xf32>
    %cst_91 = arith.constant 5.000000e-01 : f32
    %138 = vector.broadcast %cst_91 : f32 to vector<2x128xf32>
    %139 = arith.mulf %138, %137 : vector<2x128xf32>
    %140 = arith.select %51, %137, %139 : vector<2x128xi1>, vector<2x128xf32>
    %141 = math.tanh %140 : vector<2x128xf32>
    %cst_92 = arith.constant 5.000000e-01 : f32
    %142 = vector.broadcast %cst_92 : f32 to vector<2x128xf32>
    %143 = arith.mulf %142, %141 : vector<2x128xf32>
    %cst_93 = arith.constant 5.000000e-01 : f32
    %144 = vector.broadcast %cst_93 : f32 to vector<2x128xf32>
    %145 = arith.addf %143, %144 : vector<2x128xf32>
    %146 = arith.select %51, %141, %145 : vector<2x128xi1>, vector<2x128xf32>
    %147 = vector.extract_strided_slice %146 {offsets = [0, 0], sizes = [2, 32], strides = [1, 1]} : vector<2x128xf32> to vector<2x32xf32>
    %148 = vector.extract_strided_slice %146 {offsets = [0, 32], sizes = [2, 32], strides = [1, 1]} : vector<2x128xf32> to vector<2x32xf32>
    %149 = vector.extract_strided_slice %146 {offsets = [0, 64], sizes = [2, 32], strides = [1, 1]} : vector<2x128xf32> to vector<2x32xf32>
    %150 = vector.extract_strided_slice %146 {offsets = [0, 96], sizes = [2, 32], strides = [1, 1]} : vector<2x128xf32> to vector<2x32xf32>
    %151 = arith.mulf %148, %111 : vector<2x32xf32>
    %152 = arith.mulf %147, %149 : vector<2x32xf32>
    %153 = arith.addf %151, %152 : vector<2x32xf32>
    %154 = math.tanh %153 : vector<2x32xf32>
    %155 = arith.mulf %150, %154 : vector<2x32xf32>
    %c0_94 = arith.constant 0 : index
    %c0_95 = arith.constant 0 : index
    %156 = vector.load %arg18[%c0_94, %c0_95] : memref<32x24xf32, #tpu.memory_space<vmem>>, vector<32x24xf32>
    %cst_96 = arith.constant dense<0.000000e+00> : vector<2x24xf32>
    %157 = tpu.matmul %155, %156, %cst_96 {dimension_numbers = #tpu.dot_dimension_numbers<[1], [0], [0], [1], [0, 0, 1, 1], [], []>} : vector<2x32xf32>, vector<32x24xf32>, vector<2x24xf32> -> vector<2x24xf32>
    %c0_97 = arith.constant 0 : index
    %c0_98 = arith.constant 0 : index
    %158 = vector.load %arg19[%c0_97, %c0_98] : memref<1x24xf32, #tpu.memory_space<vmem>>, vector<1x24xf32>
    %159 = vector.broadcast %158 : vector<1x24xf32> to vector<2x24xf32>
    %160 = arith.addf %157, %159 : vector<2x24xf32>
    %cst_99 = arith.constant 0.000000e+00 : f32
    %161 = vector.broadcast %cst_99 : f32 to vector<2x24xf32>
    %162 = arith.maximumf %160, %161 : vector<2x24xf32>
    %c0_100 = arith.constant 0 : index
    %c0_101 = arith.constant 0 : index
    %163 = vector.load %arg20[%c0_100, %c0_101] : memref<24x48xf32, #tpu.memory_space<vmem>>, vector<24x48xf32>
    %cst_102 = arith.constant dense<0.000000e+00> : vector<2x48xf32>
    %164 = tpu.matmul %162, %163, %cst_102 {dimension_numbers = #tpu.dot_dimension_numbers<[1], [0], [0], [1], [0, 0, 1, 1], [], []>} : vector<2x24xf32>, vector<24x48xf32>, vector<2x48xf32> -> vector<2x48xf32>
    %c0_103 = arith.constant 0 : index
    %c0_104 = arith.constant 0 : index
    %165 = vector.load %arg21[%c0_103, %c0_104] : memref<1x48xf32, #tpu.memory_space<vmem>>, vector<1x48xf32>
    %166 = vector.broadcast %165 : vector<1x48xf32> to vector<2x48xf32>
    %167 = arith.addf %164, %166 : vector<2x48xf32>
    %cst_105 = arith.constant 0.000000e+00 : f32
    %168 = vector.broadcast %cst_105 : f32 to vector<2x48xf32>
    %169 = arith.maximumf %167, %168 : vector<2x48xf32>
    %c0_106 = arith.constant 0 : index
    %c0_107 = arith.constant 0 : index
    %170 = vector.load %arg22[%c0_106, %c0_107] : memref<48x64xf32, #tpu.memory_space<vmem>>, vector<48x64xf32>
    %cst_108 = arith.constant dense<0.000000e+00> : vector<2x64xf32>
    %171 = tpu.matmul %169, %170, %cst_108 {dimension_numbers = #tpu.dot_dimension_numbers<[1], [0], [0], [1], [0, 0, 1, 1], [], []>} : vector<2x48xf32>, vector<48x64xf32>, vector<2x64xf32> -> vector<2x64xf32>
    %c0_109 = arith.constant 0 : index
    %c0_110 = arith.constant 0 : index
    %172 = vector.load %arg23[%c0_109, %c0_110] : memref<1x64xf32, #tpu.memory_space<vmem>>, vector<1x64xf32>
    %173 = vector.broadcast %172 : vector<1x64xf32> to vector<2x64xf32>
    %174 = arith.addf %171, %173 : vector<2x64xf32>
    %c0_111 = arith.constant 0 : index
    %c2 = arith.constant 2 : index
    %c0_112 = arith.constant 0 : index
    %175 = vector.load %arg24[%c0_111, %c2, %c0_112] : memref<2x8x64xf32, #tpu.memory_space<vmem>>, vector<2x1x64xf32>
    %176 = vector.shape_cast %175 : vector<2x1x64xf32> to vector<2x64xf32>
    %177 = vector.shape_cast %174 : vector<2x64xf32> to vector<2x1x64xf32>
    tpu.vector_store %arg24[%c0_111, %c2, %c0_112], %177 {strides = array<i32>} : memref<2x8x64xf32, #tpu.memory_space<vmem>>, vector<2x1x64xf32>,
    %cst_113 = arith.constant dense<0.000000e+00> : vector<2x128xf32>
    %178 = tpu.matmul %155, %45, %cst_113 {dimension_numbers = #tpu.dot_dimension_numbers<[1], [0], [0], [1], [0, 0, 1, 1], [], []>} : vector<2x32xf32>, vector<32x128xf32>, vector<2x128xf32> -> vector<2x128xf32>
    %179 = arith.addf %44, %178 : vector<2x128xf32>
    %cst_114 = arith.constant 5.000000e-01 : f32
    %180 = vector.broadcast %cst_114 : f32 to vector<2x128xf32>
    %181 = arith.mulf %180, %179 : vector<2x128xf32>
    %182 = arith.select %51, %179, %181 : vector<2x128xi1>, vector<2x128xf32>
    %183 = math.tanh %182 : vector<2x128xf32>
    %cst_115 = arith.constant 5.000000e-01 : f32
    %184 = vector.broadcast %cst_115 : f32 to vector<2x128xf32>
    %185 = arith.mulf %184, %183 : vector<2x128xf32>
    %cst_116 = arith.constant 5.000000e-01 : f32
    %186 = vector.broadcast %cst_116 : f32 to vector<2x128xf32>
    %187 = arith.addf %185, %186 : vector<2x128xf32>
    %188 = arith.select %51, %183, %187 : vector<2x128xi1>, vector<2x128xf32>
    %189 = vector.extract_strided_slice %188 {offsets = [0, 0], sizes = [2, 32], strides = [1, 1]} : vector<2x128xf32> to vector<2x32xf32>
    %190 = vector.extract_strided_slice %188 {offsets = [0, 32], sizes = [2, 32], strides = [1, 1]} : vector<2x128xf32> to vector<2x32xf32>
    %191 = vector.extract_strided_slice %188 {offsets = [0, 64], sizes = [2, 32], strides = [1, 1]} : vector<2x128xf32> to vector<2x32xf32>
    %192 = vector.extract_strided_slice %188 {offsets = [0, 96], sizes = [2, 32], strides = [1, 1]} : vector<2x128xf32> to vector<2x32xf32>
    %193 = arith.mulf %190, %153 : vector<2x32xf32>
    %194 = arith.mulf %189, %191 : vector<2x32xf32>
    %195 = arith.addf %193, %194 : vector<2x32xf32>
    %196 = math.tanh %195 : vector<2x32xf32>
    %197 = arith.mulf %192, %196 : vector<2x32xf32>
    %c0_117 = arith.constant 0 : index
    %c0_118 = arith.constant 0 : index
    %198 = vector.load %arg18[%c0_117, %c0_118] : memref<32x24xf32, #tpu.memory_space<vmem>>, vector<32x24xf32>
    %cst_119 = arith.constant dense<0.000000e+00> : vector<2x24xf32>
    %199 = tpu.matmul %197, %198, %cst_119 {dimension_numbers = #tpu.dot_dimension_numbers<[1], [0], [0], [1], [0, 0, 1, 1], [], []>} : vector<2x32xf32>, vector<32x24xf32>, vector<2x24xf32> -> vector<2x24xf32>
    %c0_120 = arith.constant 0 : index
    %c0_121 = arith.constant 0 : index
    %200 = vector.load %arg19[%c0_120, %c0_121] : memref<1x24xf32, #tpu.memory_space<vmem>>, vector<1x24xf32>
    %201 = vector.broadcast %200 : vector<1x24xf32> to vector<2x24xf32>
    %202 = arith.addf %199, %201 : vector<2x24xf32>
    %cst_122 = arith.constant 0.000000e+00 : f32
    %203 = vector.broadcast %cst_122 : f32 to vector<2x24xf32>
    %204 = arith.maximumf %202, %203 : vector<2x24xf32>
    %c0_123 = arith.constant 0 : index
    %c0_124 = arith.constant 0 : index
    %205 = vector.load %arg20[%c0_123, %c0_124] : memref<24x48xf32, #tpu.memory_space<vmem>>, vector<24x48xf32>
    %cst_125 = arith.constant dense<0.000000e+00> : vector<2x48xf32>
    %206 = tpu.matmul %204, %205, %cst_125 {dimension_numbers = #tpu.dot_dimension_numbers<[1], [0], [0], [1], [0, 0, 1, 1], [], []>} : vector<2x24xf32>, vector<24x48xf32>, vector<2x48xf32> -> vector<2x48xf32>
    %c0_126 = arith.constant 0 : index
    %c0_127 = arith.constant 0 : index
    %207 = vector.load %arg21[%c0_126, %c0_127] : memref<1x48xf32, #tpu.memory_space<vmem>>, vector<1x48xf32>
    %208 = vector.broadcast %207 : vector<1x48xf32> to vector<2x48xf32>
    %209 = arith.addf %206, %208 : vector<2x48xf32>
    %cst_128 = arith.constant 0.000000e+00 : f32
    %210 = vector.broadcast %cst_128 : f32 to vector<2x48xf32>
    %211 = arith.maximumf %209, %210 : vector<2x48xf32>
    %c0_129 = arith.constant 0 : index
    %c0_130 = arith.constant 0 : index
    %212 = vector.load %arg22[%c0_129, %c0_130] : memref<48x64xf32, #tpu.memory_space<vmem>>, vector<48x64xf32>
    %cst_131 = arith.constant dense<0.000000e+00> : vector<2x64xf32>
    %213 = tpu.matmul %211, %212, %cst_131 {dimension_numbers = #tpu.dot_dimension_numbers<[1], [0], [0], [1], [0, 0, 1, 1], [], []>} : vector<2x48xf32>, vector<48x64xf32>, vector<2x64xf32> -> vector<2x64xf32>
    %c0_132 = arith.constant 0 : index
    %c0_133 = arith.constant 0 : index
    %214 = vector.load %arg23[%c0_132, %c0_133] : memref<1x64xf32, #tpu.memory_space<vmem>>, vector<1x64xf32>
    %215 = vector.broadcast %214 : vector<1x64xf32> to vector<2x64xf32>
    %216 = arith.addf %213, %215 : vector<2x64xf32>
    %c0_134 = arith.constant 0 : index
    %c3 = arith.constant 3 : index
    %c0_135 = arith.constant 0 : index
    %217 = vector.load %arg24[%c0_134, %c3, %c0_135] : memref<2x8x64xf32, #tpu.memory_space<vmem>>, vector<2x1x64xf32>
    %218 = vector.shape_cast %217 : vector<2x1x64xf32> to vector<2x64xf32>
    %219 = vector.shape_cast %216 : vector<2x64xf32> to vector<2x1x64xf32>
    tpu.vector_store %arg24[%c0_134, %c3, %c0_135], %219 {strides = array<i32>} : memref<2x8x64xf32, #tpu.memory_space<vmem>>, vector<2x1x64xf32>,
    %cst_136 = arith.constant dense<0.000000e+00> : vector<2x128xf32>
    %220 = tpu.matmul %197, %45, %cst_136 {dimension_numbers = #tpu.dot_dimension_numbers<[1], [0], [0], [1], [0, 0, 1, 1], [], []>} : vector<2x32xf32>, vector<32x128xf32>, vector<2x128xf32> -> vector<2x128xf32>
    %221 = arith.addf %44, %220 : vector<2x128xf32>
    %cst_137 = arith.constant 5.000000e-01 : f32
    %222 = vector.broadcast %cst_137 : f32 to vector<2x128xf32>
    %223 = arith.mulf %222, %221 : vector<2x128xf32>
    %224 = arith.select %51, %221, %223 : vector<2x128xi1>, vector<2x128xf32>
    %225 = math.tanh %224 : vector<2x128xf32>
    %cst_138 = arith.constant 5.000000e-01 : f32
    %226 = vector.broadcast %cst_138 : f32 to vector<2x128xf32>
    %227 = arith.mulf %226, %225 : vector<2x128xf32>
    %cst_139 = arith.constant 5.000000e-01 : f32
    %228 = vector.broadcast %cst_139 : f32 to vector<2x128xf32>
    %229 = arith.addf %227, %228 : vector<2x128xf32>
    %230 = arith.select %51, %225, %229 : vector<2x128xi1>, vector<2x128xf32>
    %231 = vector.extract_strided_slice %230 {offsets = [0, 0], sizes = [2, 32], strides = [1, 1]} : vector<2x128xf32> to vector<2x32xf32>
    %232 = vector.extract_strided_slice %230 {offsets = [0, 32], sizes = [2, 32], strides = [1, 1]} : vector<2x128xf32> to vector<2x32xf32>
    %233 = vector.extract_strided_slice %230 {offsets = [0, 64], sizes = [2, 32], strides = [1, 1]} : vector<2x128xf32> to vector<2x32xf32>
    %234 = vector.extract_strided_slice %230 {offsets = [0, 96], sizes = [2, 32], strides = [1, 1]} : vector<2x128xf32> to vector<2x32xf32>
    %235 = arith.mulf %232, %195 : vector<2x32xf32>
    %236 = arith.mulf %231, %233 : vector<2x32xf32>
    %237 = arith.addf %235, %236 : vector<2x32xf32>
    %238 = math.tanh %237 : vector<2x32xf32>
    %239 = arith.mulf %234, %238 : vector<2x32xf32>
    %c0_140 = arith.constant 0 : index
    %c0_141 = arith.constant 0 : index
    %240 = vector.load %arg18[%c0_140, %c0_141] : memref<32x24xf32, #tpu.memory_space<vmem>>, vector<32x24xf32>
    %cst_142 = arith.constant dense<0.000000e+00> : vector<2x24xf32>
    %241 = tpu.matmul %239, %240, %cst_142 {dimension_numbers = #tpu.dot_dimension_numbers<[1], [0], [0], [1], [0, 0, 1, 1], [], []>} : vector<2x32xf32>, vector<32x24xf32>, vector<2x24xf32> -> vector<2x24xf32>
    %c0_143 = arith.constant 0 : index
    %c0_144 = arith.constant 0 : index
    %242 = vector.load %arg19[%c0_143, %c0_144] : memref<1x24xf32, #tpu.memory_space<vmem>>, vector<1x24xf32>
    %243 = vector.broadcast %242 : vector<1x24xf32> to vector<2x24xf32>
    %244 = arith.addf %241, %243 : vector<2x24xf32>
    %cst_145 = arith.constant 0.000000e+00 : f32
    %245 = vector.broadcast %cst_145 : f32 to vector<2x24xf32>
    %246 = arith.maximumf %244, %245 : vector<2x24xf32>
    %c0_146 = arith.constant 0 : index
    %c0_147 = arith.constant 0 : index
    %247 = vector.load %arg20[%c0_146, %c0_147] : memref<24x48xf32, #tpu.memory_space<vmem>>, vector<24x48xf32>
    %cst_148 = arith.constant dense<0.000000e+00> : vector<2x48xf32>
    %248 = tpu.matmul %246, %247, %cst_148 {dimension_numbers = #tpu.dot_dimension_numbers<[1], [0], [0], [1], [0, 0, 1, 1], [], []>} : vector<2x24xf32>, vector<24x48xf32>, vector<2x48xf32> -> vector<2x48xf32>
    %c0_149 = arith.constant 0 : index
    %c0_150 = arith.constant 0 : index
    %249 = vector.load %arg21[%c0_149, %c0_150] : memref<1x48xf32, #tpu.memory_space<vmem>>, vector<1x48xf32>
    %250 = vector.broadcast %249 : vector<1x48xf32> to vector<2x48xf32>
    %251 = arith.addf %248, %250 : vector<2x48xf32>
    %cst_151 = arith.constant 0.000000e+00 : f32
    %252 = vector.broadcast %cst_151 : f32 to vector<2x48xf32>
    %253 = arith.maximumf %251, %252 : vector<2x48xf32>
    %c0_152 = arith.constant 0 : index
    %c0_153 = arith.constant 0 : index
    %254 = vector.load %arg22[%c0_152, %c0_153] : memref<48x64xf32, #tpu.memory_space<vmem>>, vector<48x64xf32>
    %cst_154 = arith.constant dense<0.000000e+00> : vector<2x64xf32>
    %255 = tpu.matmul %253, %254, %cst_154 {dimension_numbers = #tpu.dot_dimension_numbers<[1], [0], [0], [1], [0, 0, 1, 1], [], []>} : vector<2x48xf32>, vector<48x64xf32>, vector<2x64xf32> -> vector<2x64xf32>
    %c0_155 = arith.constant 0 : index
    %c0_156 = arith.constant 0 : index
    %256 = vector.load %arg23[%c0_155, %c0_156] : memref<1x64xf32, #tpu.memory_space<vmem>>, vector<1x64xf32>
    %257 = vector.broadcast %256 : vector<1x64xf32> to vector<2x64xf32>
    %258 = arith.addf %255, %257 : vector<2x64xf32>
    %c0_157 = arith.constant 0 : index
    %c4 = arith.constant 4 : index
    %c0_158 = arith.constant 0 : index
    %259 = vector.load %arg24[%c0_157, %c4, %c0_158] : memref<2x8x64xf32, #tpu.memory_space<vmem>>, vector<2x1x64xf32>
    %260 = vector.shape_cast %259 : vector<2x1x64xf32> to vector<2x64xf32>
    %261 = vector.shape_cast %258 : vector<2x64xf32> to vector<2x1x64xf32>
    tpu.vector_store %arg24[%c0_157, %c4, %c0_158], %261 {strides = array<i32>} : memref<2x8x64xf32, #tpu.memory_space<vmem>>, vector<2x1x64xf32>,
    %cst_159 = arith.constant dense<0.000000e+00> : vector<2x128xf32>
    %262 = tpu.matmul %239, %45, %cst_159 {dimension_numbers = #tpu.dot_dimension_numbers<[1], [0], [0], [1], [0, 0, 1, 1], [], []>} : vector<2x32xf32>, vector<32x128xf32>, vector<2x128xf32> -> vector<2x128xf32>
    %263 = arith.addf %44, %262 : vector<2x128xf32>
    %cst_160 = arith.constant 5.000000e-01 : f32
    %264 = vector.broadcast %cst_160 : f32 to vector<2x128xf32>
    %265 = arith.mulf %264, %263 : vector<2x128xf32>
    %266 = arith.select %51, %263, %265 : vector<2x128xi1>, vector<2x128xf32>
    %267 = math.tanh %266 : vector<2x128xf32>
    %cst_161 = arith.constant 5.000000e-01 : f32
    %268 = vector.broadcast %cst_161 : f32 to vector<2x128xf32>
    %269 = arith.mulf %268, %267 : vector<2x128xf32>
    %cst_162 = arith.constant 5.000000e-01 : f32
    %270 = vector.broadcast %cst_162 : f32 to vector<2x128xf32>
    %271 = arith.addf %269, %270 : vector<2x128xf32>
    %272 = arith.select %51, %267, %271 : vector<2x128xi1>, vector<2x128xf32>
    %273 = vector.extract_strided_slice %272 {offsets = [0, 0], sizes = [2, 32], strides = [1, 1]} : vector<2x128xf32> to vector<2x32xf32>
    %274 = vector.extract_strided_slice %272 {offsets = [0, 32], sizes = [2, 32], strides = [1, 1]} : vector<2x128xf32> to vector<2x32xf32>
    %275 = vector.extract_strided_slice %272 {offsets = [0, 64], sizes = [2, 32], strides = [1, 1]} : vector<2x128xf32> to vector<2x32xf32>
    %276 = vector.extract_strided_slice %272 {offsets = [0, 96], sizes = [2, 32], strides = [1, 1]} : vector<2x128xf32> to vector<2x32xf32>
    %277 = arith.mulf %274, %237 : vector<2x32xf32>
    %278 = arith.mulf %273, %275 : vector<2x32xf32>
    %279 = arith.addf %277, %278 : vector<2x32xf32>
    %280 = math.tanh %279 : vector<2x32xf32>
    %281 = arith.mulf %276, %280 : vector<2x32xf32>
    %c0_163 = arith.constant 0 : index
    %c0_164 = arith.constant 0 : index
    %282 = vector.load %arg18[%c0_163, %c0_164] : memref<32x24xf32, #tpu.memory_space<vmem>>, vector<32x24xf32>
    %cst_165 = arith.constant dense<0.000000e+00> : vector<2x24xf32>
    %283 = tpu.matmul %281, %282, %cst_165 {dimension_numbers = #tpu.dot_dimension_numbers<[1], [0], [0], [1], [0, 0, 1, 1], [], []>} : vector<2x32xf32>, vector<32x24xf32>, vector<2x24xf32> -> vector<2x24xf32>
    %c0_166 = arith.constant 0 : index
    %c0_167 = arith.constant 0 : index
    %284 = vector.load %arg19[%c0_166, %c0_167] : memref<1x24xf32, #tpu.memory_space<vmem>>, vector<1x24xf32>
    %285 = vector.broadcast %284 : vector<1x24xf32> to vector<2x24xf32>
    %286 = arith.addf %283, %285 : vector<2x24xf32>
    %cst_168 = arith.constant 0.000000e+00 : f32
    %287 = vector.broadcast %cst_168 : f32 to vector<2x24xf32>
    %288 = arith.maximumf %286, %287 : vector<2x24xf32>
    %c0_169 = arith.constant 0 : index
    %c0_170 = arith.constant 0 : index
    %289 = vector.load %arg20[%c0_169, %c0_170] : memref<24x48xf32, #tpu.memory_space<vmem>>, vector<24x48xf32>
    %cst_171 = arith.constant dense<0.000000e+00> : vector<2x48xf32>
    %290 = tpu.matmul %288, %289, %cst_171 {dimension_numbers = #tpu.dot_dimension_numbers<[1], [0], [0], [1], [0, 0, 1, 1], [], []>} : vector<2x24xf32>, vector<24x48xf32>, vector<2x48xf32> -> vector<2x48xf32>
    %c0_172 = arith.constant 0 : index
    %c0_173 = arith.constant 0 : index
    %291 = vector.load %arg21[%c0_172, %c0_173] : memref<1x48xf32, #tpu.memory_space<vmem>>, vector<1x48xf32>
    %292 = vector.broadcast %291 : vector<1x48xf32> to vector<2x48xf32>
    %293 = arith.addf %290, %292 : vector<2x48xf32>
    %cst_174 = arith.constant 0.000000e+00 : f32
    %294 = vector.broadcast %cst_174 : f32 to vector<2x48xf32>
    %295 = arith.maximumf %293, %294 : vector<2x48xf32>
    %c0_175 = arith.constant 0 : index
    %c0_176 = arith.constant 0 : index
    %296 = vector.load %arg22[%c0_175, %c0_176] : memref<48x64xf32, #tpu.memory_space<vmem>>, vector<48x64xf32>
    %cst_177 = arith.constant dense<0.000000e+00> : vector<2x64xf32>
    %297 = tpu.matmul %295, %296, %cst_177 {dimension_numbers = #tpu.dot_dimension_numbers<[1], [0], [0], [1], [0, 0, 1, 1], [], []>} : vector<2x48xf32>, vector<48x64xf32>, vector<2x64xf32> -> vector<2x64xf32>
    %c0_178 = arith.constant 0 : index
    %c0_179 = arith.constant 0 : index
    %298 = vector.load %arg23[%c0_178, %c0_179] : memref<1x64xf32, #tpu.memory_space<vmem>>, vector<1x64xf32>
    %299 = vector.broadcast %298 : vector<1x64xf32> to vector<2x64xf32>
    %300 = arith.addf %297, %299 : vector<2x64xf32>
    %c0_180 = arith.constant 0 : index
    %c5 = arith.constant 5 : index
    %c0_181 = arith.constant 0 : index
    %301 = vector.load %arg24[%c0_180, %c5, %c0_181] : memref<2x8x64xf32, #tpu.memory_space<vmem>>, vector<2x1x64xf32>
    %302 = vector.shape_cast %301 : vector<2x1x64xf32> to vector<2x64xf32>
    %303 = vector.shape_cast %300 : vector<2x64xf32> to vector<2x1x64xf32>
    tpu.vector_store %arg24[%c0_180, %c5, %c0_181], %303 {strides = array<i32>} : memref<2x8x64xf32, #tpu.memory_space<vmem>>, vector<2x1x64xf32>,
    %cst_182 = arith.constant dense<0.000000e+00> : vector<2x128xf32>
    %304 = tpu.matmul %281, %45, %cst_182 {dimension_numbers = #tpu.dot_dimension_numbers<[1], [0], [0], [1], [0, 0, 1, 1], [], []>} : vector<2x32xf32>, vector<32x128xf32>, vector<2x128xf32> -> vector<2x128xf32>
    %305 = arith.addf %44, %304 : vector<2x128xf32>
    %cst_183 = arith.constant 5.000000e-01 : f32
    %306 = vector.broadcast %cst_183 : f32 to vector<2x128xf32>
    %307 = arith.mulf %306, %305 : vector<2x128xf32>
    %308 = arith.select %51, %305, %307 : vector<2x128xi1>, vector<2x128xf32>
    %309 = math.tanh %308 : vector<2x128xf32>
    %cst_184 = arith.constant 5.000000e-01 : f32
    %310 = vector.broadcast %cst_184 : f32 to vector<2x128xf32>
    %311 = arith.mulf %310, %309 : vector<2x128xf32>
    %cst_185 = arith.constant 5.000000e-01 : f32
    %312 = vector.broadcast %cst_185 : f32 to vector<2x128xf32>
    %313 = arith.addf %311, %312 : vector<2x128xf32>
    %314 = arith.select %51, %309, %313 : vector<2x128xi1>, vector<2x128xf32>
    %315 = vector.extract_strided_slice %314 {offsets = [0, 0], sizes = [2, 32], strides = [1, 1]} : vector<2x128xf32> to vector<2x32xf32>
    %316 = vector.extract_strided_slice %314 {offsets = [0, 32], sizes = [2, 32], strides = [1, 1]} : vector<2x128xf32> to vector<2x32xf32>
    %317 = vector.extract_strided_slice %314 {offsets = [0, 64], sizes = [2, 32], strides = [1, 1]} : vector<2x128xf32> to vector<2x32xf32>
    %318 = vector.extract_strided_slice %314 {offsets = [0, 96], sizes = [2, 32], strides = [1, 1]} : vector<2x128xf32> to vector<2x32xf32>
    %319 = arith.mulf %316, %279 : vector<2x32xf32>
    %320 = arith.mulf %315, %317 : vector<2x32xf32>
    %321 = arith.addf %319, %320 : vector<2x32xf32>
    %322 = math.tanh %321 : vector<2x32xf32>
    %323 = arith.mulf %318, %322 : vector<2x32xf32>
    %c0_186 = arith.constant 0 : index
    %c0_187 = arith.constant 0 : index
    %324 = vector.load %arg18[%c0_186, %c0_187] : memref<32x24xf32, #tpu.memory_space<vmem>>, vector<32x24xf32>
    %cst_188 = arith.constant dense<0.000000e+00> : vector<2x24xf32>
    %325 = tpu.matmul %323, %324, %cst_188 {dimension_numbers = #tpu.dot_dimension_numbers<[1], [0], [0], [1], [0, 0, 1, 1], [], []>} : vector<2x32xf32>, vector<32x24xf32>, vector<2x24xf32> -> vector<2x24xf32>
    %c0_189 = arith.constant 0 : index
    %c0_190 = arith.constant 0 : index
    %326 = vector.load %arg19[%c0_189, %c0_190] : memref<1x24xf32, #tpu.memory_space<vmem>>, vector<1x24xf32>
    %327 = vector.broadcast %326 : vector<1x24xf32> to vector<2x24xf32>
    %328 = arith.addf %325, %327 : vector<2x24xf32>
    %cst_191 = arith.constant 0.000000e+00 : f32
    %329 = vector.broadcast %cst_191 : f32 to vector<2x24xf32>
    %330 = arith.maximumf %328, %329 : vector<2x24xf32>
    %c0_192 = arith.constant 0 : index
    %c0_193 = arith.constant 0 : index
    %331 = vector.load %arg20[%c0_192, %c0_193] : memref<24x48xf32, #tpu.memory_space<vmem>>, vector<24x48xf32>
    %cst_194 = arith.constant dense<0.000000e+00> : vector<2x48xf32>
    %332 = tpu.matmul %330, %331, %cst_194 {dimension_numbers = #tpu.dot_dimension_numbers<[1], [0], [0], [1], [0, 0, 1, 1], [], []>} : vector<2x24xf32>, vector<24x48xf32>, vector<2x48xf32> -> vector<2x48xf32>
    %c0_195 = arith.constant 0 : index
    %c0_196 = arith.constant 0 : index
    %333 = vector.load %arg21[%c0_195, %c0_196] : memref<1x48xf32, #tpu.memory_space<vmem>>, vector<1x48xf32>
    %334 = vector.broadcast %333 : vector<1x48xf32> to vector<2x48xf32>
    %335 = arith.addf %332, %334 : vector<2x48xf32>
    %cst_197 = arith.constant 0.000000e+00 : f32
    %336 = vector.broadcast %cst_197 : f32 to vector<2x48xf32>
    %337 = arith.maximumf %335, %336 : vector<2x48xf32>
    %c0_198 = arith.constant 0 : index
    %c0_199 = arith.constant 0 : index
    %338 = vector.load %arg22[%c0_198, %c0_199] : memref<48x64xf32, #tpu.memory_space<vmem>>, vector<48x64xf32>
    %cst_200 = arith.constant dense<0.000000e+00> : vector<2x64xf32>
    %339 = tpu.matmul %337, %338, %cst_200 {dimension_numbers = #tpu.dot_dimension_numbers<[1], [0], [0], [1], [0, 0, 1, 1], [], []>} : vector<2x48xf32>, vector<48x64xf32>, vector<2x64xf32> -> vector<2x64xf32>
    %c0_201 = arith.constant 0 : index
    %c0_202 = arith.constant 0 : index
    %340 = vector.load %arg23[%c0_201, %c0_202] : memref<1x64xf32, #tpu.memory_space<vmem>>, vector<1x64xf32>
    %341 = vector.broadcast %340 : vector<1x64xf32> to vector<2x64xf32>
    %342 = arith.addf %339, %341 : vector<2x64xf32>
    %c0_203 = arith.constant 0 : index
    %c6 = arith.constant 6 : index
    %c0_204 = arith.constant 0 : index
    %343 = vector.load %arg24[%c0_203, %c6, %c0_204] : memref<2x8x64xf32, #tpu.memory_space<vmem>>, vector<2x1x64xf32>
    %344 = vector.shape_cast %343 : vector<2x1x64xf32> to vector<2x64xf32>
    %345 = vector.shape_cast %342 : vector<2x64xf32> to vector<2x1x64xf32>
    tpu.vector_store %arg24[%c0_203, %c6, %c0_204], %345 {strides = array<i32>} : memref<2x8x64xf32, #tpu.memory_space<vmem>>, vector<2x1x64xf32>,
    %cst_205 = arith.constant dense<0.000000e+00> : vector<2x128xf32>
    %346 = tpu.matmul %323, %45, %cst_205 {dimension_numbers = #tpu.dot_dimension_numbers<[1], [0], [0], [1], [0, 0, 1, 1], [], []>} : vector<2x32xf32>, vector<32x128xf32>, vector<2x128xf32> -> vector<2x128xf32>
    %347 = arith.addf %44, %346 : vector<2x128xf32>
    %cst_206 = arith.constant 5.000000e-01 : f32
    %348 = vector.broadcast %cst_206 : f32 to vector<2x128xf32>
    %349 = arith.mulf %348, %347 : vector<2x128xf32>
    %350 = arith.select %51, %347, %349 : vector<2x128xi1>, vector<2x128xf32>
    %351 = math.tanh %350 : vector<2x128xf32>
    %cst_207 = arith.constant 5.000000e-01 : f32
    %352 = vector.broadcast %cst_207 : f32 to vector<2x128xf32>
    %353 = arith.mulf %352, %351 : vector<2x128xf32>
    %cst_208 = arith.constant 5.000000e-01 : f32
    %354 = vector.broadcast %cst_208 : f32 to vector<2x128xf32>
    %355 = arith.addf %353, %354 : vector<2x128xf32>
    %356 = arith.select %51, %351, %355 : vector<2x128xi1>, vector<2x128xf32>
    %357 = vector.extract_strided_slice %356 {offsets = [0, 0], sizes = [2, 32], strides = [1, 1]} : vector<2x128xf32> to vector<2x32xf32>
    %358 = vector.extract_strided_slice %356 {offsets = [0, 32], sizes = [2, 32], strides = [1, 1]} : vector<2x128xf32> to vector<2x32xf32>
    %359 = vector.extract_strided_slice %356 {offsets = [0, 64], sizes = [2, 32], strides = [1, 1]} : vector<2x128xf32> to vector<2x32xf32>
    %360 = vector.extract_strided_slice %356 {offsets = [0, 96], sizes = [2, 32], strides = [1, 1]} : vector<2x128xf32> to vector<2x32xf32>
    %361 = arith.mulf %358, %321 : vector<2x32xf32>
    %362 = arith.mulf %357, %359 : vector<2x32xf32>
    %363 = arith.addf %361, %362 : vector<2x32xf32>
    %364 = math.tanh %363 : vector<2x32xf32>
    %365 = arith.mulf %360, %364 : vector<2x32xf32>
    %c0_209 = arith.constant 0 : index
    %c0_210 = arith.constant 0 : index
    %366 = vector.load %arg18[%c0_209, %c0_210] : memref<32x24xf32, #tpu.memory_space<vmem>>, vector<32x24xf32>
    %cst_211 = arith.constant dense<0.000000e+00> : vector<2x24xf32>
    %367 = tpu.matmul %365, %366, %cst_211 {dimension_numbers = #tpu.dot_dimension_numbers<[1], [0], [0], [1], [0, 0, 1, 1], [], []>} : vector<2x32xf32>, vector<32x24xf32>, vector<2x24xf32> -> vector<2x24xf32>
    %c0_212 = arith.constant 0 : index
    %c0_213 = arith.constant 0 : index
    %368 = vector.load %arg19[%c0_212, %c0_213] : memref<1x24xf32, #tpu.memory_space<vmem>>, vector<1x24xf32>
    %369 = vector.broadcast %368 : vector<1x24xf32> to vector<2x24xf32>
    %370 = arith.addf %367, %369 : vector<2x24xf32>
    %cst_214 = arith.constant 0.000000e+00 : f32
    %371 = vector.broadcast %cst_214 : f32 to vector<2x24xf32>
    %372 = arith.maximumf %370, %371 : vector<2x24xf32>
    %c0_215 = arith.constant 0 : index
    %c0_216 = arith.constant 0 : index
    %373 = vector.load %arg20[%c0_215, %c0_216] : memref<24x48xf32, #tpu.memory_space<vmem>>, vector<24x48xf32>
    %cst_217 = arith.constant dense<0.000000e+00> : vector<2x48xf32>
    %374 = tpu.matmul %372, %373, %cst_217 {dimension_numbers = #tpu.dot_dimension_numbers<[1], [0], [0], [1], [0, 0, 1, 1], [], []>} : vector<2x24xf32>, vector<24x48xf32>, vector<2x48xf32> -> vector<2x48xf32>
    %c0_218 = arith.constant 0 : index
    %c0_219 = arith.constant 0 : index
    %375 = vector.load %arg21[%c0_218, %c0_219] : memref<1x48xf32, #tpu.memory_space<vmem>>, vector<1x48xf32>
    %376 = vector.broadcast %375 : vector<1x48xf32> to vector<2x48xf32>
    %377 = arith.addf %374, %376 : vector<2x48xf32>
    %cst_220 = arith.constant 0.000000e+00 : f32
    %378 = vector.broadcast %cst_220 : f32 to vector<2x48xf32>
    %379 = arith.maximumf %377, %378 : vector<2x48xf32>
    %c0_221 = arith.constant 0 : index
    %c0_222 = arith.constant 0 : index
    %380 = vector.load %arg22[%c0_221, %c0_222] : memref<48x64xf32, #tpu.memory_space<vmem>>, vector<48x64xf32>
    %cst_223 = arith.constant dense<0.000000e+00> : vector<2x64xf32>
    %381 = tpu.matmul %379, %380, %cst_223 {dimension_numbers = #tpu.dot_dimension_numbers<[1], [0], [0], [1], [0, 0, 1, 1], [], []>} : vector<2x48xf32>, vector<48x64xf32>, vector<2x64xf32> -> vector<2x64xf32>
    %c0_224 = arith.constant 0 : index
    %c0_225 = arith.constant 0 : index
    %382 = vector.load %arg23[%c0_224, %c0_225] : memref<1x64xf32, #tpu.memory_space<vmem>>, vector<1x64xf32>
    %383 = vector.broadcast %382 : vector<1x64xf32> to vector<2x64xf32>
    %384 = arith.addf %381, %383 : vector<2x64xf32>
    %c0_226 = arith.constant 0 : index
    %c7 = arith.constant 7 : index
    %c0_227 = arith.constant 0 : index
    %385 = vector.load %arg24[%c0_226, %c7, %c0_227] : memref<2x8x64xf32, #tpu.memory_space<vmem>>, vector<2x1x64xf32>
    %386 = vector.shape_cast %385 : vector<2x1x64xf32> to vector<2x64xf32>
    %387 = vector.shape_cast %384 : vector<2x64xf32> to vector<2x1x64xf32>
    tpu.vector_store %arg24[%c0_226, %c7, %c0_227], %387 {strides = array<i32>} : memref<2x8x64xf32, #tpu.memory_space<vmem>>, vector<2x1x64xf32>,
    return
  }
  func.func @transform_0(%arg0: i32) -> (i32, i32) {
    %c0_i32 = arith.constant 0 : i32
    %c0_i32_0 = arith.constant 0 : i32
    return %arg0, %c0_i32 : i32, i32
  }
  func.func @transform_1(%arg0: i32) -> (i32, i32) {
    %c0_i32 = arith.constant 0 : i32
    %c0_i32_0 = arith.constant 0 : i32
    return %arg0, %c0_i32 : i32, i32
  }
  func.func @transform_2(%arg0: i32) -> (i32, i32) {
    %c0_i32 = arith.constant 0 : i32
    %c0_i32_0 = arith.constant 0 : i32
    %c0_i32_1 = arith.constant 0 : i32
    return %c0_i32, %c0_i32_0 : i32, i32
  }
  func.func @transform_3(%arg0: i32) -> (i32, i32) {
    %c0_i32 = arith.constant 0 : i32
    %c0_i32_0 = arith.constant 0 : i32
    %c0_i32_1 = arith.constant 0 : i32
    return %c0_i32, %c0_i32_0 : i32, i32
  }
  func.func @transform_4(%arg0: i32) -> (i32, i32) {
    %c0_i32 = arith.constant 0 : i32
    %c0_i32_0 = arith.constant 0 : i32
    %c0_i32_1 = arith.constant 0 : i32
    return %c0_i32, %c0_i32_0 : i32, i32
  }
  func.func @transform_5(%arg0: i32) -> (i32, i32) {
    %c0_i32 = arith.constant 0 : i32
    %c0_i32_0 = arith.constant 0 : i32
    %c0_i32_1 = arith.constant 0 : i32
    return %c0_i32, %c0_i32_0 : i32, i32
  }
  func.func @transform_6(%arg0: i32) -> (i32, i32) {
    %c0_i32 = arith.constant 0 : i32
    %c0_i32_0 = arith.constant 0 : i32
    %c0_i32_1 = arith.constant 0 : i32
    return %c0_i32, %c0_i32_0 : i32, i32
  }
  func.func @transform_7(%arg0: i32) -> (i32, i32) {
    %c0_i32 = arith.constant 0 : i32
    %c0_i32_0 = arith.constant 0 : i32
    %c0_i32_1 = arith.constant 0 : i32
    return %c0_i32, %c0_i32_0 : i32, i32
  }
  func.func @transform_8(%arg0: i32) -> (i32, i32) {
    %c0_i32 = arith.constant 0 : i32
    %c0_i32_0 = arith.constant 0 : i32
    %c0_i32_1 = arith.constant 0 : i32
    return %c0_i32, %c0_i32_0 : i32, i32
  }
  func.func @transform_9(%arg0: i32) -> (i32, i32) {
    %c0_i32 = arith.constant 0 : i32
    %c0_i32_0 = arith.constant 0 : i32
    %c0_i32_1 = arith.constant 0 : i32
    return %c0_i32, %c0_i32_0 : i32, i32
  }
  func.func @transform_10(%arg0: i32) -> (i32, i32) {
    %c0_i32 = arith.constant 0 : i32
    %c0_i32_0 = arith.constant 0 : i32
    %c0_i32_1 = arith.constant 0 : i32
    return %c0_i32, %c0_i32_0 : i32, i32
  }
  func.func @transform_11(%arg0: i32) -> (i32, i32) {
    %c0_i32 = arith.constant 0 : i32
    %c0_i32_0 = arith.constant 0 : i32
    %c0_i32_1 = arith.constant 0 : i32
    return %c0_i32, %c0_i32_0 : i32, i32
  }
  func.func @transform_12(%arg0: i32) -> (i32, i32) {
    %c0_i32 = arith.constant 0 : i32
    %c0_i32_0 = arith.constant 0 : i32
    %c0_i32_1 = arith.constant 0 : i32
    return %c0_i32, %c0_i32_0 : i32, i32
  }
  func.func @transform_13(%arg0: i32) -> (i32, i32) {
    %c0_i32 = arith.constant 0 : i32
    %c0_i32_0 = arith.constant 0 : i32
    %c0_i32_1 = arith.constant 0 : i32
    return %c0_i32, %c0_i32_0 : i32, i32
  }
  func.func @transform_14(%arg0: i32) -> (i32, i32) {
    %c0_i32 = arith.constant 0 : i32
    %c0_i32_0 = arith.constant 0 : i32
    %c0_i32_1 = arith.constant 0 : i32
    return %c0_i32, %c0_i32_0 : i32, i32
  }
  func.func @transform_15(%arg0: i32) -> (i32, i32) {
    %c0_i32 = arith.constant 0 : i32
    %c0_i32_0 = arith.constant 0 : i32
    %c0_i32_1 = arith.constant 0 : i32
    return %c0_i32, %c0_i32_0 : i32, i32
  }
  func.func @transform_16(%arg0: i32) -> (i32, i32) {
    %c0_i32 = arith.constant 0 : i32
    %c0_i32_0 = arith.constant 0 : i32
    %c0_i32_1 = arith.constant 0 : i32
    return %c0_i32, %c0_i32_0 : i32, i32
  }
  func.func @transform_17(%arg0: i32) -> (i32, i32) {
    %c0_i32 = arith.constant 0 : i32
    %c0_i32_0 = arith.constant 0 : i32
    %c0_i32_1 = arith.constant 0 : i32
    return %c0_i32, %c0_i32_0 : i32, i32
  }
  func.func @transform_18(%arg0: i32) -> (i32, i32) {
    %c0_i32 = arith.constant 0 : i32
    %c0_i32_0 = arith.constant 0 : i32
    %c0_i32_1 = arith.constant 0 : i32
    return %c0_i32, %c0_i32_0 : i32, i32
  }
  func.func @transform_19(%arg0: i32) -> (i32, i32) {
    %c0_i32 = arith.constant 0 : i32
    %c0_i32_0 = arith.constant 0 : i32
    %c0_i32_1 = arith.constant 0 : i32
    return %c0_i32, %c0_i32_0 : i32, i32
  }
  func.func @transform_20(%arg0: i32) -> (i32, i32) {
    %c0_i32 = arith.constant 0 : i32
    %c0_i32_0 = arith.constant 0 : i32
    %c0_i32_1 = arith.constant 0 : i32
    return %c0_i32, %c0_i32_0 : i32, i32
  }
  func.func @transform_21(%arg0: i32) -> (i32, i32) {
    %c0_i32 = arith.constant 0 : i32
    %c0_i32_0 = arith.constant 0 : i32
    %c0_i32_1 = arith.constant 0 : i32
    return %c0_i32, %c0_i32_0 : i32, i32
  }
  func.func @transform_22(%arg0: i32) -> (i32, i32) {
    %c0_i32 = arith.constant 0 : i32
    %c0_i32_0 = arith.constant 0 : i32
    %c0_i32_1 = arith.constant 0 : i32
    return %c0_i32, %c0_i32_0 : i32, i32
  }
  func.func @transform_23(%arg0: i32) -> (i32, i32, i32) {
    %c0_i32 = arith.constant 0 : i32
    %c0_i32_0 = arith.constant 0 : i32
    %c0_i32_1 = arith.constant 0 : i32
    return %arg0, %c0_i32, %c0_i32_0 : i32, i32, i32
  }
}

</mosaic_0001>

<llo_original>
// kernel: forward.1
$region0: #{forward.1}
  #allocation0 [shape = 'u32[]', space=smem, size = 0x4, offset = 0x4, fixed_abs, tag = 'smem constant byte address 0x4 - core index']
  #allocation1 [shape = 'u32[144,128]{1,0:T(1,128)}', space=vmem, size = 0x12000, scoped, tag = 'internal scratch']
  %s0 = inlined_call_operand.vmem [shape: f32[2,64], index: 0, kind: input, shape index: {}]
  %s1 = inlined_call_operand.vmem [shape: f32[2,4], index: 1, kind: input, shape index: {}]
  %s2 = inlined_call_operand.vmem [shape: f32[64,160], index: 2, kind: input, shape index: {}]
  %s3 = inlined_call_operand.hbm [shape: f32[1,160], index: 3, kind: input, shape index: {}]
  %s4 = inlined_call_operand.vmem [shape: f32[160,128], index: 4, kind: input, shape index: {}]
  %s5 = inlined_call_operand.hbm [shape: f32[1,128], index: 5, kind: input, shape index: {}]
  %s6 = inlined_call_operand.hbm [shape: f32[128,128], index: 6, kind: input, shape index: {}]
  %s7 = inlined_call_operand.hbm [shape: f32[1,128], index: 7, kind: input, shape index: {}]
  %s8 = inlined_call_operand.vmem [shape: f32[128,48], index: 8, kind: input, shape index: {}]
  %s9 = inlined_call_operand.hbm [shape: f32[1,48], index: 9, kind: input, shape index: {}]
  %s10 = inlined_call_operand.vmem [shape: f32[48,24], index: 10, kind: input, shape index: {}]
  %s11 = inlined_call_operand.hbm [shape: f32[1,24], index: 11, kind: input, shape index: {}]
  %s12 = inlined_call_operand.hbm [shape: f32[24,32], index: 12, kind: input, shape index: {}]
  %s13 = inlined_call_operand.hbm [shape: f32[1,32], index: 13, kind: input, shape index: {}]
  %s14 = inlined_call_operand.hbm [shape: f32[4,128], index: 14, kind: input, shape index: {}]
  %s15 = inlined_call_operand.hbm [shape: f32[32,128], index: 15, kind: input, shape index: {}]
  %s16 = inlined_call_operand.hbm [shape: f32[1,128], index: 16, kind: input, shape index: {}]
  %s17 = inlined_call_operand.vmem [shape: f32[32,24], index: 17, kind: input, shape index: {}]
  %s18 = inlined_call_operand.hbm [shape: f32[1,24], index: 18, kind: input, shape index: {}]
  %s19 = inlined_call_operand.hbm [shape: f32[24,48], index: 19, kind: input, shape index: {}]
  %s20 = inlined_call_operand.hbm [shape: f32[1,48], index: 20, kind: input, shape index: {}]
  %s21 = inlined_call_operand.vmem [shape: f32[48,64], index: 21, kind: input, shape index: {}]
  %s22 = inlined_call_operand.hbm [shape: f32[1,64], index: 22, kind: input, shape index: {}]
  %s23 = inlined_call_operand.vmem [shape: f32[2,8,64], index: 23, kind: output, shape index: {}]
  %s24 = sld [smem:[#allocation0]]
  $region162: #{forward.1} parent=0
    _
  %s26 = ssub.s32 1, %s24
  %s27 = scalar_select 0, %s26, %s24
  $region1: #{forward.1} parent=0
    #allocation2 [shape = 'u8[1024]{0}', space=vmem, size = 0x400, scoped, tag = 'input window, operand 3, single buffered']
    #allocation3 [shape = 's32[1]{0}', space=sflag, size = 0x4, scoped, tag = 'scoped memory for forward.1']
    #allocation4 [shape = 'u8[512]{0}', space=vmem, size = 0x400, scoped, tag = 'input window, operand 5, single buffered']
    #allocation5 [shape = 's32[1]{0}', space=sflag, size = 0x4, scoped, tag = 'scoped memory for forward.1']
    #allocation6 [shape = 'u8[65536]{0}', space=vmem, size = 0x10000, scoped, tag = 'input window, operand 6, single buffered']
    #allocation7 [shape = 'u8[512]{0}', space=vmem, size = 0x400, scoped, tag = 'input window, operand 7, single buffered']
    #allocation8 [shape = 's32[1]{0}', space=sflag, size = 0x4, scoped, tag = 'scoped memory for forward.1']
    #allocation9 [shape = 'u8[512]{0}', space=vmem, size = 0x400, scoped, tag = 'input window, operand 9, single buffered']
    #allocation10 [shape = 'u8[512]{0}', space=vmem, size = 0x400, scoped, tag = 'input window, operand 11, single buffered']
    #allocation11 [shape = 's32[1]{0}', space=sflag, size = 0x4, scoped, tag = 'scoped memory for forward.1']
    #allocation12 [shape = 'u8[12288]{0}', space=vmem, size = 0x3000, scoped, tag = 'input window, operand 12, single buffered']
    #allocation13 [shape = 'u8[512]{0}', space=vmem, size = 0x400, scoped, tag = 'input window, operand 13, single buffered']
    #allocation14 [shape = 's32[1]{0}', space=sflag, size = 0x4, scoped, tag = 'scoped memory for forward.1']
    #allocation15 [shape = 'u8[2048]{0}', space=vmem, size = 0x800, scoped, tag = 'input window, operand 14, single buffered']
    #allocation16 [shape = 'u8[16384]{0}', space=vmem, size = 0x4000, scoped, tag = 'input window, operand 15, single buffered']
    #allocation17 [shape = 's32[1]{0}', space=sflag, size = 0x4, scoped, tag = 'scoped memory for forward.1']
    #allocation18 [shape = 'u8[512]{0}', space=vmem, size = 0x400, scoped, tag = 'input window, operand 16, single buffered']
    #allocation19 [shape = 'u8[512]{0}', space=vmem, size = 0x400, scoped, tag = 'input window, operand 18, single buffered']
    #allocation20 [shape = 's32[1]{0}', space=sflag, size = 0x4, scoped, tag = 'scoped memory for forward.1']
    #allocation21 [shape = 'u8[12288]{0}', space=vmem, size = 0x3000, scoped, tag = 'input window, operand 19, single buffered']
    #allocation22 [shape = 'u8[512]{0}', space=vmem, size = 0x400, scoped, tag = 'input window, operand 20, single buffered']
    #allocation23 [shape = 's32[1]{0}', space=sflag, size = 0x4, scoped, tag = 'scoped memory for forward.1']
    #allocation24 [shape = 'u8[512]{0}', space=vmem, size = 0x400, scoped, tag = 'input window, operand 22, single buffered']
    %28 = vsyncpa [#allocation3], 0
    %29 = vsyncpa [#allocation5], 0
    %30 = vsyncpa [#allocation8], 0
    %31 = vsyncpa [#allocation11], 0
    %32 = vsyncpa [#allocation14], 0
    %33 = vsyncpa [#allocation17], 0
    %34 = vsyncpa [#allocation20], 0
    %35 = vsyncpa [#allocation23], 0
    // Predicated region
    $region2: #{forward.1} parent=1 // pred_check
      _
    $region3: #{forward.1} parent=1 // pred_check_branch
      %37 = sbr.rel (0) target = $region5
    $region4: #{forward.1} parent=1 // pred_region
      _
    $region5: #{forward.1} parent=1 // pred_fallthru
      _
    // Predicated region
    $region6: #{forward.1} parent=1 // pred_check
      _
    $region7: #{forward.1} parent=1 // pred_check_branch
      %39 = sbr.rel (0) target = $region9
    $region8: #{forward.1} parent=1 // pred_region
      _
    $region9: #{forward.1} parent=1 // pred_fallthru
      _
    // Predicated region
    $region10: #{forward.1} parent=1 // pred_check
      _
    $region11: #{forward.1} parent=1 // pred_check_branch
      %41 = sbr.rel (0) target = $region13
    $region12: #{forward.1} parent=1 // pred_region
      _
    $region13: #{forward.1} parent=1 // pred_fallthru
      _
    // Predicated region
    $region14: #{forward.1} parent=1 // pred_check
      _
    $region15: #{forward.1} parent=1 // pred_check_branch
      %43 = sbr.rel (0) target = $region17
    $region16: #{forward.1} parent=1 // pred_region
      %s45 = ssub.s32 32, 32
      %46 = vsyncadd [#allocation3], %s45
      %s48 = sshll.u32 [#allocation2], 4
      %s49 = int_to_ptr.vmem [resolvable:$true] %s48
      %51 = dma.hbm_to_vmem [thread:$0]  %s3, 32, %s49, [#allocation3]
    $region17: #{forward.1} parent=1 // pred_fallthru
      _
    // Predicated region
    $region18: #{forward.1} parent=1 // pred_check
      _
    $region19: #{forward.1} parent=1 // pred_check_branch
      %53 = sbr.rel (0) target = $region21
    $region20: #{forward.1} parent=1 // pred_region
      _
    $region21: #{forward.1} parent=1 // pred_fallthru
      _
    // Predicated region
    $region22: #{forward.1} parent=1 // pred_check
      _
    $region23: #{forward.1} parent=1 // pred_check_branch
      %55 = sbr.rel (0) target = $region25
    $region24: #{forward.1} parent=1 // pred_region
      %s57 = ssub.s32 16, 16
      %58 = vsyncadd [#allocation5], %s57
      %s60 = sshll.u32 [#allocation4], 4
      %s61 = int_to_ptr.vmem [resolvable:$true] %s60
      %63 = dma.hbm_to_vmem [thread:$0]  %s5, 16, %s61, [#allocation5]
    $region25: #{forward.1} parent=1 // pred_fallthru
      _
    // Predicated region
    $region26: #{forward.1} parent=1 // pred_check
      _
    $region27: #{forward.1} parent=1 // pred_check_branch
      %65 = sbr.rel (0) target = $region29
    $region28: #{forward.1} parent=1 // pred_region
      %s67 = ssub.s32 2048, 2048
      %68 = vsyncadd [#allocation5], %s67
      %s69 = sshll.u32 [#allocation6], 4
      %s70 = int_to_ptr.vmem [resolvable:$true] %s69
      %75 = dma.hbm_to_vmem [thread:$0]  %s6, 2048, %s70, [#allocation5], 128, 128, 8
    $region29: #{forward.1} parent=1 // pred_fallthru
      _
    // Predicated region
    $region30: #{forward.1} parent=1 // pred_check
      _
    $region31: #{forward.1} parent=1 // pred_check_branch
      %77 = sbr.rel (0) target = $region33
    $region32: #{forward.1} parent=1 // pred_region
      %s79 = ssub.s32 16, 16
      %80 = vsyncadd [#allocation8], %s79
      %s82 = sshll.u32 [#allocation7], 4
      %s83 = int_to_ptr.vmem [resolvable:$true] %s82
      %85 = dma.hbm_to_vmem [thread:$0]  %s7, 16, %s83, [#allocation8]
    $region33: #{forward.1} parent=1 // pred_fallthru
      _
    // Predicated region
    $region34: #{forward.1} parent=1 // pred_check
      _
    $region35: #{forward.1} parent=1 // pred_check_branch
      %87 = sbr.rel (0) target = $region37
    $region36: #{forward.1} parent=1 // pred_region
      _
    $region37: #{forward.1} parent=1 // pred_fallthru
      _
    // Predicated region
    $region38: #{forward.1} parent=1 // pred_check
      _
    $region39: #{forward.1} parent=1 // pred_check_branch
      %89 = sbr.rel (0) target = $region41
    $region40: #{forward.1} parent=1 // pred_region
      %s91 = ssub.s32 16, 16
      %92 = vsyncadd [#allocation8], %s91
      %s94 = sshll.u32 [#allocation9], 4
      %s95 = int_to_ptr.vmem [resolvable:$true] %s94
      %97 = dma.hbm_to_vmem [thread:$0]  %s9, 16, %s95, [#allocation8]
    $region41: #{forward.1} parent=1 // pred_fallthru
      _
    // Predicated region
    $region42: #{forward.1} parent=1 // pred_check
      _
    $region43: #{forward.1} parent=1 // pred_check_branch
      %99 = sbr.rel (0) target = $region45
    $region44: #{forward.1} parent=1 // pred_region
      _
    $region45: #{forward.1} parent=1 // pred_fallthru
      _
    // Predicated region
    $region46: #{forward.1} parent=1 // pred_check
      _
    $region47: #{forward.1} parent=1 // pred_check_branch
      %101 = sbr.rel (0) target = $region49
    $region48: #{forward.1} parent=1 // pred_region
      %s103 = ssub.s32 16, 16
      %104 = vsyncadd [#allocation11], %s103
      %s106 = sshll.u32 [#allocation10], 4
      %s107 = int_to_ptr.vmem [resolvable:$true] %s106
      %109 = dma.hbm_to_vmem [thread:$0]  %s11, 16, %s107, [#allocation11]
    $region49: #{forward.1} parent=1 // pred_fallthru
      _
    // Predicated region
    $region50: #{forward.1} parent=1 // pred_check
      _
    $region51: #{forward.1} parent=1 // pred_check_branch
      %111 = sbr.rel (0) target = $region53
    $region52: #{forward.1} parent=1 // pred_region
      %s113 = ssub.s32 384, 384
      %114 = vsyncadd [#allocation11], %s113
      %s115 = sshll.u32 [#allocation12], 4
      %s116 = int_to_ptr.vmem [resolvable:$true] %s115
      %121 = dma.hbm_to_vmem [thread:$0]  %s12, 384, %s116, [#allocation11], 128, 128, 8
    $region53: #{forward.1} parent=1 // pred_fallthru
      _
    // Predicated region
    $region54: #{forward.1} parent=1 // pred_check
      _
    $region55: #{forward.1} parent=1 // pred_check_branch
      %123 = sbr.rel (0) target = $region57
    $region56: #{forward.1} parent=1 // pred_region
      %s125 = ssub.s32 16, 16
      %126 = vsyncadd [#allocation14], %s125
      %s128 = sshll.u32 [#allocation13], 4
      %s129 = int_to_ptr.vmem [resolvable:$true] %s128
      %131 = dma.hbm_to_vmem [thread:$0]  %s13, 16, %s129, [#allocation14]
    $region57: #{forward.1} parent=1 // pred_fallthru
      _
    // Predicated region
    $region58: #{forward.1} parent=1 // pred_check
      _
    $region59: #{forward.1} parent=1 // pred_check_branch
      %133 = sbr.rel (0) target = $region61
    $region60: #{forward.1} parent=1 // pred_region
      %s135 = ssub.s32 64, 64
      %136 = vsyncadd [#allocation14], %s135
      %s138 = sshll.u32 [#allocation15], 4
      %s139 = int_to_ptr.vmem [resolvable:$true] %s138
      %141 = dma.hbm_to_vmem [thread:$0]  %s14, 64, %s139, [#allocation14]
    $region61: #{forward.1} parent=1 // pred_fallthru
      _
    // Predicated region
    $region62: #{forward.1} parent=1 // pred_check
      _
    $region63: #{forward.1} parent=1 // pred_check_branch
      %143 = sbr.rel (0) target = $region65
    $region64: #{forward.1} parent=1 // pred_region
      %s145 = ssub.s32 512, 512
      %146 = vsyncadd [#allocation17], %s145
      %s147 = sshll.u32 [#allocation16], 4
      %s148 = int_to_ptr.vmem [resolvable:$true] %s147
      %153 = dma.hbm_to_vmem [thread:$0]  %s15, 512, %s148, [#allocation17], 128, 128, 8
    $region65: #{forward.1} parent=1 // pred_fallthru
      _
    // Predicated region
    $region66: #{forward.1} parent=1 // pred_check
      _
    $region67: #{forward.1} parent=1 // pred_check_branch
      %155 = sbr.rel (0) target = $region69
    $region68: #{forward.1} parent=1 // pred_region
      %s157 = ssub.s32 16, 16
      %158 = vsyncadd [#allocation17], %s157
      %s160 = sshll.u32 [#allocation18], 4
      %s161 = int_to_ptr.vmem [resolvable:$true] %s160
      %163 = dma.hbm_to_vmem [thread:$0]  %s16, 16, %s161, [#allocation17]
    $region69: #{forward.1} parent=1 // pred_fallthru
      _
    // Predicated region
    $region70: #{forward.1} parent=1 // pred_check
      _
    $region71: #{forward.1} parent=1 // pred_check_branch
      %165 = sbr.rel (0) target = $region73
    $region72: #{forward.1} parent=1 // pred_region
      _
    $region73: #{forward.1} parent=1 // pred_fallthru
      _
    // Predicated region
    $region74: #{forward.1} parent=1 // pred_check
      _
    $region75: #{forward.1} parent=1 // pred_check_branch
      %167 = sbr.rel (0) target = $region77
    $region76: #{forward.1} parent=1 // pred_region
      %s169 = ssub.s32 16, 16
      %170 = vsyncadd [#allocation20], %s169
      %s172 = sshll.u32 [#allocation19], 4
      %s173 = int_to_ptr.vmem [resolvable:$true] %s172
      %175 = dma.hbm_to_vmem [thread:$0]  %s18, 16, %s173, [#allocation20]
    $region77: #{forward.1} parent=1 // pred_fallthru
      _
    // Predicated region
    $region78: #{forward.1} parent=1 // pred_check
      _
    $region79: #{forward.1} parent=1 // pred_check_branch
      %177 = sbr.rel (0) target = $region81
    $region80: #{forward.1} parent=1 // pred_region
      %s179 = ssub.s32 384, 384
      %180 = vsyncadd [#allocation20], %s179
      %s181 = sshll.u32 [#allocation21], 4
      %s182 = int_to_ptr.vmem [resolvable:$true] %s181
      %187 = dma.hbm_to_vmem [thread:$0]  %s19, 384, %s182, [#allocation20], 128, 128, 8
    $region81: #{forward.1} parent=1 // pred_fallthru
      _
    // Predicated region
    $region82: #{forward.1} parent=1 // pred_check
      _
    $region83: #{forward.1} parent=1 // pred_check_branch
      %189 = sbr.rel (0) target = $region85
    $region84: #{forward.1} parent=1 // pred_region
      %s191 = ssub.s32 16, 16
      %192 = vsyncadd [#allocation23], %s191
      %s194 = sshll.u32 [#allocation22], 4
      %s195 = int_to_ptr.vmem [resolvable:$true] %s194
      %197 = dma.hbm_to_vmem [thread:$0]  %s20, 16, %s195, [#allocation23]
    $region85: #{forward.1} parent=1 // pred_fallthru
      _
    // Predicated region
    $region86: #{forward.1} parent=1 // pred_check
      _
    $region87: #{forward.1} parent=1 // pred_check_branch
      %199 = sbr.rel (0) target = $region89
    $region88: #{forward.1} parent=1 // pred_region
      _
    $region89: #{forward.1} parent=1 // pred_fallthru
      _
    // Predicated region
    $region90: #{forward.1} parent=1 // pred_check
      _
    $region91: #{forward.1} parent=1 // pred_check_branch
      %201 = sbr.rel (0) target = $region93
    $region92: #{forward.1} parent=1 // pred_region
      %s203 = ssub.s32 16, 16
      %204 = vsyncadd [#allocation23], %s203
      %s206 = sshll.u32 [#allocation24], 4
      %s207 = int_to_ptr.vmem [resolvable:$true] %s206
      %209 = dma.hbm_to_vmem [thread:$0]  %s22, 16, %s207, [#allocation23]
    $region93: #{forward.1} parent=1 // pred_fallthru
      _
    // Predicated region
    $region94: #{forward.1} parent=1 // pred_check
      _
    $region95: #{forward.1} parent=1 // pred_check_branch
      %211 = sbr.rel (0) target = $region97
    $region96: #{forward.1} parent=1 // pred_region
      %212 = dma.done [#allocation3], 32
    $region97: #{forward.1} parent=1 // pred_fallthru
      _
    // Predicated region
    $region98: #{forward.1} parent=1 // pred_check
      _
    $region99: #{forward.1} parent=1 // pred_check_branch
      %214 = sbr.rel (0) target = $region101
    $region100: #{forward.1} parent=1 // pred_region
      %215 = dma.done [#allocation5], 16
    $region101: #{forward.1} parent=1 // pred_fallthru
      _
    // Predicated region
    $region102: #{forward.1} parent=1 // pred_check
      _
    $region103: #{forward.1} parent=1 // pred_check_branch
      %217 = sbr.rel (0) target = $region105
    $region104: #{forward.1} parent=1 // pred_region
      %218 = dma.done [#allocation5], 2048
    $region105: #{forward.1} parent=1 // pred_fallthru
      _
    // Predicated region
    $region106: #{forward.1} parent=1 // pred_check
      _
    $region107: #{forward.1} parent=1 // pred_check_branch
      %220 = sbr.rel (0) target = $region109
    $region108: #{forward.1} parent=1 // pred_region
      %221 = dma.done [#allocation8], 16
    $region109: #{forward.1} parent=1 // pred_fallthru
      _
    // Predicated region
    $region110: #{forward.1} parent=1 // pred_check
      _
    $region111: #{forward.1} parent=1 // pred_check_branch
      %223 = sbr.rel (0) target = $region113
    $region112: #{forward.1} parent=1 // pred_region
      %224 = dma.done [#allocation8], 16
    $region113: #{forward.1} parent=1 // pred_fallthru
      _
    // Predicated region
    $region114: #{forward.1} parent=1 // pred_check
      _
    $region115: #{forward.1} parent=1 // pred_check_branch
      %226 = sbr.rel (0) target = $region117
    $region116: #{forward.1} parent=1 // pred_region
      %227 = dma.done [#allocation11], 16
    $region117: #{forward.1} parent=1 // pred_fallthru
      _
    // Predicated region
    $region118: #{forward.1} parent=1 // pred_check
      _
    $region119: #{forward.1} parent=1 // pred_check_branch
      %229 = sbr.rel (0) target = $region121
    $region120: #{forward.1} parent=1 // pred_region
      %230 = dma.done [#allocation11], 384
    $region121: #{forward.1} parent=1 // pred_fallthru
      _
    // Predicated region
    $region122: #{forward.1} parent=1 // pred_check
      _
    $region123: #{forward.1} parent=1 // pred_check_branch
      %232 = sbr.rel (0) target = $region125
    $region124: #{forward.1} parent=1 // pred_region
      %233 = dma.done [#allocation14], 16
    $region125: #{forward.1} parent=1 // pred_fallthru
      _
    // Predicated region
    $region126: #{forward.1} parent=1 // pred_check
      _
    $region127: #{forward.1} parent=1 // pred_check_branch
      %235 = sbr.rel (0) target = $region129
    $region128: #{forward.1} parent=1 // pred_region
      %236 = dma.done [#allocation14], 64
    $region129: #{forward.1} parent=1 // pred_fallthru
      _
    // Predicated region
    $region130: #{forward.1} parent=1 // pred_check
      _
    $region131: #{forward.1} parent=1 // pred_check_branch
      %238 = sbr.rel (0) target = $region133
    $region132: #{forward.1} parent=1 // pred_region
      %239 = dma.done [#allocation17], 512
    $region133: #{forward.1} parent=1 // pred_fallthru
      _
    // Predicated region
    $region134: #{forward.1} parent=1 // pred_check
      _
    $region135: #{forward.1} parent=1 // pred_check_branch
      %241 = sbr.rel (0) target = $region137
    $region136: #{forward.1} parent=1 // pred_region
      %242 = dma.done [#allocation17], 16
    $region137: #{forward.1} parent=1 // pred_fallthru
      _
    // Predicated region
    $region138: #{forward.1} parent=1 // pred_check
      _
    $region139: #{forward.1} parent=1 // pred_check_branch
      %244 = sbr.rel (0) target = $region141
    $region140: #{forward.1} parent=1 // pred_region
      %245 = dma.done [#allocation20], 16
    $region141: #{forward.1} parent=1 // pred_fallthru
      _
    // Predicated region
    $region142: #{forward.1} parent=1 // pred_check
      _
    $region143: #{forward.1} parent=1 // pred_check_branch
      %247 = sbr.rel (0) target = $region145
    $region144: #{forward.1} parent=1 // pred_region
      %248 = dma.done [#allocation20], 384
    $region145: #{forward.1} parent=1 // pred_fallthru
      _
    // Predicated region
    $region146: #{forward.1} parent=1 // pred_check
      _
    $region147: #{forward.1} parent=1 // pred_check_branch
      %250 = sbr.rel (0) target = $region149
    $region148: #{forward.1} parent=1 // pred_region
      %251 = dma.done [#allocation23], 16
    $region149: #{forward.1} parent=1 // pred_fallthru
      _
    // Predicated region
    $region150: #{forward.1} parent=1 // pred_check
      _
    $region151: #{forward.1} parent=1 // pred_check_branch
      %253 = sbr.rel (0) target = $region153
    $region152: #{forward.1} parent=1 // pred_region
      %254 = dma.done [#allocation23], 16
    $region153: #{forward.1} parent=1 // pred_fallthru
      _
    %v255 = vld [vmem:[%s0] sm:$0x3]
    %v256 = vld [vmem:[%s2] sm:$0xff]
    %v257 = vld [vmem:[%s2 + $0x8] sm:$0xff]
    %v258 = vld [vmem:[%s2 + $0x10] sm:$0xff]
    %v259 = vld [vmem:[%s2 + $0x18] sm:$0xff]
    %v260 = vld [vmem:[%s2 + $0x20] sm:$0xff]
    %v261 = vld [vmem:[%s2 + $0x28] sm:$0xff]
    %v262 = vld [vmem:[%s2 + $0x30] sm:$0xff]
    %v263 = vld [vmem:[%s2 + $0x38] sm:$0xff]
    %v264 = vld [vmem:[%s2 + $0x40] sm:$0xff]
    %v265 = vld [vmem:[%s2 + $0x48] sm:$0xff]
    %v266 = vld [vmem:[%s2 + $0x50] sm:$0xff]
    %v267 = vld [vmem:[%s2 + $0x58] sm:$0xff]
    %v268 = vld [vmem:[%s2 + $0x60] sm:$0xff]
    %v269 = vld [vmem:[%s2 + $0x68] sm:$0xff]
    %v270 = vld [vmem:[%s2 + $0x70] sm:$0xff]
    %v271 = vld [vmem:[%s2 + $0x78] sm:$0xff]
    %v272 = vld [vmem:[#allocation2] sm:$0x3]
    %v274 = vlaneseq
    %v275 = vshrl.u32 %v274, 7
    %v276 = vsub.s32 0, %v275
    %v277 = vrot.slane %v272, %v276
    %v278 = vlaneseq
    %v279 = vshrl.u32 %v278, 7
    %v280 = vsub.s32 1, %v279
    %v281 = vrot.slane %v272, %v280
    %vm284 = vcmask 523264
    %v286 = vsel %vm284, %v255, 0
    %288 = vmatprep.subr.mxu0 0.0
    %289 = vmatpush1.msra.mxu0 0.0
    %290 = vmatprep.subr.mxu0 0.0
    %291 = vmatpush1.msra.mxu0 0.0
    %292 = vmatprep.subr.mxu0 0.0
    %293 = vmatpush1.msra.mxu0 0.0
    %294 = vmatprep.subr.mxu0 0.0
    %295 = vmatpush1.msra.mxu0 0.0
    %296 = vmatprep.subr.mxu0 0.0
    %297 = vmatpush1.msra.mxu0 0.0
    %298 = vmatprep.subr.mxu0 0.0
    %299 = vmatpush1.msra.mxu0 0.0
    %300 = vmatprep.subr.mxu0 0.0
    %301 = vmatpush1.msra.mxu0 0.0
    %302 = vmatprep.subr.mxu0 0.0
    %303 = vmatpush1.msra.mxu0 0.0
    %304 = vmatprep.subr.mxu0 %v271
    %305 = vmatpush1.msra.mxu0 %v270
    %306 = vmatprep.subr.mxu0 %v269
    %307 = vmatpush1.msra.mxu0 %v268
    %308 = vmatprep.subr.mxu0 %v267
    %309 = vmatpush1.msra.mxu0 %v266
    %310 = vmatprep.subr.mxu0 %v265
    %311 = vmatpush1.msra.mxu0 %v264
    %312 = vmatprep.subr.mxu0 %v263
    %313 = vmatpush1.msra.mxu0 %v262
    %314 = vmatprep.subr.mxu0 %v261
    %315 = vmatpush1.msra.mxu0 %v260
    %316 = vmatprep.subr.mxu0 %v259
    %317 = vmatpush1.msra.mxu0 %v258
    %318 = vmatprep.subr.mxu0 %v257
    %319 = vmatpush1.msra.mxu0 %v256
    %320 = vmatprep.subr.mxu0 0.0
    %321 = vmatpush2.msra.mxu0 0.0
    %322 = vmatprep.subr.mxu0 0.0
    %323 = vmatpush2.msra.mxu0 0.0
    %324 = vmatprep.subr.mxu0 0.0
    %325 = vmatpush2.msra.mxu0 0.0
    %326 = vmatprep.subr.mxu0 0.0
    %327 = vmatpush2.msra.mxu0 0.0
    %328 = vmatprep.subr.mxu0 0.0
    %329 = vmatpush2.msra.mxu0 0.0
    %330 = vmatprep.subr.mxu0 0.0
    %331 = vmatpush2.msra.mxu0 0.0
    %332 = vmatprep.subr.mxu0 0.0
    %333 = vmatpush2.msra.mxu0 0.0
    %334 = vmatprep.subr.mxu0 0.0
    %335 = vmatpush2.msra.mxu0 0.0
    %336 = vmatprep.subr.mxu0 0.0
    %337 = vmatpush2.msra.mxu0 0.0
    %338 = vmatprep.subr.mxu0 0.0
    %339 = vmatpush2.msra.mxu0 0.0
    %340 = vmatprep.subr.mxu0 0.0
    %341 = vmatpush2.msra.mxu0 0.0
    %342 = vmatprep.subr.mxu0 0.0
    %343 = vmatpush2.msra.mxu0 0.0
    %344 = vmatprep.subr.mxu0 0.0
    %345 = vmatpush2.msra.mxu0 0.0
    %346 = vmatprep.subr.mxu0 0.0
    %347 = vmatpush2.msra.mxu0 0.0
    %348 = vmatprep.subr.mxu0 0.0
    %349 = vmatpush2.msra.mxu0 0.0
    %350 = vmatprep.subr.mxu0 0.0
    %351 = vmatpush2.msra.mxu0 0.0
    %352 = vmatprep.mubr.f32.mxu0 0.0
    %353 = vmatmul.mubr.f32.gmra.mxu0 %v286
    %v354 = vpop.f32.mrf.mxu0
    %v355 = vadd.f32 %v277, %v354
    %v356 = vpop.f32.mrf.mxu0
    %v357 = vadd.f32 %v281, %v356
    %358 = vdwg.mxu0
    %v359 = vmax.f32 %v355, 0.0
    %v360 = vmax.f32 %v357, 0.0
    %v361 = vld [vmem:[%s4] sm:$0xff]
    %v362 = vld [vmem:[%s4 + $0x8] sm:$0xff]
    %v363 = vld [vmem:[%s4 + $0x10] sm:$0xff]
    %v364 = vld [vmem:[%s4 + $0x18] sm:$0xff]
    %v365 = vld [vmem:[%s4 + $0x20] sm:$0xff]
    %v366 = vld [vmem:[%s4 + $0x28] sm:$0xff]
    %v367 = vld [vmem:[%s4 + $0x30] sm:$0xff]
    %v368 = vld [vmem:[%s4 + $0x38] sm:$0xff]
    %v369 = vld [vmem:[%s4 + $0x40] sm:$0xff]
    %v370 = vld [vmem:[%s4 + $0x48] sm:$0xff]
    %v371 = vld [vmem:[%s4 + $0x50] sm:$0xff]
    %v372 = vld [vmem:[%s4 + $0x58] sm:$0xff]
    %v373 = vld [vmem:[%s4 + $0x60] sm:$0xff]
    %v374 = vld [vmem:[%s4 + $0x68] sm:$0xff]
    %v375 = vld [vmem:[%s4 + $0x70] sm:$0xff]
    %v376 = vld [vmem:[%s4 + $0x78] sm:$0xff]
    %v377 = vld [vmem:[%s4 + $0x80] sm:$0xff]
    %v378 = vld [vmem:[%s4 + $0x88] sm:$0xff]
    %v379 = vld [vmem:[%s4 + $0x90] sm:$0xff]
    %v380 = vld [vmem:[%s4 + $0x98] sm:$0xff]
    %v381 = vld [vmem:[#allocation4] sm:$0x1]
    %v383 = vlaneseq
    %v384 = vshrl.u32 %v383, 7
    %v385 = vsub.s32 0, %v384
    %v386 = vrot.slane %v381, %v385
    %vm388 = vcmask 261120
    %v390 = vsel %vm388, %v360, 0
    %392 = vmatprep.subr.mxu0 0.0
    %393 = vmatpush1.msra.mxu0 %v376
    %394 = vmatprep.subr.mxu0 0.0
    %395 = vmatpush1.msra.mxu0 %v375
    %396 = vmatprep.subr.mxu0 0.0
    %397 = vmatpush1.msra.mxu0 %v374
    %398 = vmatprep.subr.mxu0 0.0
    %399 = vmatpush1.msra.mxu0 %v373
    %400 = vmatprep.subr.mxu0 0.0
    %401 = vmatpush1.msra.mxu0 %v372
    %402 = vmatprep.subr.mxu0 0.0
    %403 = vmatpush1.msra.mxu0 %v371
    %404 = vmatprep.subr.mxu0 0.0
    %405 = vmatpush1.msra.mxu0 %v370
    %406 = vmatprep.subr.mxu0 0.0
    %407 = vmatpush1.msra.mxu0 %v369
    %408 = vmatprep.subr.mxu0 0.0
    %409 = vmatpush1.msra.mxu0 %v368
    %410 = vmatprep.subr.mxu0 0.0
    %411 = vmatpush1.msra.mxu0 %v367
    %412 = vmatprep.subr.mxu0 0.0
    %413 = vmatpush1.msra.mxu0 %v366
    %414 = vmatprep.subr.mxu0 0.0
    %415 = vmatpush1.msra.mxu0 %v365
    %416 = vmatprep.subr.mxu0 0.0
    %417 = vmatpush1.msra.mxu0 %v364
    %418 = vmatprep.subr.mxu0 0.0
    %419 = vmatpush1.msra.mxu0 %v363
    %420 = vmatprep.subr.mxu0 0.0
    %421 = vmatpush1.msra.mxu0 %v362
    %422 = vmatprep.subr.mxu0 0.0
    %423 = vmatpush1.msra.mxu0 %v361
    %424 = vmatprep.subr.mxu0 0.0
    %425 = vmatpush2.msra.mxu0 0.0
    %426 = vmatprep.subr.mxu0 0.0
    %427 = vmatpush2.msra.mxu0 0.0
    %428 = vmatprep.subr.mxu0 0.0
    %429 = vmatpush2.msra.mxu0 0.0
    %430 = vmatprep.subr.mxu0 0.0
    %431 = vmatpush2.msra.mxu0 0.0
    %432 = vmatprep.subr.mxu0 0.0
    %433 = vmatpush2.msra.mxu0 0.0
    %434 = vmatprep.subr.mxu0 0.0
    %435 = vmatpush2.msra.mxu0 0.0
    %436 = vmatprep.subr.mxu0 0.0
    %437 = vmatpush2.msra.mxu0 0.0
    %438 = vmatprep.subr.mxu0 0.0
    %439 = vmatpush2.msra.mxu0 0.0
    %440 = vmatprep.subr.mxu0 0.0
    %441 = vmatpush2.msra.mxu0 0.0
    %442 = vmatprep.subr.mxu0 0.0
    %443 = vmatpush2.msra.mxu0 0.0
    %444 = vmatprep.subr.mxu0 0.0
    %445 = vmatpush2.msra.mxu0 0.0
    %446 = vmatprep.subr.mxu0 0.0
    %447 = vmatpush2.msra.mxu0 0.0
    %448 = vmatprep.subr.mxu0 0.0
    %449 = vmatpush2.msra.mxu0 %v380
    %450 = vmatprep.subr.mxu0 0.0
    %451 = vmatpush2.msra.mxu0 %v379
    %452 = vmatprep.subr.mxu0 0.0
    %453 = vmatpush2.msra.mxu0 %v378
    %454 = vmatprep.subr.mxu0 0.0
    %455 = vmatpush2.msra.mxu0 %v377
    %456 = vmatprep.mubr.f32.mxu0 %v390
    %457 = vmatmul.mubr.f32.gmra.mxu0 %v359
    %v458 = vpop.f32.mrf.mxu0
    %v459 = vadd.f32 %v386, %v458
    %v460 = vpop.f32.mrf.mxu0
    %461 = vdwg.mxu0
    %v462 = vmax.f32 %v459, 0.0
    %v463 = vld [vmem:[#allocation6] sm:$0xff]
    %v464 = vld [vmem:[#allocation6 + $0x8] sm:$0xff]
    %v465 = vld [vmem:[#allocation6 + $0x10] sm:$0xff]
    %v466 = vld [vmem:[#allocation6 + $0x18] sm:$0xff]
    %v467 = vld [vmem:[#allocation6 + $0x20] sm:$0xff]
    %v468 = vld [vmem:[#allocation6 + $0x28] sm:$0xff]
    %v469 = vld [vmem:[#allocation6 + $0x30] sm:$0xff]
    %v470 = vld [vmem:[#allocation6 + $0x38] sm:$0xff]
    %v471 = vld [vmem:[#allocation6 + $0x40] sm:$0xff]
    %v472 = vld [vmem:[#allocation6 + $0x48] sm:$0xff]
    %v473 = vld [vmem:[#allocation6 + $0x50] sm:$0xff]
    %v474 = vld [vmem:[#allocation6 + $0x58] sm:$0xff]
    %v475 = vld [vmem:[#allocation6 + $0x60] sm:$0xff]
    %v476 = vld [vmem:[#allocation6 + $0x68] sm:$0xff]
    %v477 = vld [vmem:[#allocation6 + $0x70] sm:$0xff]
    %v478 = vld [vmem:[#allocation6 + $0x78] sm:$0xff]
    %v479 = vld [vmem:[#allocation7] sm:$0x1]
    %v481 = vlaneseq
    %v482 = vshrl.u32 %v481, 7
    %v483 = vsub.s32 0, %v482
    %v484 = vrot.slane %v479, %v483
    %486 = vmatprep.subr.mxu0 0.0
    %487 = vmatpush1.msra.mxu0 %v478
    %488 = vmatprep.subr.mxu0 0.0
    %489 = vmatpush1.msra.mxu0 %v477
    %490 = vmatprep.subr.mxu0 0.0
    %491 = vmatpush1.msra.mxu0 %v476
    %492 = vmatprep.subr.mxu0 0.0
    %493 = vmatpush1.msra.mxu0 %v475
    %494 = vmatprep.subr.mxu0 0.0
    %495 = vmatpush1.msra.mxu0 %v474
    %496 = vmatprep.subr.mxu0 0.0
    %497 = vmatpush1.msra.mxu0 %v473
    %498 = vmatprep.subr.mxu0 0.0
    %499 = vmatpush1.msra.mxu0 %v472
    %500 = vmatprep.subr.mxu0 0.0
    %501 = vmatpush1.msra.mxu0 %v471
    %502 = vmatprep.subr.mxu0 0.0
    %503 = vmatpush1.msra.mxu0 %v470
    %504 = vmatprep.subr.mxu0 0.0
    %505 = vmatpush1.msra.mxu0 %v469
    %506 = vmatprep.subr.mxu0 0.0
    %507 = vmatpush1.msra.mxu0 %v468
    %508 = vmatprep.subr.mxu0 0.0
    %509 = vmatpush1.msra.mxu0 %v467
    %510 = vmatprep.subr.mxu0 0.0
    %511 = vmatpush1.msra.mxu0 %v466
    %512 = vmatprep.subr.mxu0 0.0
    %513 = vmatpush1.msra.mxu0 %v465
    %514 = vmatprep.subr.mxu0 0.0
    %515 = vmatpush1.msra.mxu0 %v464
    %516 = vmatprep.subr.mxu0 0.0
    %517 = vmatpush1.msra.mxu0 %v463
    %518 = vmatprep.subr.mxu0 0.0
    %519 = vmatpush2.msra.mxu0 0.0
    %520 = vmatprep.subr.mxu0 0.0
    %521 = vmatpush2.msra.mxu0 0.0
    %522 = vmatprep.subr.mxu0 0.0
    %523 = vmatpush2.msra.mxu0 0.0
    %524 = vmatprep.subr.mxu0 0.0
    %525 = vmatpush2.msra.mxu0 0.0
    %526 = vmatprep.subr.mxu0 0.0
    %527 = vmatpush2.msra.mxu0 0.0
    %528 = vmatprep.subr.mxu0 0.0
    %529 = vmatpush2.msra.mxu0 0.0
    %530 = vmatprep.subr.mxu0 0.0
    %531 = vmatpush2.msra.mxu0 0.0
    %532 = vmatprep.subr.mxu0 0.0
    %533 = vmatpush2.msra.mxu0 0.0
    %534 = vmatprep.subr.mxu0 0.0
    %535 = vmatpush2.msra.mxu0 0.0
    %536 = vmatprep.subr.mxu0 0.0
    %537 = vmatpush2.msra.mxu0 0.0
    %538 = vmatprep.subr.mxu0 0.0
    %539 = vmatpush2.msra.mxu0 0.0
    %540 = vmatprep.subr.mxu0 0.0
    %541 = vmatpush2.msra.mxu0 0.0
    %542 = vmatprep.subr.mxu0 0.0
    %543 = vmatpush2.msra.mxu0 0.0
    %544 = vmatprep.subr.mxu0 0.0
    %545 = vmatpush2.msra.mxu0 0.0
    %546 = vmatprep.subr.mxu0 0.0
    %547 = vmatpush2.msra.mxu0 0.0
    %548 = vmatprep.subr.mxu0 0.0
    %549 = vmatpush2.msra.mxu0 0.0
    %550 = vmatprep.mubr.f32.mxu0 0.0
    %551 = vmatmul.mubr.f32.gmra.mxu0 %v462
    %v552 = vpop.f32.mrf.mxu0
    %v553 = vadd.f32 %v484, %v552
    %v554 = vpop.f32.mrf.mxu0
    %555 = vdwg.mxu0
    %v556 = vmax.f32 %v553, 0.0
    %v557 = vld [vmem:[%s8] sm:$0xff]
    %v558 = vld [vmem:[%s8 + $0x8] sm:$0xff]
    %v559 = vld [vmem:[%s8 + $0x10] sm:$0xff]
    %v560 = vld [vmem:[%s8 + $0x18] sm:$0xff]
    %v561 = vld [vmem:[%s8 + $0x20] sm:$0xff]
    %v562 = vld [vmem:[%s8 + $0x28] sm:$0xff]
    %v563 = vld [vmem:[%s8 + $0x30] sm:$0xff]
    %v564 = vld [vmem:[%s8 + $0x38] sm:$0xff]
    %v565 = vld [vmem:[%s8 + $0x40] sm:$0xff]
    %v566 = vld [vmem:[%s8 + $0x48] sm:$0xff]
    %v567 = vld [vmem:[%s8 + $0x50] sm:$0xff]
    %v568 = vld [vmem:[%s8 + $0x58] sm:$0xff]
    %v569 = vld [vmem:[%s8 + $0x60] sm:$0xff]
    %v570 = vld [vmem:[%s8 + $0x68] sm:$0xff]
    %v571 = vld [vmem:[%s8 + $0x70] sm:$0xff]
    %v572 = vld [vmem:[%s8 + $0x78] sm:$0xff]
    %v573 = vld [vmem:[#allocation9] sm:$0x1]
    %v575 = vlaneseq
    %v576 = vshrl.u32 %v575, 7
    %v577 = vsub.s32 0, %v576
    %v578 = vrot.slane %v573, %v577
    %580 = vmatprep.subr.mxu0 0.0
    %581 = vmatpush1.msra.mxu0 %v572
    %582 = vmatprep.subr.mxu0 0.0
    %583 = vmatpush1.msra.mxu0 %v571
    %584 = vmatprep.subr.mxu0 0.0
    %585 = vmatpush1.msra.mxu0 %v570
    %586 = vmatprep.subr.mxu0 0.0
    %587 = vmatpush1.msra.mxu0 %v569
    %588 = vmatprep.subr.mxu0 0.0
    %589 = vmatpush1.msra.mxu0 %v568
    %590 = vmatprep.subr.mxu0 0.0
    %591 = vmatpush1.msra.mxu0 %v567
    %592 = vmatprep.subr.mxu0 0.0
    %593 = vmatpush1.msra.mxu0 %v566
    %594 = vmatprep.subr.mxu0 0.0
    %595 = vmatpush1.msra.mxu0 %v565
    %596 = vmatprep.subr.mxu0 0.0
    %597 = vmatpush1.msra.mxu0 %v564
    %598 = vmatprep.subr.mxu0 0.0
    %599 = vmatpush1.msra.mxu0 %v563
    %600 = vmatprep.subr.mxu0 0.0
    %601 = vmatpush1.msra.mxu0 %v562
    %602 = vmatprep.subr.mxu0 0.0
    %603 = vmatpush1.msra.mxu0 %v561
    %604 = vmatprep.subr.mxu0 0.0
    %605 = vmatpush1.msra.mxu0 %v560
    %606 = vmatprep.subr.mxu0 0.0
    %607 = vmatpush1.msra.mxu0 %v559
    %608 = vmatprep.subr.mxu0 0.0
    %609 = vmatpush1.msra.mxu0 %v558
    %610 = vmatprep.subr.mxu0 0.0
    %611 = vmatpush1.msra.mxu0 %v557
    %612 = vmatprep.subr.mxu0 0.0
    %613 = vmatpush2.msra.mxu0 0.0
    %614 = vmatprep.subr.mxu0 0.0
    %615 = vmatpush2.msra.mxu0 0.0
    %616 = vmatprep.subr.mxu0 0.0
    %617 = vmatpush2.msra.mxu0 0.0
    %618 = vmatprep.subr.mxu0 0.0
    %619 = vmatpush2.msra.mxu0 0.0
    %620 = vmatprep.subr.mxu0 0.0
    %621 = vmatpush2.msra.mxu0 0.0
    %622 = vmatprep.subr.mxu0 0.0
    %623 = vmatpush2.msra.mxu0 0.0
    %624 = vmatprep.subr.mxu0 0.0
    %625 = vmatpush2.msra.mxu0 0.0
    %626 = vmatprep.subr.mxu0 0.0
    %627 = vmatpush2.msra.mxu0 0.0
    %628 = vmatprep.subr.mxu0 0.0
    %629 = vmatpush2.msra.mxu0 0.0
    %630 = vmatprep.subr.mxu0 0.0
    %631 = vmatpush2.msra.mxu0 0.0
    %632 = vmatprep.subr.mxu0 0.0
    %633 = vmatpush2.msra.mxu0 0.0
    %634 = vmatprep.subr.mxu0 0.0
    %635 = vmatpush2.msra.mxu0 0.0
    %636 = vmatprep.subr.mxu0 0.0
    %637 = vmatpush2.msra.mxu0 0.0
    %638 = vmatprep.subr.mxu0 0.0
    %639 = vmatpush2.msra.mxu0 0.0
    %640 = vmatprep.subr.mxu0 0.0
    %641 = vmatpush2.msra.mxu0 0.0
    %642 = vmatprep.subr.mxu0 0.0
    %643 = vmatpush2.msra.mxu0 0.0
    %644 = vmatprep.mubr.f32.mxu0 0.0
    %645 = vmatmul.mubr.f32.gmra.mxu0 %v556
    %v646 = vpop.f32.mrf.mxu0
    %v647 = vadd.f32 %v578, %v646
    %v648 = vpop.f32.mrf.mxu0
    %649 = vdwg.mxu0
    %v650 = vld [vmem:[%s10] sm:$0xff]
    %v651 = vld [vmem:[%s10 + $0x8] sm:$0xff]
    %v652 = vld [vmem:[%s10 + $0x10] sm:$0xff]
    %v653 = vld [vmem:[%s10 + $0x18] sm:$0xff]
    %v654 = vld [vmem:[%s10 + $0x20] sm:$0xff]
    %v655 = vld [vmem:[%s10 + $0x28] sm:$0xff]
    %v656 = vld [vmem:[#allocation10] sm:$0x1]
    %v658 = vlaneseq
    %v659 = vshrl.u32 %v658, 7
    %v660 = vsub.s32 0, %v659
    %v661 = vrot.slane %v656, %v660
    %vm663 = vcmask 392192
    %v665 = vsel %vm663, %v647, 0
    %667 = vmatprep.subr.mxu0 0.0
    %668 = vmatpush1.msra.mxu0 0.0
    %669 = vmatprep.subr.mxu0 0.0
    %670 = vmatpush1.msra.mxu0 0.0
    %671 = vmatprep.subr.mxu0 0.0
    %672 = vmatpush1.msra.mxu0 0.0
    %673 = vmatprep.subr.mxu0 0.0
    %674 = vmatpush1.msra.mxu0 0.0
    %675 = vmatprep.subr.mxu0 0.0
    %676 = vmatpush1.msra.mxu0 0.0
    %677 = vmatprep.subr.mxu0 0.0
    %678 = vmatpush1.msra.mxu0 0.0
    %679 = vmatprep.subr.mxu0 0.0
    %680 = vmatpush1.msra.mxu0 0.0
    %681 = vmatprep.subr.mxu0 0.0
    %682 = vmatpush1.msra.mxu0 0.0
    %683 = vmatprep.subr.mxu0 0.0
    %684 = vmatpush1.msra.mxu0 0.0
    %685 = vmatprep.subr.mxu0 0.0
    %686 = vmatpush1.msra.mxu0 0.0
    %687 = vmatprep.subr.mxu0 0.0
    %688 = vmatpush1.msra.mxu0 %v655
    %689 = vmatprep.subr.mxu0 0.0
    %690 = vmatpush1.msra.mxu0 %v654
    %691 = vmatprep.subr.mxu0 0.0
    %692 = vmatpush1.msra.mxu0 %v653
    %693 = vmatprep.subr.mxu0 0.0
    %694 = vmatpush1.msra.mxu0 %v652
    %695 = vmatprep.subr.mxu0 0.0
    %696 = vmatpush1.msra.mxu0 %v651
    %697 = vmatprep.subr.mxu0 0.0
    %698 = vmatpush1.msra.mxu0 %v650
    %699 = vmatprep.subr.mxu0 0.0
    %700 = vmatpush2.msra.mxu0 0.0
    %701 = vmatprep.subr.mxu0 0.0
    %702 = vmatpush2.msra.mxu0 0.0
    %703 = vmatprep.subr.mxu0 0.0
    %704 = vmatpush2.msra.mxu0 0.0
    %705 = vmatprep.subr.mxu0 0.0
    %706 = vmatpush2.msra.mxu0 0.0
    %707 = vmatprep.subr.mxu0 0.0
    %708 = vmatpush2.msra.mxu0 0.0
    %709 = vmatprep.subr.mxu0 0.0
    %710 = vmatpush2.msra.mxu0 0.0
    %711 = vmatprep.subr.mxu0 0.0
    %712 = vmatpush2.msra.mxu0 0.0
    %713 = vmatprep.subr.mxu0 0.0
    %714 = vmatpush2.msra.mxu0 0.0
    %715 = vmatprep.subr.mxu0 0.0
    %716 = vmatpush2.msra.mxu0 0.0
    %717 = vmatprep.subr.mxu0 0.0
    %718 = vmatpush2.msra.mxu0 0.0
    %719 = vmatprep.subr.mxu0 0.0
    %720 = vmatpush2.msra.mxu0 0.0
    %721 = vmatprep.subr.mxu0 0.0
    %722 = vmatpush2.msra.mxu0 0.0
    %723 = vmatprep.subr.mxu0 0.0
    %724 = vmatpush2.msra.mxu0 0.0
    %725 = vmatprep.subr.mxu0 0.0
    %726 = vmatpush2.msra.mxu0 0.0
    %727 = vmatprep.subr.mxu0 0.0
    %728 = vmatpush2.msra.mxu0 0.0
    %729 = vmatprep.subr.mxu0 0.0
    %730 = vmatpush2.msra.mxu0 0.0
    %731 = vmatprep.mubr.f32.mxu0 0.0
    %732 = vmatmul.mubr.f32.gmra.mxu0 %v665
    %v733 = vpop.f32.mrf.mxu0
    %v734 = vadd.f32 %v661, %v733
    %v735 = vpop.f32.mrf.mxu0
    %736 = vdwg.mxu0
    %v737 = vmax.f32 %v734, 0.0
    %v738 = vld [vmem:[#allocation12] sm:$0xff]
    %v739 = vld [vmem:[#allocation12 + $0x8] sm:$0xff]
    %v740 = vld [vmem:[#allocation12 + $0x10] sm:$0xff]
    %v741 = vld [vmem:[#allocation13] sm:$0x1]
    %v743 = vlaneseq
    %v744 = vshrl.u32 %v743, 7
    %v745 = vsub.s32 0, %v744
    %v746 = vrot.slane %v741, %v745
    %vm748 = vcmask 195584
    %v750 = vsel %vm748, %v737, 0
    %752 = vmatprep.subr.mxu0 0.0
    %753 = vmatpush1.msra.mxu0 0.0
    %754 = vmatprep.subr.mxu0 0.0
    %755 = vmatpush1.msra.mxu0 0.0
    %756 = vmatprep.subr.mxu0 0.0
    %757 = vmatpush1.msra.mxu0 0.0
    %758 = vmatprep.subr.mxu0 0.0
    %759 = vmatpush1.msra.mxu0 0.0
    %760 = vmatprep.subr.mxu0 0.0
    %761 = vmatpush1.msra.mxu0 0.0
    %762 = vmatprep.subr.mxu0 0.0
    %763 = vmatpush1.msra.mxu0 0.0
    %764 = vmatprep.subr.mxu0 0.0
    %765 = vmatpush1.msra.mxu0 0.0
    %766 = vmatprep.subr.mxu0 0.0
    %767 = vmatpush1.msra.mxu0 0.0
    %768 = vmatprep.subr.mxu0 0.0
    %769 = vmatpush1.msra.mxu0 0.0
    %770 = vmatprep.subr.mxu0 0.0
    %771 = vmatpush1.msra.mxu0 0.0
    %772 = vmatprep.subr.mxu0 0.0
    %773 = vmatpush1.msra.mxu0 0.0
    %774 = vmatprep.subr.mxu0 0.0
    %775 = vmatpush1.msra.mxu0 0.0
    %776 = vmatprep.subr.mxu0 0.0
    %777 = vmatpush1.msra.mxu0 0.0
    %778 = vmatprep.subr.mxu0 0.0
    %779 = vmatpush1.msra.mxu0 %v740
    %780 = vmatprep.subr.mxu0 0.0
    %781 = vmatpush1.msra.mxu0 %v739
    %782 = vmatprep.subr.mxu0 0.0
    %783 = vmatpush1.msra.mxu0 %v738
    %784 = vmatprep.subr.mxu0 0.0
    %785 = vmatpush2.msra.mxu0 0.0
    %786 = vmatprep.subr.mxu0 0.0
    %787 = vmatpush2.msra.mxu0 0.0
    %788 = vmatprep.subr.mxu0 0.0
    %789 = vmatpush2.msra.mxu0 0.0
    %790 = vmatprep.subr.mxu0 0.0
    %791 = vmatpush2.msra.mxu0 0.0
    %792 = vmatprep.subr.mxu0 0.0
    %793 = vmatpush2.msra.mxu0 0.0
    %794 = vmatprep.subr.mxu0 0.0
    %795 = vmatpush2.msra.mxu0 0.0
    %796 = vmatprep.subr.mxu0 0.0
    %797 = vmatpush2.msra.mxu0 0.0
    %798 = vmatprep.subr.mxu0 0.0
    %799 = vmatpush2.msra.mxu0 0.0
    %800 = vmatprep.subr.mxu0 0.0
    %801 = vmatpush2.msra.mxu0 0.0
    %802 = vmatprep.subr.mxu0 0.0
    %803 = vmatpush2.msra.mxu0 0.0
    %804 = vmatprep.subr.mxu0 0.0
    %805 = vmatpush2.msra.mxu0 0.0
    %806 = vmatprep.subr.mxu0 0.0
    %807 = vmatpush2.msra.mxu0 0.0
    %808 = vmatprep.subr.mxu0 0.0
    %809 = vmatpush2.msra.mxu0 0.0
    %810 = vmatprep.subr.mxu0 0.0
    %811 = vmatpush2.msra.mxu0 0.0
    %812 = vmatprep.subr.mxu0 0.0
    %813 = vmatpush2.msra.mxu0 0.0
    %814 = vmatprep.subr.mxu0 0.0
    %815 = vmatpush2.msra.mxu0 0.0
    %816 = vmatprep.mubr.f32.mxu0 0.0
    %817 = vmatmul.mubr.f32.gmra.mxu0 %v750
    %v818 = vpop.f32.mrf.mxu0
    %v819 = vadd.f32 %v746, %v818
    %v820 = vpop.f32.mrf.mxu0
    %821 = vdwg.mxu0
    %v822 = vld [vmem:[%s1] sm:$0x3]
    %v823 = vld [vmem:[#allocation15] sm:$0xf]
    %v824 = vld [vmem:[#allocation18] sm:$0x1]
    %v826 = vlaneseq
    %v827 = vshrl.u32 %v826, 7
    %v828 = vsub.s32 0, %v827
    %v829 = vrot.slane %v824, %v828
    %vm831 = vcmask 31744
    %v833 = vsel %vm831, %v822, 0
    %vm835 = vcmask 1043456
    %v837 = vsel %vm835, %v823, 0
    %839 = vmatprep.subr.mxu0 0.0
    %840 = vmatpush1.msra.mxu0 0.0
    %841 = vmatprep.subr.mxu0 0.0
    %842 = vmatpush1.msra.mxu0 0.0
    %843 = vmatprep.subr.mxu0 0.0
    %844 = vmatpush1.msra.mxu0 0.0
    %845 = vmatprep.subr.mxu0 0.0
    %846 = vmatpush1.msra.mxu0 0.0
    %847 = vmatprep.subr.mxu0 0.0
    %848 = vmatpush1.msra.mxu0 0.0
    %849 = vmatprep.subr.mxu0 0.0
    %850 = vmatpush1.msra.mxu0 0.0
    %851 = vmatprep.subr.mxu0 0.0
    %852 = vmatpush1.msra.mxu0 0.0
    %853 = vmatprep.subr.mxu0 0.0
    %854 = vmatpush1.msra.mxu0 0.0
    %855 = vmatprep.subr.mxu0 0.0
    %856 = vmatpush1.msra.mxu0 0.0
    %857 = vmatprep.subr.mxu0 0.0
    %858 = vmatpush1.msra.mxu0 0.0
    %859 = vmatprep.subr.mxu0 0.0
    %860 = vmatpush1.msra.mxu0 0.0
    %861 = vmatprep.subr.mxu0 0.0
    %862 = vmatpush1.msra.mxu0 0.0
    %863 = vmatprep.subr.mxu0 0.0
    %864 = vmatpush1.msra.mxu0 0.0
    %865 = vmatprep.subr.mxu0 0.0
    %866 = vmatpush1.msra.mxu0 0.0
    %867 = vmatprep.subr.mxu0 0.0
    %868 = vmatpush1.msra.mxu0 0.0
    %869 = vmatprep.subr.mxu0 0.0
    %870 = vmatpush1.msra.mxu0 %v837
    %871 = vmatprep.subr.mxu0 0.0
    %872 = vmatpush2.msra.mxu0 0.0
    %873 = vmatprep.subr.mxu0 0.0
    %874 = vmatpush2.msra.mxu0 0.0
    %875 = vmatprep.subr.mxu0 0.0
    %876 = vmatpush2.msra.mxu0 0.0
    %877 = vmatprep.subr.mxu0 0.0
    %878 = vmatpush2.msra.mxu0 0.0
    %879 = vmatprep.subr.mxu0 0.0
    %880 = vmatpush2.msra.mxu0 0.0
    %881 = vmatprep.subr.mxu0 0.0
    %882 = vmatpush2.msra.mxu0 0.0
    %883 = vmatprep.subr.mxu0 0.0
    %884 = vmatpush2.msra.mxu0 0.0
    %885 = vmatprep.subr.mxu0 0.0
    %886 = vmatpush2.msra.mxu0 0.0
    %887 = vmatprep.subr.mxu0 0.0
    %888 = vmatpush2.msra.mxu0 0.0
    %889 = vmatprep.subr.mxu0 0.0
    %890 = vmatpush2.msra.mxu0 0.0
    %891 = vmatprep.subr.mxu0 0.0
    %892 = vmatpush2.msra.mxu0 0.0
    %893 = vmatprep.subr.mxu0 0.0
    %894 = vmatpush2.msra.mxu0 0.0
    %895 = vmatprep.subr.mxu0 0.0
    %896 = vmatpush2.msra.mxu0 0.0
    %897 = vmatprep.subr.mxu0 0.0
    %898 = vmatpush2.msra.mxu0 0.0
    %899 = vmatprep.subr.mxu0 0.0
    %900 = vmatpush2.msra.mxu0 0.0
    %901 = vmatprep.subr.mxu0 0.0
    %902 = vmatpush2.msra.mxu0 0.0
    %903 = vmatprep.mubr.f32.mxu0 0.0
    %904 = vmatmul.mubr.f32.gmra.mxu0 %v833
    %v905 = vpop.f32.mrf.mxu0
    %v906 = vadd.f32 %v829, %v905
    %v907 = vpop.f32.mrf.mxu0
    %908 = vdwg.mxu0
    %v909 = vld [vmem:[#allocation16] sm:$0xff]
    %v910 = vld [vmem:[#allocation16 + $0x8] sm:$0xff]
    %v911 = vld [vmem:[#allocation16 + $0x10] sm:$0xff]
    %v912 = vld [vmem:[#allocation16 + $0x18] sm:$0xff]
    %v913 = vlaneseq
    %v914 = vand.u32 %v913, 127
    %vm915 = vcmp.ge.s32.totalorder %v914, 64
    %vm916 = vcmp.lt.s32.totalorder %v914, 96
    %vm917 = vmand %vm915, %vm916
    %v919 = vsel %vm388, %v819, 0
    %921 = vmatprep.subr.mxu0 0.0
    %922 = vmatpush1.msra.mxu0 0.0
    %923 = vmatprep.subr.mxu0 0.0
    %924 = vmatpush1.msra.mxu0 0.0
    %925 = vmatprep.subr.mxu0 0.0
    %926 = vmatpush1.msra.mxu0 0.0
    %927 = vmatprep.subr.mxu0 0.0
    %928 = vmatpush1.msra.mxu0 0.0
    %929 = vmatprep.subr.mxu0 0.0
    %930 = vmatpush1.msra.mxu0 0.0
    %931 = vmatprep.subr.mxu0 0.0
    %932 = vmatpush1.msra.mxu0 0.0
    %933 = vmatprep.subr.mxu0 0.0
    %934 = vmatpush1.msra.mxu0 0.0
    %935 = vmatprep.subr.mxu0 0.0
    %936 = vmatpush1.msra.mxu0 0.0
    %937 = vmatprep.subr.mxu0 0.0
    %938 = vmatpush1.msra.mxu0 0.0
    %939 = vmatprep.subr.mxu0 0.0
    %940 = vmatpush1.msra.mxu0 0.0
    %941 = vmatprep.subr.mxu0 0.0
    %942 = vmatpush1.msra.mxu0 0.0
    %943 = vmatprep.subr.mxu0 0.0
    %944 = vmatpush1.msra.mxu0 0.0
    %945 = vmatprep.subr.mxu0 0.0
    %946 = vmatpush1.msra.mxu0 %v912
    %947 = vmatprep.subr.mxu0 0.0
    %948 = vmatpush1.msra.mxu0 %v911
    %949 = vmatprep.subr.mxu0 0.0
    %950 = vmatpush1.msra.mxu0 %v910
    %951 = vmatprep.subr.mxu0 0.0
    %952 = vmatpush1.msra.mxu0 %v909
    %953 = vmatprep.subr.mxu0 0.0
    %954 = vmatpush2.msra.mxu0 0.0
    %955 = vmatprep.subr.mxu0 0.0
    %956 = vmatpush2.msra.mxu0 0.0
    %957 = vmatprep.subr.mxu0 0.0
    %958 = vmatpush2.msra.mxu0 0.0
    %959 = vmatprep.subr.mxu0 0.0
    %960 = vmatpush2.msra.mxu0 0.0
    %961 = vmatprep.subr.mxu0 0.0
    %962 = vmatpush2.msra.mxu0 0.0
    %963 = vmatprep.subr.mxu0 0.0
    %964 = vmatpush2.msra.mxu0 0.0
    %965 = vmatprep.subr.mxu0 0.0
    %966 = vmatpush2.msra.mxu0 0.0
    %967 = vmatprep.subr.mxu0 0.0
    %968 = vmatpush2.msra.mxu0 0.0
    %969 = vmatprep.subr.mxu0 0.0
    %970 = vmatpush2.msra.mxu0 0.0
    %971 = vmatprep.subr.mxu0 0.0
    %972 = vmatpush2.msra.mxu0 0.0
    %973 = vmatprep.subr.mxu0 0.0
    %974 = vmatpush2.msra.mxu0 0.0
    %975 = vmatprep.subr.mxu0 0.0
    %976 = vmatpush2.msra.mxu0 0.0
    %977 = vmatprep.subr.mxu0 0.0
    %978 = vmatpush2.msra.mxu0 0.0
    %979 = vmatprep.subr.mxu0 0.0
    %980 = vmatpush2.msra.mxu0 0.0
    %981 = vmatprep.subr.mxu0 0.0
    %982 = vmatpush2.msra.mxu0 0.0
    %983 = vmatprep.subr.mxu0 0.0
    %984 = vmatpush2.msra.mxu0 0.0
    %985 = vmatprep.mubr.f32.mxu0 0.0
    %986 = vmatmul.mubr.f32.gmra.mxu0 %v919
    %v987 = vpop.f32.mrf.mxu0
    %v988 = vadd.f32 0.0, %v987
    %v989 = vpop.f32.mrf.mxu0
    %990 = vdwg.mxu0
    %v991 = vadd.f32 %v906, %v988
    %v992 = vmul.f32 %v991, 0.5
    %v993 = vsel %vm917, %v991, %v992
    %v994 = vtanh.pop %v993
    %v995 = vmul.f32 %v994, 0.5
    %v996 = vadd.f32 %v995, 0.5
    %v997 = vsel %vm917, %v994, %v996
    %998 = vrot.lane.b32.xlu0 %v819, 32
    %v999 = vpop.permute.xlu0 %998
    %v1001 = vmul.f32 %v997, %v999
    %1003 = vrot.lane.b32.xlu0 %v997, 64
    %v1004 = vpop.permute.xlu0 %1003
    %v1006 = vmul.f32 %v997, %v1004
    %1008 = vrot.lane.b32.xlu0 %v1006, 32
    %v1009 = vpop.permute.xlu0 %1008
    %v1011 = vadd.f32 %v1001, %v1009
    %v1012 = vtanh.pop %v1011
    %1014 = vrot.lane.b32.xlu0 %v1012, 64
    %v1015 = vpop.permute.xlu0 %1014
    %v1017 = vmul.f32 %v997, %v1015
    %v1018 = vld [vmem:[%s17] sm:$0xff]
    %v1019 = vld [vmem:[%s17 + $0x8] sm:$0xff]
    %v1020 = vld [vmem:[%s17 + $0x10] sm:$0xff]
    %v1021 = vld [vmem:[%s17 + $0x18] sm:$0xff]
    %v1022 = vld [vmem:[#allocation19] sm:$0x1]
    %v1024 = vlaneseq
    %v1025 = vshrl.u32 %v1024, 7
    %v1026 = vsub.s32 0, %v1025
    %v1027 = vrot.slane %v1022, %v1026
    %1030 = vrot.lane.b32.xlu0 %v1017, 32
    %v1031 = vpop.permute.xlu0 %1030
    %v1032 = vsel %vm388, %v1031, 0
    %1034 = vmatprep.subr.mxu0 0.0
    %1035 = vmatpush1.msra.mxu0 0.0
    %1036 = vmatprep.subr.mxu0 0.0
    %1037 = vmatpush1.msra.mxu0 0.0
    %1038 = vmatprep.subr.mxu0 0.0
    %1039 = vmatpush1.msra.mxu0 0.0
    %1040 = vmatprep.subr.mxu0 0.0
    %1041 = vmatpush1.msra.mxu0 0.0
    %1042 = vmatprep.subr.mxu0 0.0
    %1043 = vmatpush1.msra.mxu0 0.0
    %1044 = vmatprep.subr.mxu0 0.0
    %1045 = vmatpush1.msra.mxu0 0.0
    %1046 = vmatprep.subr.mxu0 0.0
    %1047 = vmatpush1.msra.mxu0 0.0
    %1048 = vmatprep.subr.mxu0 0.0
    %1049 = vmatpush1.msra.mxu0 0.0
    %1050 = vmatprep.subr.mxu0 0.0
    %1051 = vmatpush1.msra.mxu0 0.0
    %1052 = vmatprep.subr.mxu0 0.0
    %1053 = vmatpush1.msra.mxu0 0.0
    %1054 = vmatprep.subr.mxu0 0.0
    %1055 = vmatpush1.msra.mxu0 0.0
    %1056 = vmatprep.subr.mxu0 0.0
    %1057 = vmatpush1.msra.mxu0 0.0
    %1058 = vmatprep.subr.mxu0 0.0
    %1059 = vmatpush1.msra.mxu0 %v1021
    %1060 = vmatprep.subr.mxu0 0.0
    %1061 = vmatpush1.msra.mxu0 %v1020
    %1062 = vmatprep.subr.mxu0 0.0
    %1063 = vmatpush1.msra.mxu0 %v1019
    %1064 = vmatprep.subr.mxu0 0.0
    %1065 = vmatpush1.msra.mxu0 %v1018
    %1066 = vmatprep.subr.mxu0 0.0
    %1067 = vmatpush2.msra.mxu0 0.0
    %1068 = vmatprep.subr.mxu0 0.0
    %1069 = vmatpush2.msra.mxu0 0.0
    %1070 = vmatprep.subr.mxu0 0.0
    %1071 = vmatpush2.msra.mxu0 0.0
    %1072 = vmatprep.subr.mxu0 0.0
    %1073 = vmatpush2.msra.mxu0 0.0
    %1074 = vmatprep.subr.mxu0 0.0
    %1075 = vmatpush2.msra.mxu0 0.0
    %1076 = vmatprep.subr.mxu0 0.0
    %1077 = vmatpush2.msra.mxu0 0.0
    %1078 = vmatprep.subr.mxu0 0.0
    %1079 = vmatpush2.msra.mxu0 0.0
    %1080 = vmatprep.subr.mxu0 0.0
    %1081 = vmatpush2.msra.mxu0 0.0
    %1082 = vmatprep.subr.mxu0 0.0
    %1083 = vmatpush2.msra.mxu0 0.0
    %1084 = vmatprep.subr.mxu0 0.0
    %1085 = vmatpush2.msra.mxu0 0.0
    %1086 = vmatprep.subr.mxu0 0.0
    %1087 = vmatpush2.msra.mxu0 0.0
    %1088 = vmatprep.subr.mxu0 0.0
    %1089 = vmatpush2.msra.mxu0 0.0
    %1090 = vmatprep.subr.mxu0 0.0
    %1091 = vmatpush2.msra.mxu0 0.0
    %1092 = vmatprep.subr.mxu0 0.0
    %1093 = vmatpush2.msra.mxu0 0.0
    %1094 = vmatprep.subr.mxu0 0.0
    %1095 = vmatpush2.msra.mxu0 0.0
    %1096 = vmatprep.subr.mxu0 0.0
    %1097 = vmatpush2.msra.mxu0 0.0
    %1098 = vmatprep.mubr.f32.mxu0 0.0
    %1099 = vmatmul.mubr.f32.gmra.mxu0 %v1032
    %v1100 = vpop.f32.mrf.mxu0
    %v1101 = vadd.f32 %v1027, %v1100
    %v1102 = vpop.f32.mrf.mxu0
    %1103 = vdwg.mxu0
    %v1104 = vmax.f32 %v1101, 0.0
    %v1105 = vld [vmem:[#allocation21] sm:$0xff]
    %v1106 = vld [vmem:[#allocation21 + $0x8] sm:$0xff]
    %v1107 = vld [vmem:[#allocation21 + $0x10] sm:$0xff]
    %v1108 = vld [vmem:[#allocation22] sm:$0x1]
    %v1110 = vlaneseq
    %v1111 = vshrl.u32 %v1110, 7
    %v1112 = vsub.s32 0, %v1111
    %v1113 = vrot.slane %v1108, %v1112
    %v1116 = vsel %vm748, %v1104, 0
    %1118 = vmatprep.subr.mxu0 0.0
    %1119 = vmatpush1.msra.mxu0 0.0
    %1120 = vmatprep.subr.mxu0 0.0
    %1121 = vmatpush1.msra.mxu0 0.0
    %1122 = vmatprep.subr.mxu0 0.0
    %1123 = vmatpush1.msra.mxu0 0.0
    %1124 = vmatprep.subr.mxu0 0.0
    %1125 = vmatpush1.msra.mxu0 0.0
    %1126 = vmatprep.subr.mxu0 0.0
    %1127 = vmatpush1.msra.mxu0 0.0
    %1128 = vmatprep.subr.mxu0 0.0
    %1129 = vmatpush1.msra.mxu0 0.0
    %1130 = vmatprep.subr.mxu0 0.0
    %1131 = vmatpush1.msra.mxu0 0.0
    %1132 = vmatprep.subr.mxu0 0.0
    %1133 = vmatpush1.msra.mxu0 0.0
    %1134 = vmatprep.subr.mxu0 0.0
    %1135 = vmatpush1.msra.mxu0 0.0
    %1136 = vmatprep.subr.mxu0 0.0
    %1137 = vmatpush1.msra.mxu0 0.0
    %1138 = vmatprep.subr.mxu0 0.0
    %1139 = vmatpush1.msra.mxu0 0.0
    %1140 = vmatprep.subr.mxu0 0.0
    %1141 = vmatpush1.msra.mxu0 0.0
    %1142 = vmatprep.subr.mxu0 0.0
    %1143 = vmatpush1.msra.mxu0 0.0
    %1144 = vmatprep.subr.mxu0 0.0
    %1145 = vmatpush1.msra.mxu0 %v1107
    %1146 = vmatprep.subr.mxu0 0.0
    %1147 = vmatpush1.msra.mxu0 %v1106
    %1148 = vmatprep.subr.mxu0 0.0
    %1149 = vmatpush1.msra.mxu0 %v1105
    %1150 = vmatprep.subr.mxu0 0.0
    %1151 = vmatpush2.msra.mxu0 0.0
    %1152 = vmatprep.subr.mxu0 0.0
    %1153 = vmatpush2.msra.mxu0 0.0
    %1154 = vmatprep.subr.mxu0 0.0
    %1155 = vmatpush2.msra.mxu0 0.0
    %1156 = vmatprep.subr.mxu0 0.0
    %1157 = vmatpush2.msra.mxu0 0.0
    %1158 = vmatprep.subr.mxu0 0.0
    %1159 = vmatpush2.msra.mxu0 0.0
    %1160 = vmatprep.subr.mxu0 0.0
    %1161 = vmatpush2.msra.mxu0 0.0
    %1162 = vmatprep.subr.mxu0 0.0
    %1163 = vmatpush2.msra.mxu0 0.0
    %1164 = vmatprep.subr.mxu0 0.0
    %1165 = vmatpush2.msra.mxu0 0.0
    %1166 = vmatprep.subr.mxu0 0.0
    %1167 = vmatpush2.msra.mxu0 0.0
    %1168 = vmatprep.subr.mxu0 0.0
    %1169 = vmatpush2.msra.mxu0 0.0
    %1170 = vmatprep.subr.mxu0 0.0
    %1171 = vmatpush2.msra.mxu0 0.0
    %1172 = vmatprep.subr.mxu0 0.0
    %1173 = vmatpush2.msra.mxu0 0.0
    %1174 = vmatprep.subr.mxu0 0.0
    %1175 = vmatpush2.msra.mxu0 0.0
    %1176 = vmatprep.subr.mxu0 0.0
    %1177 = vmatpush2.msra.mxu0 0.0
    %1178 = vmatprep.subr.mxu0 0.0
    %1179 = vmatpush2.msra.mxu0 0.0
    %1180 = vmatprep.subr.mxu0 0.0
    %1181 = vmatpush2.msra.mxu0 0.0
    %1182 = vmatprep.mubr.f32.mxu0 0.0
    %1183 = vmatmul.mubr.f32.gmra.mxu0 %v1116
    %v1184 = vpop.f32.mrf.mxu0
    %v1185 = vadd.f32 %v1113, %v1184
    %v1186 = vpop.f32.mrf.mxu0
    %1187 = vdwg.mxu0
    %v1188 = vmax.f32 %v1185, 0.0
    %v1189 = vld [vmem:[%s21] sm:$0xff]
    %v1190 = vld [vmem:[%s21 + $0x8] sm:$0xff]
    %v1191 = vld [vmem:[%s21 + $0x10] sm:$0xff]
    %v1192 = vld [vmem:[%s21 + $0x18] sm:$0xff]
    %v1193 = vld [vmem:[%s21 + $0x20] sm:$0xff]
    %v1194 = vld [vmem:[%s21 + $0x28] sm:$0xff]
    %v1195 = vld [vmem:[#allocation24] sm:$0x1]
    %v1197 = vlaneseq
    %v1198 = vshrl.u32 %v1197, 7
    %v1199 = vsub.s32 0, %v1198
    %v1200 = vrot.slane %v1195, %v1199
    %v1203 = vsel %vm663, %v1188, 0
    %1205 = vmatprep.subr.mxu0 0.0
    %1206 = vmatpush1.msra.mxu0 0.0
    %1207 = vmatprep.subr.mxu0 0.0
    %1208 = vmatpush1.msra.mxu0 0.0
    %1209 = vmatprep.subr.mxu0 0.0
    %1210 = vmatpush1.msra.mxu0 0.0
    %1211 = vmatprep.subr.mxu0 0.0
    %1212 = vmatpush1.msra.mxu0 0.0
    %1213 = vmatprep.subr.mxu0 0.0
    %1214 = vmatpush1.msra.mxu0 0.0
    %1215 = vmatprep.subr.mxu0 0.0
    %1216 = vmatpush1.msra.mxu0 0.0
    %1217 = vmatprep.subr.mxu0 0.0
    %1218 = vmatpush1.msra.mxu0 0.0
    %1219 = vmatprep.subr.mxu0 0.0
    %1220 = vmatpush1.msra.mxu0 0.0
    %1221 = vmatprep.subr.mxu0 0.0
    %1222 = vmatpush1.msra.mxu0 0.0
    %1223 = vmatprep.subr.mxu0 0.0
    %1224 = vmatpush1.msra.mxu0 0.0
    %1225 = vmatprep.subr.mxu0 0.0
    %1226 = vmatpush1.msra.mxu0 %v1194
    %1227 = vmatprep.subr.mxu0 0.0
    %1228 = vmatpush1.msra.mxu0 %v1193
    %1229 = vmatprep.subr.mxu0 0.0
    %1230 = vmatpush1.msra.mxu0 %v1192
    %1231 = vmatprep.subr.mxu0 0.0
    %1232 = vmatpush1.msra.mxu0 %v1191
    %1233 = vmatprep.subr.mxu0 0.0
    %1234 = vmatpush1.msra.mxu0 %v1190
    %1235 = vmatprep.subr.mxu0 0.0
    %1236 = vmatpush1.msra.mxu0 %v1189
    %1237 = vmatprep.subr.mxu0 0.0
    %1238 = vmatpush2.msra.mxu0 0.0
    %1239 = vmatprep.subr.mxu0 0.0
    %1240 = vmatpush2.msra.mxu0 0.0
    %1241 = vmatprep.subr.mxu0 0.0
    %1242 = vmatpush2.msra.mxu0 0.0
    %1243 = vmatprep.subr.mxu0 0.0
    %1244 = vmatpush2.msra.mxu0 0.0
    %1245 = vmatprep.subr.mxu0 0.0
    %1246 = vmatpush2.msra.mxu0 0.0
    %1247 = vmatprep.subr.mxu0 0.0
    %1248 = vmatpush2.msra.mxu0 0.0
    %1249 = vmatprep.subr.mxu0 0.0
    %1250 = vmatpush2.msra.mxu0 0.0
    %1251 = vmatprep.subr.mxu0 0.0
    %1252 = vmatpush2.msra.mxu0 0.0
    %1253 = vmatprep.subr.mxu0 0.0
    %1254 = vmatpush2.msra.mxu0 0.0
    %1255 = vmatprep.subr.mxu0 0.0
    %1256 = vmatpush2.msra.mxu0 0.0
    %1257 = vmatprep.subr.mxu0 0.0
    %1258 = vmatpush2.msra.mxu0 0.0
    %1259 = vmatprep.subr.mxu0 0.0
    %1260 = vmatpush2.msra.mxu0 0.0
    %1261 = vmatprep.subr.mxu0 0.0
    %1262 = vmatpush2.msra.mxu0 0.0
    %1263 = vmatprep.subr.mxu0 0.0
    %1264 = vmatpush2.msra.mxu0 0.0
    %1265 = vmatprep.subr.mxu0 0.0
    %1266 = vmatpush2.msra.mxu0 0.0
    %1267 = vmatprep.subr.mxu0 0.0
    %1268 = vmatpush2.msra.mxu0 0.0
    %1269 = vmatprep.mubr.f32.mxu0 0.0
    %1270 = vmatmul.mubr.f32.gmra.mxu0 %v1203
    %v1271 = vpop.f32.mrf.mxu0
    %v1272 = vadd.f32 %v1200, %v1271
    %v1273 = vpop.f32.mrf.mxu0
    %1274 = vdwg.mxu0
    %v1277 = vunpack.c.l.s4 1966171168
    %v1278 = vunpack.c.0.s8 %v1277
    %v1279 = vlaneseq
    %v1280 = vshrl.u32 %v1279, 7
    %v1281 = vsub.s32 %v1278, %v1280
    %v1282 = vrot.slane %v1272, %v1281
    %v1283 = vcombine.high %v1282, %v1282
    %v1285 = vunpack.c.l.s4 1966171168
    %v1286 = vunpack.c.0.s8 %v1285
    %v1287 = vlaneseq
    %v1288 = vshrl.u32 %v1287, 7
    %v1289 = vsub.s32 %v1286, %v1288
    %v1290 = vrot.slane %v1282, %v1289
    %v1292 = vunpack.c.l.s4 1966171168
    %v1293 = vunpack.c.0.s8 %v1292
    %v1294 = vlaneseq
    %v1295 = vshrl.u32 %v1294, 7
    %v1296 = vsub.s32 %v1293, %v1295
    %v1297 = vrot.slane %v1283, %v1296
    %vm1300 = vcmask 516096
    %1301 = vst.msk [vmem:[%s23] sm:$0x1] %vm1300, %v1290
    %1302 = vst.msk [vmem:[%s23 + $0x8] sm:$0x1] %vm1300, %v1297
    %1303 = vmatprep.subr.mxu0 0.0
    %1304 = vmatpush1.msra.mxu0 0.0
    %1305 = vmatprep.subr.mxu0 0.0
    %1306 = vmatpush1.msra.mxu0 0.0
    %1307 = vmatprep.subr.mxu0 0.0
    %1308 = vmatpush1.msra.mxu0 0.0
    %1309 = vmatprep.subr.mxu0 0.0
    %1310 = vmatpush1.msra.mxu0 0.0
    %1311 = vmatprep.subr.mxu0 0.0
    %1312 = vmatpush1.msra.mxu0 0.0
    %1313 = vmatprep.subr.mxu0 0.0
    %1314 = vmatpush1.msra.mxu0 0.0
    %1315 = vmatprep.subr.mxu0 0.0
    %1316 = vmatpush1.msra.mxu0 0.0
    %1317 = vmatprep.subr.mxu0 0.0
    %1318 = vmatpush1.msra.mxu0 0.0
    %1319 = vmatprep.subr.mxu0 0.0
    %1320 = vmatpush1.msra.mxu0 0.0
    %1321 = vmatprep.subr.mxu0 0.0
    %1322 = vmatpush1.msra.mxu0 0.0
    %1323 = vmatprep.subr.mxu0 0.0
    %1324 = vmatpush1.msra.mxu0 0.0
    %1325 = vmatprep.subr.mxu0 0.0
    %1326 = vmatpush1.msra.mxu0 0.0
    %1327 = vmatprep.subr.mxu0 0.0
    %1328 = vmatpush1.msra.mxu0 %v912
    %1329 = vmatprep.subr.mxu0 0.0
    %1330 = vmatpush1.msra.mxu0 %v911
    %1331 = vmatprep.subr.mxu0 0.0
    %1332 = vmatpush1.msra.mxu0 %v910
    %1333 = vmatprep.subr.mxu0 0.0
    %1334 = vmatpush1.msra.mxu0 %v909
    %1335 = vmatprep.subr.mxu0 0.0
    %1336 = vmatpush2.msra.mxu0 0.0
    %1337 = vmatprep.subr.mxu0 0.0
    %1338 = vmatpush2.msra.mxu0 0.0
    %1339 = vmatprep.subr.mxu0 0.0
    %1340 = vmatpush2.msra.mxu0 0.0
    %1341 = vmatprep.subr.mxu0 0.0
    %1342 = vmatpush2.msra.mxu0 0.0
    %1343 = vmatprep.subr.mxu0 0.0
    %1344 = vmatpush2.msra.mxu0 0.0
    %1345 = vmatprep.subr.mxu0 0.0
    %1346 = vmatpush2.msra.mxu0 0.0
    %1347 = vmatprep.subr.mxu0 0.0
    %1348 = vmatpush2.msra.mxu0 0.0
    %1349 = vmatprep.subr.mxu0 0.0
    %1350 = vmatpush2.msra.mxu0 0.0
    %1351 = vmatprep.subr.mxu0 0.0
    %1352 = vmatpush2.msra.mxu0 0.0
    %1353 = vmatprep.subr.mxu0 0.0
    %1354 = vmatpush2.msra.mxu0 0.0
    %1355 = vmatprep.subr.mxu0 0.0
    %1356 = vmatpush2.msra.mxu0 0.0
    %1357 = vmatprep.subr.mxu0 0.0
    %1358 = vmatpush2.msra.mxu0 0.0
    %1359 = vmatprep.subr.mxu0 0.0
    %1360 = vmatpush2.msra.mxu0 0.0
    %1361 = vmatprep.subr.mxu0 0.0
    %1362 = vmatpush2.msra.mxu0 0.0
    %1363 = vmatprep.subr.mxu0 0.0
    %1364 = vmatpush2.msra.mxu0 0.0
    %1365 = vmatprep.subr.mxu0 0.0
    %1366 = vmatpush2.msra.mxu0 0.0
    %1367 = vmatprep.mubr.f32.mxu0 0.0
    %1368 = vmatmul.mubr.f32.gmra.mxu0 %v1032
    %v1369 = vpop.f32.mrf.mxu0
    %v1370 = vadd.f32 0.0, %v1369
    %v1371 = vpop.f32.mrf.mxu0
    %1372 = vdwg.mxu0
    %v1373 = vadd.f32 %v906, %v1370
    %v1374 = vmul.f32 %v1373, 0.5
    %v1375 = vsel %vm917, %v1373, %v1374
    %v1376 = vtanh.pop %v1375
    %v1377 = vmul.f32 %v1376, 0.5
    %v1378 = vadd.f32 %v1377, 0.5
    %v1379 = vsel %vm917, %v1376, %v1378
    %v1380 = vmul.f32 %v1379, %v1011
    %1382 = vrot.lane.b32.xlu0 %v1379, 64
    %v1383 = vpop.permute.xlu0 %1382
    %v1385 = vmul.f32 %v1379, %v1383
    %1387 = vrot.lane.b32.xlu0 %v1385, 32
    %v1388 = vpop.permute.xlu0 %1387
    %v1390 = vadd.f32 %v1380, %v1388
    %v1391 = vtanh.pop %v1390
    %1393 = vrot.lane.b32.xlu0 %v1391, 64
    %v1394 = vpop.permute.xlu0 %1393
    %v1396 = vmul.f32 %v1379, %v1394
    %v1397 = vld [vmem:[%s17] sm:$0xff]
    %v1398 = vld [vmem:[%s17 + $0x8] sm:$0xff]
    %v1399 = vld [vmem:[%s17 + $0x10] sm:$0xff]
    %v1400 = vld [vmem:[%s17 + $0x18] sm:$0xff]
    %v1401 = vld [vmem:[#allocation19] sm:$0x1]
    %v1403 = vlaneseq
    %v1404 = vshrl.u32 %v1403, 7
    %v1405 = vsub.s32 0, %v1404
    %v1406 = vrot.slane %v1401, %v1405
    %1409 = vrot.lane.b32.xlu0 %v1396, 32
    %v1410 = vpop.permute.xlu0 %1409
    %v1411 = vsel %vm388, %v1410, 0
    %1413 = vmatprep.subr.mxu0 0.0
    %1414 = vmatpush1.msra.mxu0 0.0
    %1415 = vmatprep.subr.mxu0 0.0
    %1416 = vmatpush1.msra.mxu0 0.0
    %1417 = vmatprep.subr.mxu0 0.0
    %1418 = vmatpush1.msra.mxu0 0.0
    %1419 = vmatprep.subr.mxu0 0.0
    %1420 = vmatpush1.msra.mxu0 0.0
    %1421 = vmatprep.subr.mxu0 0.0
    %1422 = vmatpush1.msra.mxu0 0.0
    %1423 = vmatprep.subr.mxu0 0.0
    %1424 = vmatpush1.msra.mxu0 0.0
    %1425 = vmatprep.subr.mxu0 0.0
    %1426 = vmatpush1.msra.mxu0 0.0
    %1427 = vmatprep.subr.mxu0 0.0
    %1428 = vmatpush1.msra.mxu0 0.0
    %1429 = vmatprep.subr.mxu0 0.0
    %1430 = vmatpush1.msra.mxu0 0.0
    %1431 = vmatprep.subr.mxu0 0.0
    %1432 = vmatpush1.msra.mxu0 0.0
    %1433 = vmatprep.subr.mxu0 0.0
    %1434 = vmatpush1.msra.mxu0 0.0
    %1435 = vmatprep.subr.mxu0 0.0
    %1436 = vmatpush1.msra.mxu0 0.0
    %1437 = vmatprep.subr.mxu0 0.0
    %1438 = vmatpush1.msra.mxu0 %v1400
    %1439 = vmatprep.subr.mxu0 0.0
    %1440 = vmatpush1.msra.mxu0 %v1399
    %1441 = vmatprep.subr.mxu0 0.0
    %1442 = vmatpush1.msra.mxu0 %v1398
    %1443 = vmatprep.subr.mxu0 0.0
    %1444 = vmatpush1.msra.mxu0 %v1397
    %1445 = vmatprep.subr.mxu0 0.0
    %1446 = vmatpush2.msra.mxu0 0.0
    %1447 = vmatprep.subr.mxu0 0.0
    %1448 = vmatpush2.msra.mxu0 0.0
    %1449 = vmatprep.subr.mxu0 0.0
    %1450 = vmatpush2.msra.mxu0 0.0
    %1451 = vmatprep.subr.mxu0 0.0
    %1452 = vmatpush2.msra.mxu0 0.0
    %1453 = vmatprep.subr.mxu0 0.0
    %1454 = vmatpush2.msra.mxu0 0.0
    %1455 = vmatprep.subr.mxu0 0.0
    %1456 = vmatpush2.msra.mxu0 0.0
    %1457 = vmatprep.subr.mxu0 0.0
    %1458 = vmatpush2.msra.mxu0 0.0
    %1459 = vmatprep.subr.mxu0 0.0
    %1460 = vmatpush2.msra.mxu0 0.0
    %1461 = vmatprep.subr.mxu0 0.0
    %1462 = vmatpush2.msra.mxu0 0.0
    %1463 = vmatprep.subr.mxu0 0.0
    %1464 = vmatpush2.msra.mxu0 0.0
    %1465 = vmatprep.subr.mxu0 0.0
    %1466 = vmatpush2.msra.mxu0 0.0
    %1467 = vmatprep.subr.mxu0 0.0
    %1468 = vmatpush2.msra.mxu0 0.0
    %1469 = vmatprep.subr.mxu0 0.0
    %1470 = vmatpush2.msra.mxu0 0.0
    %1471 = vmatprep.subr.mxu0 0.0
    %1472 = vmatpush2.msra.mxu0 0.0
    %1473 = vmatprep.subr.mxu0 0.0
    %1474 = vmatpush2.msra.mxu0 0.0
    %1475 = vmatprep.subr.mxu0 0.0
    %1476 = vmatpush2.msra.mxu0 0.0
    %1477 = vmatprep.mubr.f32.mxu0 0.0
    %1478 = vmatmul.mubr.f32.gmra.mxu0 %v1411
    %v1479 = vpop.f32.mrf.mxu0
    %v1480 = vadd.f32 %v1406, %v1479
    %v1481 = vpop.f32.mrf.mxu0
    %1482 = vdwg.mxu0
    %v1483 = vmax.f32 %v1480, 0.0
    %v1484 = vld [vmem:[#allocation21] sm:$0xff]
    %v1485 = vld [vmem:[#allocation21 + $0x8] sm:$0xff]
    %v1486 = vld [vmem:[#allocation21 + $0x10] sm:$0xff]
    %v1487 = vld [vmem:[#allocation22] sm:$0x1]
    %v1489 = vlaneseq
    %v1490 = vshrl.u32 %v1489, 7
    %v1491 = vsub.s32 0, %v1490
    %v1492 = vrot.slane %v1487, %v1491
    %v1495 = vsel %vm748, %v1483, 0
    %1497 = vmatprep.subr.mxu0 0.0
    %1498 = vmatpush1.msra.mxu0 0.0
    %1499 = vmatprep.subr.mxu0 0.0
    %1500 = vmatpush1.msra.mxu0 0.0
    %1501 = vmatprep.subr.mxu0 0.0
    %1502 = vmatpush1.msra.mxu0 0.0
    %1503 = vmatprep.subr.mxu0 0.0
    %1504 = vmatpush1.msra.mxu0 0.0
    %1505 = vmatprep.subr.mxu0 0.0
    %1506 = vmatpush1.msra.mxu0 0.0
    %1507 = vmatprep.subr.mxu0 0.0
    %1508 = vmatpush1.msra.mxu0 0.0
    %1509 = vmatprep.subr.mxu0 0.0
    %1510 = vmatpush1.msra.mxu0 0.0
    %1511 = vmatprep.subr.mxu0 0.0
    %1512 = vmatpush1.msra.mxu0 0.0
    %1513 = vmatprep.subr.mxu0 0.0
    %1514 = vmatpush1.msra.mxu0 0.0
    %1515 = vmatprep.subr.mxu0 0.0
    %1516 = vmatpush1.msra.mxu0 0.0
    %1517 = vmatprep.subr.mxu0 0.0
    %1518 = vmatpush1.msra.mxu0 0.0
    %1519 = vmatprep.subr.mxu0 0.0
    %1520 = vmatpush1.msra.mxu0 0.0
    %1521 = vmatprep.subr.mxu0 0.0
    %1522 = vmatpush1.msra.mxu0 0.0
    %1523 = vmatprep.subr.mxu0 0.0
    %1524 = vmatpush1.msra.mxu0 %v1486
    %1525 = vmatprep.subr.mxu0 0.0
    %1526 = vmatpush1.msra.mxu0 %v1485
    %1527 = vmatprep.subr.mxu0 0.0
    %1528 = vmatpush1.msra.mxu0 %v1484
    %1529 = vmatprep.subr.mxu0 0.0
    %1530 = vmatpush2.msra.mxu0 0.0
    %1531 = vmatprep.subr.mxu0 0.0
    %1532 = vmatpush2.msra.mxu0 0.0
    %1533 = vmatprep.subr.mxu0 0.0
    %1534 = vmatpush2.msra.mxu0 0.0
    %1535 = vmatprep.subr.mxu0 0.0
    %1536 = vmatpush2.msra.mxu0 0.0
    %1537 = vmatprep.subr.mxu0 0.0
    %1538 = vmatpush2.msra.mxu0 0.0
    %1539 = vmatprep.subr.mxu0 0.0
    %1540 = vmatpush2.msra.mxu0 0.0
    %1541 = vmatprep.subr.mxu0 0.0
    %1542 = vmatpush2.msra.mxu0 0.0
    %1543 = vmatprep.subr.mxu0 0.0
    %1544 = vmatpush2.msra.mxu0 0.0
    %1545 = vmatprep.subr.mxu0 0.0
    %1546 = vmatpush2.msra.mxu0 0.0
    %1547 = vmatprep.subr.mxu0 0.0
    %1548 = vmatpush2.msra.mxu0 0.0
    %1549 = vmatprep.subr.mxu0 0.0
    %1550 = vmatpush2.msra.mxu0 0.0
    %1551 = vmatprep.subr.mxu0 0.0
    %1552 = vmatpush2.msra.mxu0 0.0
    %1553 = vmatprep.subr.mxu0 0.0
    %1554 = vmatpush2.msra.mxu0 0.0
    %1555 = vmatprep.subr.mxu0 0.0
    %1556 = vmatpush2.msra.mxu0 0.0
    %1557 = vmatprep.subr.mxu0 0.0
    %1558 = vmatpush2.msra.mxu0 0.0
    %1559 = vmatprep.subr.mxu0 0.0
    %1560 = vmatpush2.msra.mxu0 0.0
    %1561 = vmatprep.mubr.f32.mxu0 0.0
    %1562 = vmatmul.mubr.f32.gmra.mxu0 %v1495
    %v1563 = vpop.f32.mrf.mxu0
    %v1564 = vadd.f32 %v1492, %v1563
    %v1565 = vpop.f32.mrf.mxu0
    %1566 = vdwg.mxu0
    %v1567 = vmax.f32 %v1564, 0.0
    %v1568 = vld [vmem:[%s21] sm:$0xff]
    %v1569 = vld [vmem:[%s21 + $0x8] sm:$0xff]
    %v1570 = vld [vmem:[%s21 + $0x10] sm:$0xff]
    %v1571 = vld [vmem:[%s21 + $0x18] sm:$0xff]
    %v1572 = vld [vmem:[%s21 + $0x20] sm:$0xff]
    %v1573 = vld [vmem:[%s21 + $0x28] sm:$0xff]
    %v1574 = vld [vmem:[#allocation24] sm:$0x1]
    %v1576 = vlaneseq
    %v1577 = vshrl.u32 %v1576, 7
    %v1578 = vsub.s32 0, %v1577
    %v1579 = vrot.slane %v1574, %v1578
    %v1582 = vsel %vm663, %v1567, 0
    %1584 = vmatprep.subr.mxu0 0.0
    %1585 = vmatpush1.msra.mxu0 0.0
    %1586 = vmatprep.subr.mxu0 0.0
    %1587 = vmatpush1.msra.mxu0 0.0
    %1588 = vmatprep.subr.mxu0 0.0
    %1589 = vmatpush1.msra.mxu0 0.0
    %1590 = vmatprep.subr.mxu0 0.0
    %1591 = vmatpush1.msra.mxu0 0.0
    %1592 = vmatprep.subr.mxu0 0.0
    %1593 = vmatpush1.msra.mxu0 0.0
    %1594 = vmatprep.subr.mxu0 0.0
    %1595 = vmatpush1.msra.mxu0 0.0
    %1596 = vmatprep.subr.mxu0 0.0
    %1597 = vmatpush1.msra.mxu0 0.0
    %1598 = vmatprep.subr.mxu0 0.0
    %1599 = vmatpush1.msra.mxu0 0.0
    %1600 = vmatprep.subr.mxu0 0.0
    %1601 = vmatpush1.msra.mxu0 0.0
    %1602 = vmatprep.subr.mxu0 0.0
    %1603 = vmatpush1.msra.mxu0 0.0
    %1604 = vmatprep.subr.mxu0 0.0
    %1605 = vmatpush1.msra.mxu0 %v1573
    %1606 = vmatprep.subr.mxu0 0.0
    %1607 = vmatpush1.msra.mxu0 %v1572
    %1608 = vmatprep.subr.mxu0 0.0
    %1609 = vmatpush1.msra.mxu0 %v1571
    %1610 = vmatprep.subr.mxu0 0.0
    %1611 = vmatpush1.msra.mxu0 %v1570
    %1612 = vmatprep.subr.mxu0 0.0
    %1613 = vmatpush1.msra.mxu0 %v1569
    %1614 = vmatprep.subr.mxu0 0.0
    %1615 = vmatpush1.msra.mxu0 %v1568
    %1616 = vmatprep.subr.mxu0 0.0
    %1617 = vmatpush2.msra.mxu0 0.0
    %1618 = vmatprep.subr.mxu0 0.0
    %1619 = vmatpush2.msra.mxu0 0.0
    %1620 = vmatprep.subr.mxu0 0.0
    %1621 = vmatpush2.msra.mxu0 0.0
    %1622 = vmatprep.subr.mxu0 0.0
    %1623 = vmatpush2.msra.mxu0 0.0
    %1624 = vmatprep.subr.mxu0 0.0
    %1625 = vmatpush2.msra.mxu0 0.0
    %1626 = vmatprep.subr.mxu0 0.0
    %1627 = vmatpush2.msra.mxu0 0.0
    %1628 = vmatprep.subr.mxu0 0.0
    %1629 = vmatpush2.msra.mxu0 0.0
    %1630 = vmatprep.subr.mxu0 0.0
    %1631 = vmatpush2.msra.mxu0 0.0
    %1632 = vmatprep.subr.mxu0 0.0
    %1633 = vmatpush2.msra.mxu0 0.0
    %1634 = vmatprep.subr.mxu0 0.0
    %1635 = vmatpush2.msra.mxu0 0.0
    %1636 = vmatprep.subr.mxu0 0.0
    %1637 = vmatpush2.msra.mxu0 0.0
    %1638 = vmatprep.subr.mxu0 0.0
    %1639 = vmatpush2.msra.mxu0 0.0
    %1640 = vmatprep.subr.mxu0 0.0
    %1641 = vmatpush2.msra.mxu0 0.0
    %1642 = vmatprep.subr.mxu0 0.0
    %1643 = vmatpush2.msra.mxu0 0.0
    %1644 = vmatprep.subr.mxu0 0.0
    %1645 = vmatpush2.msra.mxu0 0.0
    %1646 = vmatprep.subr.mxu0 0.0
    %1647 = vmatpush2.msra.mxu0 0.0
    %1648 = vmatprep.mubr.f32.mxu0 0.0
    %1649 = vmatmul.mubr.f32.gmra.mxu0 %v1582
    %v1650 = vpop.f32.mrf.mxu0
    %v1651 = vadd.f32 %v1579, %v1650
    %v1652 = vpop.f32.mrf.mxu0
    %1653 = vdwg.mxu0
    %v1656 = vunpack.c.l.s4 1966171168
    %v1657 = vunpack.c.0.s8 %v1656
    %v1658 = vlaneseq
    %v1659 = vshrl.u32 %v1658, 7
    %v1660 = vsub.s32 %v1657, %v1659
    %v1661 = vrot.slane %v1651, %v1660
    %v1662 = vcombine.high %v1661, %v1661
    %v1664 = vunpack.c.l.s4 1966171168
    %v1665 = vunpack.c.0.s8 %v1664
    %v1666 = vlaneseq
    %v1667 = vshrl.u32 %v1666, 7
    %v1668 = vsub.s32 %v1665, %v1667
    %v1669 = vrot.slane %v1661, %v1668
    %v1671 = vunpack.c.l.s4 1966171168
    %v1672 = vunpack.c.0.s8 %v1671
    %v1673 = vlaneseq
    %v1674 = vshrl.u32 %v1673, 7
    %v1675 = vsub.s32 %v1672, %v1674
    %v1676 = vrot.slane %v1662, %v1675
    %1679 = vst.msk [vmem:[%s23 + $0x1] sm:$0x1] %vm1300, %v1669
    %1680 = vst.msk [vmem:[%s23 + $0x9] sm:$0x1] %vm1300, %v1676
    %1681 = vmatprep.subr.mxu0 0.0
    %1682 = vmatpush1.msra.mxu0 0.0
    %1683 = vmatprep.subr.mxu0 0.0
    %1684 = vmatpush1.msra.mxu0 0.0
    %1685 = vmatprep.subr.mxu0 0.0
    %1686 = vmatpush1.msra.mxu0 0.0
    %1687 = vmatprep.subr.mxu0 0.0
    %1688 = vmatpush1.msra.mxu0 0.0
    %1689 = vmatprep.subr.mxu0 0.0
    %1690 = vmatpush1.msra.mxu0 0.0
    %1691 = vmatprep.subr.mxu0 0.0
    %1692 = vmatpush1.msra.mxu0 0.0
    %1693 = vmatprep.subr.mxu0 0.0
    %1694 = vmatpush1.msra.mxu0 0.0
    %1695 = vmatprep.subr.mxu0 0.0
    %1696 = vmatpush1.msra.mxu0 0.0
    %1697 = vmatprep.subr.mxu0 0.0
    %1698 = vmatpush1.msra.mxu0 0.0
    %1699 = vmatprep.subr.mxu0 0.0
    %1700 = vmatpush1.msra.mxu0 0.0
    %1701 = vmatprep.subr.mxu0 0.0
    %1702 = vmatpush1.msra.mxu0 0.0
    %1703 = vmatprep.subr.mxu0 0.0
    %1704 = vmatpush1.msra.mxu0 0.0
    %1705 = vmatprep.subr.mxu0 0.0
    %1706 = vmatpush1.msra.mxu0 %v912
    %1707 = vmatprep.subr.mxu0 0.0
    %1708 = vmatpush1.msra.mxu0 %v911
    %1709 = vmatprep.subr.mxu0 0.0
    %1710 = vmatpush1.msra.mxu0 %v910
    %1711 = vmatprep.subr.mxu0 0.0
    %1712 = vmatpush1.msra.mxu0 %v909
    %1713 = vmatprep.subr.mxu0 0.0
    %1714 = vmatpush2.msra.mxu0 0.0
    %1715 = vmatprep.subr.mxu0 0.0
    %1716 = vmatpush2.msra.mxu0 0.0
    %1717 = vmatprep.subr.mxu0 0.0
    %1718 = vmatpush2.msra.mxu0 0.0
    %1719 = vmatprep.subr.mxu0 0.0
    %1720 = vmatpush2.msra.mxu0 0.0
    %1721 = vmatprep.subr.mxu0 0.0
    %1722 = vmatpush2.msra.mxu0 0.0
    %1723 = vmatprep.subr.mxu0 0.0
    %1724 = vmatpush2.msra.mxu0 0.0
    %1725 = vmatprep.subr.mxu0 0.0
    %1726 = vmatpush2.msra.mxu0 0.0
    %1727 = vmatprep.subr.mxu0 0.0
    %1728 = vmatpush2.msra.mxu0 0.0
    %1729 = vmatprep.subr.mxu0 0.0
    %1730 = vmatpush2.msra.mxu0 0.0
    %1731 = vmatprep.subr.mxu0 0.0
    %1732 = vmatpush2.msra.mxu0 0.0
    %1733 = vmatprep.subr.mxu0 0.0
    %1734 = vmatpush2.msra.mxu0 0.0
    %1735 = vmatprep.subr.mxu0 0.0
    %1736 = vmatpush2.msra.mxu0 0.0
    %1737 = vmatprep.subr.mxu0 0.0
    %1738 = vmatpush2.msra.mxu0 0.0
    %1739 = vmatprep.subr.mxu0 0.0
    %1740 = vmatpush2.msra.mxu0 0.0
    %1741 = vmatprep.subr.mxu0 0.0
    %1742 = vmatpush2.msra.mxu0 0.0
    %1743 = vmatprep.subr.mxu0 0.0
    %1744 = vmatpush2.msra.mxu0 0.0
    %1745 = vmatprep.mubr.f32.mxu0 0.0
    %1746 = vmatmul.mubr.f32.gmra.mxu0 %v1411
    %v1747 = vpop.f32.mrf.mxu0
    %v1748 = vadd.f32 0.0, %v1747
    %v1749 = vpop.f32.mrf.mxu0
    %1750 = vdwg.mxu0
    %v1751 = vadd.f32 %v906, %v1748
    %v1752 = vmul.f32 %v1751, 0.5
    %v1753 = vsel %vm917, %v1751, %v1752
    %v1754 = vtanh.pop %v1753
    %v1755 = vmul.f32 %v1754, 0.5
    %v1756 = vadd.f32 %v1755, 0.5
    %v1757 = vsel %vm917, %v1754, %v1756
    %v1758 = vmul.f32 %v1757, %v1390
    %1760 = vrot.lane.b32.xlu0 %v1757, 64
    %v1761 = vpop.permute.xlu0 %1760
    %v1763 = vmul.f32 %v1757, %v1761
    %1765 = vrot.lane.b32.xlu0 %v1763, 32
    %v1766 = vpop.permute.xlu0 %1765
    %v1768 = vadd.f32 %v1758, %v1766
    %v1769 = vtanh.pop %v1768
    %1771 = vrot.lane.b32.xlu0 %v1769, 64
    %v1772 = vpop.permute.xlu0 %1771
    %v1774 = vmul.f32 %v1757, %v1772
    %v1775 = vld [vmem:[%s17] sm:$0xff]
    %v1776 = vld [vmem:[%s17 + $0x8] sm:$0xff]
    %v1777 = vld [vmem:[%s17 + $0x10] sm:$0xff]
    %v1778 = vld [vmem:[%s17 + $0x18] sm:$0xff]
    %v1779 = vld [vmem:[#allocation19] sm:$0x1]
    %v1781 = vlaneseq
    %v1782 = vshrl.u32 %v1781, 7
    %v1783 = vsub.s32 0, %v1782
    %v1784 = vrot.slane %v1779, %v1783
    %1787 = vrot.lane.b32.xlu0 %v1774, 32
    %v1788 = vpop.permute.xlu0 %1787
    %v1789 = vsel %vm388, %v1788, 0
    %1791 = vmatprep.subr.mxu0 0.0
    %1792 = vmatpush1.msra.mxu0 0.0
    %1793 = vmatprep.subr.mxu0 0.0
    %1794 = vmatpush1.msra.mxu0 0.0
    %1795 = vmatprep.subr.mxu0 0.0
    %1796 = vmatpush1.msra.mxu0 0.0
    %1797 = vmatprep.subr.mxu0 0.0
    %1798 = vmatpush1.msra.mxu0 0.0
    %1799 = vmatprep.subr.mxu0 0.0
    %1800 = vmatpush1.msra.mxu0 0.0
    %1801 = vmatprep.subr.mxu0 0.0
    %1802 = vmatpush1.msra.mxu0 0.0
    %1803 = vmatprep.subr.mxu0 0.0
    %1804 = vmatpush1.msra.mxu0 0.0
    %1805 = vmatprep.subr.mxu0 0.0
    %1806 = vmatpush1.msra.mxu0 0.0
    %1807 = vmatprep.subr.mxu0 0.0
    %1808 = vmatpush1.msra.mxu0 0.0
    %1809 = vmatprep.subr.mxu0 0.0
    %1810 = vmatpush1.msra.mxu0 0.0
    %1811 = vmatprep.subr.mxu0 0.0
    %1812 = vmatpush1.msra.mxu0 0.0
    %1813 = vmatprep.subr.mxu0 0.0
    %1814 = vmatpush1.msra.mxu0 0.0
    %1815 = vmatprep.subr.mxu0 0.0
    %1816 = vmatpush1.msra.mxu0 %v1778
    %1817 = vmatprep.subr.mxu0 0.0
    %1818 = vmatpush1.msra.mxu0 %v1777
    %1819 = vmatprep.subr.mxu0 0.0
    %1820 = vmatpush1.msra.mxu0 %v1776
    %1821 = vmatprep.subr.mxu0 0.0
    %1822 = vmatpush1.msra.mxu0 %v1775
    %1823 = vmatprep.subr.mxu0 0.0
    %1824 = vmatpush2.msra.mxu0 0.0
    %1825 = vmatprep.subr.mxu0 0.0
    %1826 = vmatpush2.msra.mxu0 0.0
    %1827 = vmatprep.subr.mxu0 0.0
    %1828 = vmatpush2.msra.mxu0 0.0
    %1829 = vmatprep.subr.mxu0 0.0
    %1830 = vmatpush2.msra.mxu0 0.0
    %1831 = vmatprep.subr.mxu0 0.0
    %1832 = vmatpush2.msra.mxu0 0.0
    %1833 = vmatprep.subr.mxu0 0.0
    %1834 = vmatpush2.msra.mxu0 0.0
    %1835 = vmatprep.subr.mxu0 0.0
    %1836 = vmatpush2.msra.mxu0 0.0
    %1837 = vmatprep.subr.mxu0 0.0
    %1838 = vmatpush2.msra.mxu0 0.0
    %1839 = vmatprep.subr.mxu0 0.0
    %1840 = vmatpush2.msra.mxu0 0.0
    %1841 = vmatprep.subr.mxu0 0.0
    %1842 = vmatpush2.msra.mxu0 0.0
    %1843 = vmatprep.subr.mxu0 0.0
    %1844 = vmatpush2.msra.mxu0 0.0
    %1845 = vmatprep.subr.mxu0 0.0
    %1846 = vmatpush2.msra.mxu0 0.0
    %1847 = vmatprep.subr.mxu0 0.0
    %1848 = vmatpush2.msra.mxu0 0.0
    %1849 = vmatprep.subr.mxu0 0.0
    %1850 = vmatpush2.msra.mxu0 0.0
    %1851 = vmatprep.subr.mxu0 0.0
    %1852 = vmatpush2.msra.mxu0 0.0
    %1853 = vmatprep.subr.mxu0 0.0
    %1854 = vmatpush2.msra.mxu0 0.0
    %1855 = vmatprep.mubr.f32.mxu0 0.0
    %1856 = vmatmul.mubr.f32.gmra.mxu0 %v1789
    %v1857 = vpop.f32.mrf.mxu0
    %v1858 = vadd.f32 %v1784, %v1857
    %v1859 = vpop.f32.mrf.mxu0
    %1860 = vdwg.mxu0
    %v1861 = vmax.f32 %v1858, 0.0
    %v1862 = vld [vmem:[#allocation21] sm:$0xff]
    %v1863 = vld [vmem:[#allocation21 + $0x8] sm:$0xff]
    %v1864 = vld [vmem:[#allocation21 + $0x10] sm:$0xff]
    %v1865 = vld [vmem:[#allocation22] sm:$0x1]
    %v1867 = vlaneseq
    %v1868 = vshrl.u32 %v1867, 7
    %v1869 = vsub.s32 0, %v1868
    %v1870 = vrot.slane %v1865, %v1869
    %v1873 = vsel %vm748, %v1861, 0
    %1875 = vmatprep.subr.mxu0 0.0
    %1876 = vmatpush1.msra.mxu0 0.0
    %1877 = vmatprep.subr.mxu0 0.0
    %1878 = vmatpush1.msra.mxu0 0.0
    %1879 = vmatprep.subr.mxu0 0.0
    %1880 = vmatpush1.msra.mxu0 0.0
    %1881 = vmatprep.subr.mxu0 0.0
    %1882 = vmatpush1.msra.mxu0 0.0
    %1883 = vmatprep.subr.mxu0 0.0
    %1884 = vmatpush1.msra.mxu0 0.0
    %1885 = vmatprep.subr.mxu0 0.0
    %1886 = vmatpush1.msra.mxu0 0.0
    %1887 = vmatprep.subr.mxu0 0.0
    %1888 = vmatpush1.msra.mxu0 0.0
    %1889 = vmatprep.subr.mxu0 0.0
    %1890 = vmatpush1.msra.mxu0 0.0
    %1891 = vmatprep.subr.mxu0 0.0
    %1892 = vmatpush1.msra.mxu0 0.0
    %1893 = vmatprep.subr.mxu0 0.0
    %1894 = vmatpush1.msra.mxu0 0.0
    %1895 = vmatprep.subr.mxu0 0.0
    %1896 = vmatpush1.msra.mxu0 0.0
    %1897 = vmatprep.subr.mxu0 0.0
    %1898 = vmatpush1.msra.mxu0 0.0
    %1899 = vmatprep.subr.mxu0 0.0
    %1900 = vmatpush1.msra.mxu0 0.0
    %1901 = vmatprep.subr.mxu0 0.0
    %1902 = vmatpush1.msra.mxu0 %v1864
    %1903 = vmatprep.subr.mxu0 0.0
    %1904 = vmatpush1.msra.mxu0 %v1863
    %1905 = vmatprep.subr.mxu0 0.0
    %1906 = vmatpush1.msra.mxu0 %v1862
    %1907 = vmatprep.subr.mxu0 0.0
    %1908 = vmatpush2.msra.mxu0 0.0
    %1909 = vmatprep.subr.mxu0 0.0
    %1910 = vmatpush2.msra.mxu0 0.0
    %1911 = vmatprep.subr.mxu0 0.0
    %1912 = vmatpush2.msra.mxu0 0.0
    %1913 = vmatprep.subr.mxu0 0.0
    %1914 = vmatpush2.msra.mxu0 0.0
    %1915 = vmatprep.subr.mxu0 0.0
    %1916 = vmatpush2.msra.mxu0 0.0
    %1917 = vmatprep.subr.mxu0 0.0
    %1918 = vmatpush2.msra.mxu0 0.0
    %1919 = vmatprep.subr.mxu0 0.0
    %1920 = vmatpush2.msra.mxu0 0.0
    %1921 = vmatprep.subr.mxu0 0.0
    %1922 = vmatpush2.msra.mxu0 0.0
    %1923 = vmatprep.subr.mxu0 0.0
    %1924 = vmatpush2.msra.mxu0 0.0
    %1925 = vmatprep.subr.mxu0 0.0
    %1926 = vmatpush2.msra.mxu0 0.0
    %1927 = vmatprep.subr.mxu0 0.0
    %1928 = vmatpush2.msra.mxu0 0.0
    %1929 = vmatprep.subr.mxu0 0.0
    %1930 = vmatpush2.msra.mxu0 0.0
    %1931 = vmatprep.subr.mxu0 0.0
    %1932 = vmatpush2.msra.mxu0 0.0
    %1933 = vmatprep.subr.mxu0 0.0
    %1934 = vmatpush2.msra.mxu0 0.0
    %1935 = vmatprep.subr.mxu0 0.0
    %1936 = vmatpush2.msra.mxu0 0.0
    %1937 = vmatprep.subr.mxu0 0.0
    %1938 = vmatpush2.msra.mxu0 0.0
    %1939 = vmatprep.mubr.f32.mxu0 0.0
    %1940 = vmatmul.mubr.f32.gmra.mxu0 %v1873
    %v1941 = vpop.f32.mrf.mxu0
    %v1942 = vadd.f32 %v1870, %v1941
    %v1943 = vpop.f32.mrf.mxu0
    %1944 = vdwg.mxu0
    %v1945 = vmax.f32 %v1942, 0.0
    %v1946 = vld [vmem:[%s21] sm:$0xff]
    %v1947 = vld [vmem:[%s21 + $0x8] sm:$0xff]
    %v1948 = vld [vmem:[%s21 + $0x10] sm:$0xff]
    %v1949 = vld [vmem:[%s21 + $0x18] sm:$0xff]
    %v1950 = vld [vmem:[%s21 + $0x20] sm:$0xff]
    %v1951 = vld [vmem:[%s21 + $0x28] sm:$0xff]
    %v1952 = vld [vmem:[#allocation24] sm:$0x1]
    %v1954 = vlaneseq
    %v1955 = vshrl.u32 %v1954, 7
    %v1956 = vsub.s32 0, %v1955
    %v1957 = vrot.slane %v1952, %v1956
    %v1960 = vsel %vm663, %v1945, 0
    %1962 = vmatprep.subr.mxu0 0.0
    %1963 = vmatpush1.msra.mxu0 0.0
    %1964 = vmatprep.subr.mxu0 0.0
    %1965 = vmatpush1.msra.mxu0 0.0
    %1966 = vmatprep.subr.mxu0 0.0
    %1967 = vmatpush1.msra.mxu0 0.0
    %1968 = vmatprep.subr.mxu0 0.0
    %1969 = vmatpush1.msra.mxu0 0.0
    %1970 = vmatprep.subr.mxu0 0.0
    %1971 = vmatpush1.msra.mxu0 0.0
    %1972 = vmatprep.subr.mxu0 0.0
    %1973 = vmatpush1.msra.mxu0 0.0
    %1974 = vmatprep.subr.mxu0 0.0
    %1975 = vmatpush1.msra.mxu0 0.0
    %1976 = vmatprep.subr.mxu0 0.0
    %1977 = vmatpush1.msra.mxu0 0.0
    %1978 = vmatprep.subr.mxu0 0.0
    %1979 = vmatpush1.msra.mxu0 0.0
    %1980 = vmatprep.subr.mxu0 0.0
    %1981 = vmatpush1.msra.mxu0 0.0
    %1982 = vmatprep.subr.mxu0 0.0
    %1983 = vmatpush1.msra.mxu0 %v1951
    %1984 = vmatprep.subr.mxu0 0.0
    %1985 = vmatpush1.msra.mxu0 %v1950
    %1986 = vmatprep.subr.mxu0 0.0
    %1987 = vmatpush1.msra.mxu0 %v1949
    %1988 = vmatprep.subr.mxu0 0.0
    %1989 = vmatpush1.msra.mxu0 %v1948
    %1990 = vmatprep.subr.mxu0 0.0
    %1991 = vmatpush1.msra.mxu0 %v1947
    %1992 = vmatprep.subr.mxu0 0.0
    %1993 = vmatpush1.msra.mxu0 %v1946
    %1994 = vmatprep.subr.mxu0 0.0
    %1995 = vmatpush2.msra.mxu0 0.0
    %1996 = vmatprep.subr.mxu0 0.0
    %1997 = vmatpush2.msra.mxu0 0.0
    %1998 = vmatprep.subr.mxu0 0.0
    %1999 = vmatpush2.msra.mxu0 0.0
    %2000 = vmatprep.subr.mxu0 0.0
    %2001 = vmatpush2.msra.mxu0 0.0
    %2002 = vmatprep.subr.mxu0 0.0
    %2003 = vmatpush2.msra.mxu0 0.0
    %2004 = vmatprep.subr.mxu0 0.0
    %2005 = vmatpush2.msra.mxu0 0.0
    %2006 = vmatprep.subr.mxu0 0.0
    %2007 = vmatpush2.msra.mxu0 0.0
    %2008 = vmatprep.subr.mxu0 0.0
    %2009 = vmatpush2.msra.mxu0 0.0
    %2010 = vmatprep.subr.mxu0 0.0
    %2011 = vmatpush2.msra.mxu0 0.0
    %2012 = vmatprep.subr.mxu0 0.0
    %2013 = vmatpush2.msra.mxu0 0.0
    %2014 = vmatprep.subr.mxu0 0.0
    %2015 = vmatpush2.msra.mxu0 0.0
    %2016 = vmatprep.subr.mxu0 0.0
    %2017 = vmatpush2.msra.mxu0 0.0
    %2018 = vmatprep.subr.mxu0 0.0
    %2019 = vmatpush2.msra.mxu0 0.0
    %2020 = vmatprep.subr.mxu0 0.0
    %2021 = vmatpush2.msra.mxu0 0.0
    %2022 = vmatprep.subr.mxu0 0.0
    %2023 = vmatpush2.msra.mxu0 0.0
    %2024 = vmatprep.subr.mxu0 0.0
    %2025 = vmatpush2.msra.mxu0 0.0
    %2026 = vmatprep.mubr.f32.mxu0 0.0
    %2027 = vmatmul.mubr.f32.gmra.mxu0 %v1960
    %v2028 = vpop.f32.mrf.mxu0
    %v2029 = vadd.f32 %v1957, %v2028
    %v2030 = vpop.f32.mrf.mxu0
    %2031 = vdwg.mxu0
    %v2034 = vunpack.c.l.s4 1966171168
    %v2035 = vunpack.c.0.s8 %v2034
    %v2036 = vlaneseq
    %v2037 = vshrl.u32 %v2036, 7
    %v2038 = vsub.s32 %v2035, %v2037
    %v2039 = vrot.slane %v2029, %v2038
    %v2040 = vcombine.high %v2039, %v2039
    %v2042 = vunpack.c.l.s4 1966171168
    %v2043 = vunpack.c.0.s8 %v2042
    %v2044 = vlaneseq
    %v2045 = vshrl.u32 %v2044, 7
    %v2046 = vsub.s32 %v2043, %v2045
    %v2047 = vrot.slane %v2039, %v2046
    %v2049 = vunpack.c.l.s4 1966171168
    %v2050 = vunpack.c.0.s8 %v2049
    %v2051 = vlaneseq
    %v2052 = vshrl.u32 %v2051, 7
    %v2053 = vsub.s32 %v2050, %v2052
    %v2054 = vrot.slane %v2040, %v2053
    %2057 = vst.msk [vmem:[%s23 + $0x2] sm:$0x1] %vm1300, %v2047
    %2058 = vst.msk [vmem:[%s23 + $0xa] sm:$0x1] %vm1300, %v2054
    %2059 = vmatprep.subr.mxu0 0.0
    %2060 = vmatpush1.msra.mxu0 0.0
    %2061 = vmatprep.subr.mxu0 0.0
    %2062 = vmatpush1.msra.mxu0 0.0
    %2063 = vmatprep.subr.mxu0 0.0
    %2064 = vmatpush1.msra.mxu0 0.0
    %2065 = vmatprep.subr.mxu0 0.0
    %2066 = vmatpush1.msra.mxu0 0.0
    %2067 = vmatprep.subr.mxu0 0.0
    %2068 = vmatpush1.msra.mxu0 0.0
    %2069 = vmatprep.subr.mxu0 0.0
    %2070 = vmatpush1.msra.mxu0 0.0
    %2071 = vmatprep.subr.mxu0 0.0
    %2072 = vmatpush1.msra.mxu0 0.0
    %2073 = vmatprep.subr.mxu0 0.0
    %2074 = vmatpush1.msra.mxu0 0.0
    %2075 = vmatprep.subr.mxu0 0.0
    %2076 = vmatpush1.msra.mxu0 0.0
    %2077 = vmatprep.subr.mxu0 0.0
    %2078 = vmatpush1.msra.mxu0 0.0
    %2079 = vmatprep.subr.mxu0 0.0
    %2080 = vmatpush1.msra.mxu0 0.0
    %2081 = vmatprep.subr.mxu0 0.0
    %2082 = vmatpush1.msra.mxu0 0.0
    %2083 = vmatprep.subr.mxu0 0.0
    %2084 = vmatpush1.msra.mxu0 %v912
    %2085 = vmatprep.subr.mxu0 0.0
    %2086 = vmatpush1.msra.mxu0 %v911
    %2087 = vmatprep.subr.mxu0 0.0
    %2088 = vmatpush1.msra.mxu0 %v910
    %2089 = vmatprep.subr.mxu0 0.0
    %2090 = vmatpush1.msra.mxu0 %v909
    %2091 = vmatprep.subr.mxu0 0.0
    %2092 = vmatpush2.msra.mxu0 0.0
    %2093 = vmatprep.subr.mxu0 0.0
    %2094 = vmatpush2.msra.mxu0 0.0
    %2095 = vmatprep.subr.mxu0 0.0
    %2096 = vmatpush2.msra.mxu0 0.0
    %2097 = vmatprep.subr.mxu0 0.0
    %2098 = vmatpush2.msra.mxu0 0.0
    %2099 = vmatprep.subr.mxu0 0.0
    %2100 = vmatpush2.msra.mxu0 0.0
    %2101 = vmatprep.subr.mxu0 0.0
    %2102 = vmatpush2.msra.mxu0 0.0
    %2103 = vmatprep.subr.mxu0 0.0
    %2104 = vmatpush2.msra.mxu0 0.0
    %2105 = vmatprep.subr.mxu0 0.0
    %2106 = vmatpush2.msra.mxu0 0.0
    %2107 = vmatprep.subr.mxu0 0.0
    %2108 = vmatpush2.msra.mxu0 0.0
    %2109 = vmatprep.subr.mxu0 0.0
    %2110 = vmatpush2.msra.mxu0 0.0
    %2111 = vmatprep.subr.mxu0 0.0
    %2112 = vmatpush2.msra.mxu0 0.0
    %2113 = vmatprep.subr.mxu0 0.0
    %2114 = vmatpush2.msra.mxu0 0.0
    %2115 = vmatprep.subr.mxu0 0.0
    %2116 = vmatpush2.msra.mxu0 0.0
    %2117 = vmatprep.subr.mxu0 0.0
    %2118 = vmatpush2.msra.mxu0 0.0
    %2119 = vmatprep.subr.mxu0 0.0
    %2120 = vmatpush2.msra.mxu0 0.0
    %2121 = vmatprep.subr.mxu0 0.0
    %2122 = vmatpush2.msra.mxu0 0.0
    %2123 = vmatprep.mubr.f32.mxu0 0.0
    %2124 = vmatmul.mubr.f32.gmra.mxu0 %v1789
    %v2125 = vpop.f32.mrf.mxu0
    %v2126 = vadd.f32 0.0, %v2125
    %v2127 = vpop.f32.mrf.mxu0
    %2128 = vdwg.mxu0
    %v2129 = vadd.f32 %v906, %v2126
    %v2130 = vmul.f32 %v2129, 0.5
    %v2131 = vsel %vm917, %v2129, %v2130
    %v2132 = vtanh.pop %v2131
    %v2133 = vmul.f32 %v2132, 0.5
    %v2134 = vadd.f32 %v2133, 0.5
    %v2135 = vsel %vm917, %v2132, %v2134
    %v2136 = vmul.f32 %v2135, %v1768
    %2138 = vrot.lane.b32.xlu0 %v2135, 64
    %v2139 = vpop.permute.xlu0 %2138
    %v2141 = vmul.f32 %v2135, %v2139
    %2143 = vrot.lane.b32.xlu0 %v2141, 32
    %v2144 = vpop.permute.xlu0 %2143
    %v2146 = vadd.f32 %v2136, %v2144
    %v2147 = vtanh.pop %v2146
    %2149 = vrot.lane.b32.xlu0 %v2147, 64
    %v2150 = vpop.permute.xlu0 %2149
    %v2152 = vmul.f32 %v2135, %v2150
    %v2153 = vld [vmem:[%s17] sm:$0xff]
    %v2154 = vld [vmem:[%s17 + $0x8] sm:$0xff]
    %v2155 = vld [vmem:[%s17 + $0x10] sm:$0xff]
    %v2156 = vld [vmem:[%s17 + $0x18] sm:$0xff]
    %v2157 = vld [vmem:[#allocation19] sm:$0x1]
    %v2159 = vlaneseq
    %v2160 = vshrl.u32 %v2159, 7
    %v2161 = vsub.s32 0, %v2160
    %v2162 = vrot.slane %v2157, %v2161
    %2165 = vrot.lane.b32.xlu0 %v2152, 32
    %v2166 = vpop.permute.xlu0 %2165
    %v2167 = vsel %vm388, %v2166, 0
    %2169 = vmatprep.subr.mxu0 0.0
    %2170 = vmatpush1.msra.mxu0 0.0
    %2171 = vmatprep.subr.mxu0 0.0
    %2172 = vmatpush1.msra.mxu0 0.0
    %2173 = vmatprep.subr.mxu0 0.0
    %2174 = vmatpush1.msra.mxu0 0.0
    %2175 = vmatprep.subr.mxu0 0.0
    %2176 = vmatpush1.msra.mxu0 0.0
    %2177 = vmatprep.subr.mxu0 0.0
    %2178 = vmatpush1.msra.mxu0 0.0
    %2179 = vmatprep.subr.mxu0 0.0
    %2180 = vmatpush1.msra.mxu0 0.0
    %2181 = vmatprep.subr.mxu0 0.0
    %2182 = vmatpush1.msra.mxu0 0.0
    %2183 = vmatprep.subr.mxu0 0.0
    %2184 = vmatpush1.msra.mxu0 0.0
    %2185 = vmatprep.subr.mxu0 0.0
    %2186 = vmatpush1.msra.mxu0 0.0
    %2187 = vmatprep.subr.mxu0 0.0
    %2188 = vmatpush1.msra.mxu0 0.0
    %2189 = vmatprep.subr.mxu0 0.0
    %2190 = vmatpush1.msra.mxu0 0.0
    %2191 = vmatprep.subr.mxu0 0.0
    %2192 = vmatpush1.msra.mxu0 0.0
    %2193 = vmatprep.subr.mxu0 0.0
    %2194 = vmatpush1.msra.mxu0 %v2156
    %2195 = vmatprep.subr.mxu0 0.0
    %2196 = vmatpush1.msra.mxu0 %v2155
    %2197 = vmatprep.subr.mxu0 0.0
    %2198 = vmatpush1.msra.mxu0 %v2154
    %2199 = vmatprep.subr.mxu0 0.0
    %2200 = vmatpush1.msra.mxu0 %v2153
    %2201 = vmatprep.subr.mxu0 0.0
    %2202 = vmatpush2.msra.mxu0 0.0
    %2203 = vmatprep.subr.mxu0 0.0
    %2204 = vmatpush2.msra.mxu0 0.0
    %2205 = vmatprep.subr.mxu0 0.0
    %2206 = vmatpush2.msra.mxu0 0.0
    %2207 = vmatprep.subr.mxu0 0.0
    %2208 = vmatpush2.msra.mxu0 0.0
    %2209 = vmatprep.subr.mxu0 0.0
    %2210 = vmatpush2.msra.mxu0 0.0
    %2211 = vmatprep.subr.mxu0 0.0
    %2212 = vmatpush2.msra.mxu0 0.0
    %2213 = vmatprep.subr.mxu0 0.0
    %2214 = vmatpush2.msra.mxu0 0.0
    %2215 = vmatprep.subr.mxu0 0.0
    %2216 = vmatpush2.msra.mxu0 0.0
    %2217 = vmatprep.subr.mxu0 0.0
    %2218 = vmatpush2.msra.mxu0 0.0
    %2219 = vmatprep.subr.mxu0 0.0
    %2220 = vmatpush2.msra.mxu0 0.0
    %2221 = vmatprep.subr.mxu0 0.0
    %2222 = vmatpush2.msra.mxu0 0.0
    %2223 = vmatprep.subr.mxu0 0.0
    %2224 = vmatpush2.msra.mxu0 0.0
    %2225 = vmatprep.subr.mxu0 0.0
    %2226 = vmatpush2.msra.mxu0 0.0
    %2227 = vmatprep.subr.mxu0 0.0
    %2228 = vmatpush2.msra.mxu0 0.0
    %2229 = vmatprep.subr.mxu0 0.0
    %2230 = vmatpush2.msra.mxu0 0.0
    %2231 = vmatprep.subr.mxu0 0.0
    %2232 = vmatpush2.msra.mxu0 0.0
    %2233 = vmatprep.mubr.f32.mxu0 0.0
    %2234 = vmatmul.mubr.f32.gmra.mxu0 %v2167
    %v2235 = vpop.f32.mrf.mxu0
    %v2236 = vadd.f32 %v2162, %v2235
    %v2237 = vpop.f32.mrf.mxu0
    %2238 = vdwg.mxu0
    %v2239 = vmax.f32 %v2236, 0.0
    %v2240 = vld [vmem:[#allocation21] sm:$0xff]
    %v2241 = vld [vmem:[#allocation21 + $0x8] sm:$0xff]
    %v2242 = vld [vmem:[#allocation21 + $0x10] sm:$0xff]
    %v2243 = vld [vmem:[#allocation22] sm:$0x1]
    %v2245 = vlaneseq
    %v2246 = vshrl.u32 %v2245, 7
    %v2247 = vsub.s32 0, %v2246
    %v2248 = vrot.slane %v2243, %v2247
    %v2251 = vsel %vm748, %v2239, 0
    %2253 = vmatprep.subr.mxu0 0.0
    %2254 = vmatpush1.msra.mxu0 0.0
    %2255 = vmatprep.subr.mxu0 0.0
    %2256 = vmatpush1.msra.mxu0 0.0
    %2257 = vmatprep.subr.mxu0 0.0
    %2258 = vmatpush1.msra.mxu0 0.0
    %2259 = vmatprep.subr.mxu0 0.0
    %2260 = vmatpush1.msra.mxu0 0.0
    %2261 = vmatprep.subr.mxu0 0.0
    %2262 = vmatpush1.msra.mxu0 0.0
    %2263 = vmatprep.subr.mxu0 0.0
    %2264 = vmatpush1.msra.mxu0 0.0
    %2265 = vmatprep.subr.mxu0 0.0
    %2266 = vmatpush1.msra.mxu0 0.0
    %2267 = vmatprep.subr.mxu0 0.0
    %2268 = vmatpush1.msra.mxu0 0.0
    %2269 = vmatprep.subr.mxu0 0.0
    %2270 = vmatpush1.msra.mxu0 0.0
    %2271 = vmatprep.subr.mxu0 0.0
    %2272 = vmatpush1.msra.mxu0 0.0
    %2273 = vmatprep.subr.mxu0 0.0
    %2274 = vmatpush1.msra.mxu0 0.0
    %2275 = vmatprep.subr.mxu0 0.0
    %2276 = vmatpush1.msra.mxu0 0.0
    %2277 = vmatprep.subr.mxu0 0.0
    %2278 = vmatpush1.msra.mxu0 0.0
    %2279 = vmatprep.subr.mxu0 0.0
    %2280 = vmatpush1.msra.mxu0 %v2242
    %2281 = vmatprep.subr.mxu0 0.0
    %2282 = vmatpush1.msra.mxu0 %v2241
    %2283 = vmatprep.subr.mxu0 0.0
    %2284 = vmatpush1.msra.mxu0 %v2240
    %2285 = vmatprep.subr.mxu0 0.0
    %2286 = vmatpush2.msra.mxu0 0.0
    %2287 = vmatprep.subr.mxu0 0.0
    %2288 = vmatpush2.msra.mxu0 0.0
    %2289 = vmatprep.subr.mxu0 0.0
    %2290 = vmatpush2.msra.mxu0 0.0
    %2291 = vmatprep.subr.mxu0 0.0
    %2292 = vmatpush2.msra.mxu0 0.0
    %2293 = vmatprep.subr.mxu0 0.0
    %2294 = vmatpush2.msra.mxu0 0.0
    %2295 = vmatprep.subr.mxu0 0.0
    %2296 = vmatpush2.msra.mxu0 0.0
    %2297 = vmatprep.subr.mxu0 0.0
    %2298 = vmatpush2.msra.mxu0 0.0
    %2299 = vmatprep.subr.mxu0 0.0
    %2300 = vmatpush2.msra.mxu0 0.0
    %2301 = vmatprep.subr.mxu0 0.0
    %2302 = vmatpush2.msra.mxu0 0.0
    %2303 = vmatprep.subr.mxu0 0.0
    %2304 = vmatpush2.msra.mxu0 0.0
    %2305 = vmatprep.subr.mxu0 0.0
    %2306 = vmatpush2.msra.mxu0 0.0
    %2307 = vmatprep.subr.mxu0 0.0
    %2308 = vmatpush2.msra.mxu0 0.0
    %2309 = vmatprep.subr.mxu0 0.0
    %2310 = vmatpush2.msra.mxu0 0.0
    %2311 = vmatprep.subr.mxu0 0.0
    %2312 = vmatpush2.msra.mxu0 0.0
    %2313 = vmatprep.subr.mxu0 0.0
    %2314 = vmatpush2.msra.mxu0 0.0
    %2315 = vmatprep.subr.mxu0 0.0
    %2316 = vmatpush2.msra.mxu0 0.0
    %2317 = vmatprep.mubr.f32.mxu0 0.0
    %2318 = vmatmul.mubr.f32.gmra.mxu0 %v2251
    %v2319 = vpop.f32.mrf.mxu0
    %v2320 = vadd.f32 %v2248, %v2319
    %v2321 = vpop.f32.mrf.mxu0
    %2322 = vdwg.mxu0
    %v2323 = vmax.f32 %v2320, 0.0
    %v2324 = vld [vmem:[%s21] sm:$0xff]
    %v2325 = vld [vmem:[%s21 + $0x8] sm:$0xff]
    %v2326 = vld [vmem:[%s21 + $0x10] sm:$0xff]
    %v2327 = vld [vmem:[%s21 + $0x18] sm:$0xff]
    %v2328 = vld [vmem:[%s21 + $0x20] sm:$0xff]
    %v2329 = vld [vmem:[%s21 + $0x28] sm:$0xff]
    %v2330 = vld [vmem:[#allocation24] sm:$0x1]
    %v2332 = vlaneseq
    %v2333 = vshrl.u32 %v2332, 7
    %v2334 = vsub.s32 0, %v2333
    %v2335 = vrot.slane %v2330, %v2334
    %v2338 = vsel %vm663, %v2323, 0
    %2340 = vmatprep.subr.mxu0 0.0
    %2341 = vmatpush1.msra.mxu0 0.0
    %2342 = vmatprep.subr.mxu0 0.0
    %2343 = vmatpush1.msra.mxu0 0.0
    %2344 = vmatprep.subr.mxu0 0.0
    %2345 = vmatpush1.msra.mxu0 0.0
    %2346 = vmatprep.subr.mxu0 0.0
    %2347 = vmatpush1.msra.mxu0 0.0
    %2348 = vmatprep.subr.mxu0 0.0
    %2349 = vmatpush1.msra.mxu0 0.0
    %2350 = vmatprep.subr.mxu0 0.0
    %2351 = vmatpush1.msra.mxu0 0.0
    %2352 = vmatprep.subr.mxu0 0.0
    %2353 = vmatpush1.msra.mxu0 0.0
    %2354 = vmatprep.subr.mxu0 0.0
    %2355 = vmatpush1.msra.mxu0 0.0
    %2356 = vmatprep.subr.mxu0 0.0
    %2357 = vmatpush1.msra.mxu0 0.0
    %2358 = vmatprep.subr.mxu0 0.0
    %2359 = vmatpush1.msra.mxu0 0.0
    %2360 = vmatprep.subr.mxu0 0.0
    %2361 = vmatpush1.msra.mxu0 %v2329
    %2362 = vmatprep.subr.mxu0 0.0
    %2363 = vmatpush1.msra.mxu0 %v2328
    %2364 = vmatprep.subr.mxu0 0.0
    %2365 = vmatpush1.msra.mxu0 %v2327
    %2366 = vmatprep.subr.mxu0 0.0
    %2367 = vmatpush1.msra.mxu0 %v2326
    %2368 = vmatprep.subr.mxu0 0.0
    %2369 = vmatpush1.msra.mxu0 %v2325
    %2370 = vmatprep.subr.mxu0 0.0
    %2371 = vmatpush1.msra.mxu0 %v2324
    %2372 = vmatprep.subr.mxu0 0.0
    %2373 = vmatpush2.msra.mxu0 0.0
    %2374 = vmatprep.subr.mxu0 0.0
    %2375 = vmatpush2.msra.mxu0 0.0
    %2376 = vmatprep.subr.mxu0 0.0
    %2377 = vmatpush2.msra.mxu0 0.0
    %2378 = vmatprep.subr.mxu0 0.0
    %2379 = vmatpush2.msra.mxu0 0.0
    %2380 = vmatprep.subr.mxu0 0.0
    %2381 = vmatpush2.msra.mxu0 0.0
    %2382 = vmatprep.subr.mxu0 0.0
    %2383 = vmatpush2.msra.mxu0 0.0
    %2384 = vmatprep.subr.mxu0 0.0
    %2385 = vmatpush2.msra.mxu0 0.0
    %2386 = vmatprep.subr.mxu0 0.0
    %2387 = vmatpush2.msra.mxu0 0.0
    %2388 = vmatprep.subr.mxu0 0.0
    %2389 = vmatpush2.msra.mxu0 0.0
    %2390 = vmatprep.subr.mxu0 0.0
    %2391 = vmatpush2.msra.mxu0 0.0
    %2392 = vmatprep.subr.mxu0 0.0
    %2393 = vmatpush2.msra.mxu0 0.0
    %2394 = vmatprep.subr.mxu0 0.0
    %2395 = vmatpush2.msra.mxu0 0.0
    %2396 = vmatprep.subr.mxu0 0.0
    %2397 = vmatpush2.msra.mxu0 0.0
    %2398 = vmatprep.subr.mxu0 0.0
    %2399 = vmatpush2.msra.mxu0 0.0
    %2400 = vmatprep.subr.mxu0 0.0
    %2401 = vmatpush2.msra.mxu0 0.0
    %2402 = vmatprep.subr.mxu0 0.0
    %2403 = vmatpush2.msra.mxu0 0.0
    %2404 = vmatprep.mubr.f32.mxu0 0.0
    %2405 = vmatmul.mubr.f32.gmra.mxu0 %v2338
    %v2406 = vpop.f32.mrf.mxu0
    %v2407 = vadd.f32 %v2335, %v2406
    %v2408 = vpop.f32.mrf.mxu0
    %2409 = vdwg.mxu0
    %v2412 = vunpack.c.l.s4 1966171168
    %v2413 = vunpack.c.0.s8 %v2412
    %v2414 = vlaneseq
    %v2415 = vshrl.u32 %v2414, 7
    %v2416 = vsub.s32 %v2413, %v2415
    %v2417 = vrot.slane %v2407, %v2416
    %v2418 = vcombine.high %v2417, %v2417
    %v2420 = vunpack.c.l.s4 1966171168
    %v2421 = vunpack.c.0.s8 %v2420
    %v2422 = vlaneseq
    %v2423 = vshrl.u32 %v2422, 7
    %v2424 = vsub.s32 %v2421, %v2423
    %v2425 = vrot.slane %v2417, %v2424
    %v2427 = vunpack.c.l.s4 1966171168
    %v2428 = vunpack.c.0.s8 %v2427
    %v2429 = vlaneseq
    %v2430 = vshrl.u32 %v2429, 7
    %v2431 = vsub.s32 %v2428, %v2430
    %v2432 = vrot.slane %v2418, %v2431
    %2435 = vst.msk [vmem:[%s23 + $0x3] sm:$0x1] %vm1300, %v2425
    %2436 = vst.msk [vmem:[%s23 + $0xb] sm:$0x1] %vm1300, %v2432
    %2437 = vmatprep.subr.mxu0 0.0
    %2438 = vmatpush1.msra.mxu0 0.0
    %2439 = vmatprep.subr.mxu0 0.0
    %2440 = vmatpush1.msra.mxu0 0.0
    %2441 = vmatprep.subr.mxu0 0.0
    %2442 = vmatpush1.msra.mxu0 0.0
    %2443 = vmatprep.subr.mxu0 0.0
    %2444 = vmatpush1.msra.mxu0 0.0
    %2445 = vmatprep.subr.mxu0 0.0
    %2446 = vmatpush1.msra.mxu0 0.0
    %2447 = vmatprep.subr.mxu0 0.0
    %2448 = vmatpush1.msra.mxu0 0.0
    %2449 = vmatprep.subr.mxu0 0.0
    %2450 = vmatpush1.msra.mxu0 0.0
    %2451 = vmatprep.subr.mxu0 0.0
    %2452 = vmatpush1.msra.mxu0 0.0
    %2453 = vmatprep.subr.mxu0 0.0
    %2454 = vmatpush1.msra.mxu0 0.0
    %2455 = vmatprep.subr.mxu0 0.0
    %2456 = vmatpush1.msra.mxu0 0.0
    %2457 = vmatprep.subr.mxu0 0.0
    %2458 = vmatpush1.msra.mxu0 0.0
    %2459 = vmatprep.subr.mxu0 0.0
    %2460 = vmatpush1.msra.mxu0 0.0
    %2461 = vmatprep.subr.mxu0 0.0
    %2462 = vmatpush1.msra.mxu0 %v912
    %2463 = vmatprep.subr.mxu0 0.0
    %2464 = vmatpush1.msra.mxu0 %v911
    %2465 = vmatprep.subr.mxu0 0.0
    %2466 = vmatpush1.msra.mxu0 %v910
    %2467 = vmatprep.subr.mxu0 0.0
    %2468 = vmatpush1.msra.mxu0 %v909
    %2469 = vmatprep.subr.mxu0 0.0
    %2470 = vmatpush2.msra.mxu0 0.0
    %2471 = vmatprep.subr.mxu0 0.0
    %2472 = vmatpush2.msra.mxu0 0.0
    %2473 = vmatprep.subr.mxu0 0.0
    %2474 = vmatpush2.msra.mxu0 0.0
    %2475 = vmatprep.subr.mxu0 0.0
    %2476 = vmatpush2.msra.mxu0 0.0
    %2477 = vmatprep.subr.mxu0 0.0
    %2478 = vmatpush2.msra.mxu0 0.0
    %2479 = vmatprep.subr.mxu0 0.0
    %2480 = vmatpush2.msra.mxu0 0.0
    %2481 = vmatprep.subr.mxu0 0.0
    %2482 = vmatpush2.msra.mxu0 0.0
    %2483 = vmatprep.subr.mxu0 0.0
    %2484 = vmatpush2.msra.mxu0 0.0
    %2485 = vmatprep.subr.mxu0 0.0
    %2486 = vmatpush2.msra.mxu0 0.0
    %2487 = vmatprep.subr.mxu0 0.0
    %2488 = vmatpush2.msra.mxu0 0.0
    %2489 = vmatprep.subr.mxu0 0.0
    %2490 = vmatpush2.msra.mxu0 0.0
    %2491 = vmatprep.subr.mxu0 0.0
    %2492 = vmatpush2.msra.mxu0 0.0
    %2493 = vmatprep.subr.mxu0 0.0
    %2494 = vmatpush2.msra.mxu0 0.0
    %2495 = vmatprep.subr.mxu0 0.0
    %2496 = vmatpush2.msra.mxu0 0.0
    %2497 = vmatprep.subr.mxu0 0.0
    %2498 = vmatpush2.msra.mxu0 0.0
    %2499 = vmatprep.subr.mxu0 0.0
    %2500 = vmatpush2.msra.mxu0 0.0
    %2501 = vmatprep.mubr.f32.mxu0 0.0
    %2502 = vmatmul.mubr.f32.gmra.mxu0 %v2167
    %v2503 = vpop.f32.mrf.mxu0
    %v2504 = vadd.f32 0.0, %v2503
    %v2505 = vpop.f32.mrf.mxu0
    %2506 = vdwg.mxu0
    %v2507 = vadd.f32 %v906, %v2504
    %v2508 = vmul.f32 %v2507, 0.5
    %v2509 = vsel %vm917, %v2507, %v2508
    %v2510 = vtanh.pop %v2509
    %v2511 = vmul.f32 %v2510, 0.5
    %v2512 = vadd.f32 %v2511, 0.5
    %v2513 = vsel %vm917, %v2510, %v2512
    %v2514 = vmul.f32 %v2513, %v2146
    %2516 = vrot.lane.b32.xlu0 %v2513, 64
    %v2517 = vpop.permute.xlu0 %2516
    %v2519 = vmul.f32 %v2513, %v2517
    %2521 = vrot.lane.b32.xlu0 %v2519, 32
    %v2522 = vpop.permute.xlu0 %2521
    %v2524 = vadd.f32 %v2514, %v2522
    %v2525 = vtanh.pop %v2524
    %2527 = vrot.lane.b32.xlu0 %v2525, 64
    %v2528 = vpop.permute.xlu0 %2527
    %v2530 = vmul.f32 %v2513, %v2528
    %v2531 = vld [vmem:[%s17] sm:$0xff]
    %v2532 = vld [vmem:[%s17 + $0x8] sm:$0xff]
    %v2533 = vld [vmem:[%s17 + $0x10] sm:$0xff]
    %v2534 = vld [vmem:[%s17 + $0x18] sm:$0xff]
    %v2535 = vld [vmem:[#allocation19] sm:$0x1]
    %v2537 = vlaneseq
    %v2538 = vshrl.u32 %v2537, 7
    %v2539 = vsub.s32 0, %v2538
    %v2540 = vrot.slane %v2535, %v2539
    %2543 = vrot.lane.b32.xlu0 %v2530, 32
    %v2544 = vpop.permute.xlu0 %2543
    %v2545 = vsel %vm388, %v2544, 0
    %2547 = vmatprep.subr.mxu0 0.0
    %2548 = vmatpush1.msra.mxu0 0.0
    %2549 = vmatprep.subr.mxu0 0.0
    %2550 = vmatpush1.msra.mxu0 0.0
    %2551 = vmatprep.subr.mxu0 0.0
    %2552 = vmatpush1.msra.mxu0 0.0
    %2553 = vmatprep.subr.mxu0 0.0
    %2554 = vmatpush1.msra.mxu0 0.0
    %2555 = vmatprep.subr.mxu0 0.0
    %2556 = vmatpush1.msra.mxu0 0.0
    %2557 = vmatprep.subr.mxu0 0.0
    %2558 = vmatpush1.msra.mxu0 0.0
    %2559 = vmatprep.subr.mxu0 0.0
    %2560 = vmatpush1.msra.mxu0 0.0
    %2561 = vmatprep.subr.mxu0 0.0
    %2562 = vmatpush1.msra.mxu0 0.0
    %2563 = vmatprep.subr.mxu0 0.0
    %2564 = vmatpush1.msra.mxu0 0.0
    %2565 = vmatprep.subr.mxu0 0.0
    %2566 = vmatpush1.msra.mxu0 0.0
    %2567 = vmatprep.subr.mxu0 0.0
    %2568 = vmatpush1.msra.mxu0 0.0
    %2569 = vmatprep.subr.mxu0 0.0
    %2570 = vmatpush1.msra.mxu0 0.0
    %2571 = vmatprep.subr.mxu0 0.0
    %2572 = vmatpush1.msra.mxu0 %v2534
    %2573 = vmatprep.subr.mxu0 0.0
    %2574 = vmatpush1.msra.mxu0 %v2533
    %2575 = vmatprep.subr.mxu0 0.0
    %2576 = vmatpush1.msra.mxu0 %v2532
    %2577 = vmatprep.subr.mxu0 0.0
    %2578 = vmatpush1.msra.mxu0 %v2531
    %2579 = vmatprep.subr.mxu0 0.0
    %2580 = vmatpush2.msra.mxu0 0.0
    %2581 = vmatprep.subr.mxu0 0.0
    %2582 = vmatpush2.msra.mxu0 0.0
    %2583 = vmatprep.subr.mxu0 0.0
    %2584 = vmatpush2.msra.mxu0 0.0
    %2585 = vmatprep.subr.mxu0 0.0
    %2586 = vmatpush2.msra.mxu0 0.0
    %2587 = vmatprep.subr.mxu0 0.0
    %2588 = vmatpush2.msra.mxu0 0.0
    %2589 = vmatprep.subr.mxu0 0.0
    %2590 = vmatpush2.msra.mxu0 0.0
    %2591 = vmatprep.subr.mxu0 0.0
    %2592 = vmatpush2.msra.mxu0 0.0
    %2593 = vmatprep.subr.mxu0 0.0
    %2594 = vmatpush2.msra.mxu0 0.0
    %2595 = vmatprep.subr.mxu0 0.0
    %2596 = vmatpush2.msra.mxu0 0.0
    %2597 = vmatprep.subr.mxu0 0.0
    %2598 = vmatpush2.msra.mxu0 0.0
    %2599 = vmatprep.subr.mxu0 0.0
    %2600 = vmatpush2.msra.mxu0 0.0
    %2601 = vmatprep.subr.mxu0 0.0
    %2602 = vmatpush2.msra.mxu0 0.0
    %2603 = vmatprep.subr.mxu0 0.0
    %2604 = vmatpush2.msra.mxu0 0.0
    %2605 = vmatprep.subr.mxu0 0.0
    %2606 = vmatpush2.msra.mxu0 0.0
    %2607 = vmatprep.subr.mxu0 0.0
    %2608 = vmatpush2.msra.mxu0 0.0
    %2609 = vmatprep.subr.mxu0 0.0
    %2610 = vmatpush2.msra.mxu0 0.0
    %2611 = vmatprep.mubr.f32.mxu0 0.0
    %2612 = vmatmul.mubr.f32.gmra.mxu0 %v2545
    %v2613 = vpop.f32.mrf.mxu0
    %v2614 = vadd.f32 %v2540, %v2613
    %v2615 = vpop.f32.mrf.mxu0
    %2616 = vdwg.mxu0
    %v2617 = vmax.f32 %v2614, 0.0
    %v2618 = vld [vmem:[#allocation21] sm:$0xff]
    %v2619 = vld [vmem:[#allocation21 + $0x8] sm:$0xff]
    %v2620 = vld [vmem:[#allocation21 + $0x10] sm:$0xff]
    %v2621 = vld [vmem:[#allocation22] sm:$0x1]
    %v2623 = vlaneseq
    %v2624 = vshrl.u32 %v2623, 7
    %v2625 = vsub.s32 0, %v2624
    %v2626 = vrot.slane %v2621, %v2625
    %v2629 = vsel %vm748, %v2617, 0
    %2631 = vmatprep.subr.mxu0 0.0
    %2632 = vmatpush1.msra.mxu0 0.0
    %2633 = vmatprep.subr.mxu0 0.0
    %2634 = vmatpush1.msra.mxu0 0.0
    %2635 = vmatprep.subr.mxu0 0.0
    %2636 = vmatpush1.msra.mxu0 0.0
    %2637 = vmatprep.subr.mxu0 0.0
    %2638 = vmatpush1.msra.mxu0 0.0
    %2639 = vmatprep.subr.mxu0 0.0
    %2640 = vmatpush1.msra.mxu0 0.0
    %2641 = vmatprep.subr.mxu0 0.0
    %2642 = vmatpush1.msra.mxu0 0.0
    %2643 = vmatprep.subr.mxu0 0.0
    %2644 = vmatpush1.msra.mxu0 0.0
    %2645 = vmatprep.subr.mxu0 0.0
    %2646 = vmatpush1.msra.mxu0 0.0
    %2647 = vmatprep.subr.mxu0 0.0
    %2648 = vmatpush1.msra.mxu0 0.0
    %2649 = vmatprep.subr.mxu0 0.0
    %2650 = vmatpush1.msra.mxu0 0.0
    %2651 = vmatprep.subr.mxu0 0.0
    %2652 = vmatpush1.msra.mxu0 0.0
    %2653 = vmatprep.subr.mxu0 0.0
    %2654 = vmatpush1.msra.mxu0 0.0
    %2655 = vmatprep.subr.mxu0 0.0
    %2656 = vmatpush1.msra.mxu0 0.0
    %2657 = vmatprep.subr.mxu0 0.0
    %2658 = vmatpush1.msra.mxu0 %v2620
    %2659 = vmatprep.subr.mxu0 0.0
    %2660 = vmatpush1.msra.mxu0 %v2619
    %2661 = vmatprep.subr.mxu0 0.0
    %2662 = vmatpush1.msra.mxu0 %v2618
    %2663 = vmatprep.subr.mxu0 0.0
    %2664 = vmatpush2.msra.mxu0 0.0
    %2665 = vmatprep.subr.mxu0 0.0
    %2666 = vmatpush2.msra.mxu0 0.0
    %2667 = vmatprep.subr.mxu0 0.0
    %2668 = vmatpush2.msra.mxu0 0.0
    %2669 = vmatprep.subr.mxu0 0.0
    %2670 = vmatpush2.msra.mxu0 0.0
    %2671 = vmatprep.subr.mxu0 0.0
    %2672 = vmatpush2.msra.mxu0 0.0
    %2673 = vmatprep.subr.mxu0 0.0
    %2674 = vmatpush2.msra.mxu0 0.0
    %2675 = vmatprep.subr.mxu0 0.0
    %2676 = vmatpush2.msra.mxu0 0.0
    %2677 = vmatprep.subr.mxu0 0.0
    %2678 = vmatpush2.msra.mxu0 0.0
    %2679 = vmatprep.subr.mxu0 0.0
    %2680 = vmatpush2.msra.mxu0 0.0
    %2681 = vmatprep.subr.mxu0 0.0
    %2682 = vmatpush2.msra.mxu0 0.0
    %2683 = vmatprep.subr.mxu0 0.0
    %2684 = vmatpush2.msra.mxu0 0.0
    %2685 = vmatprep.subr.mxu0 0.0
    %2686 = vmatpush2.msra.mxu0 0.0
    %2687 = vmatprep.subr.mxu0 0.0
    %2688 = vmatpush2.msra.mxu0 0.0
    %2689 = vmatprep.subr.mxu0 0.0
    %2690 = vmatpush2.msra.mxu0 0.0
    %2691 = vmatprep.subr.mxu0 0.0
    %2692 = vmatpush2.msra.mxu0 0.0
    %2693 = vmatprep.subr.mxu0 0.0
    %2694 = vmatpush2.msra.mxu0 0.0
    %2695 = vmatprep.mubr.f32.mxu0 0.0
    %2696 = vmatmul.mubr.f32.gmra.mxu0 %v2629
    %v2697 = vpop.f32.mrf.mxu0
    %v2698 = vadd.f32 %v2626, %v2697
    %v2699 = vpop.f32.mrf.mxu0
    %2700 = vdwg.mxu0
    %v2701 = vmax.f32 %v2698, 0.0
    %v2702 = vld [vmem:[%s21] sm:$0xff]
    %v2703 = vld [vmem:[%s21 + $0x8] sm:$0xff]
    %v2704 = vld [vmem:[%s21 + $0x10] sm:$0xff]
    %v2705 = vld [vmem:[%s21 + $0x18] sm:$0xff]
    %v2706 = vld [vmem:[%s21 + $0x20] sm:$0xff]
    %v2707 = vld [vmem:[%s21 + $0x28] sm:$0xff]
    %v2708 = vld [vmem:[#allocation24] sm:$0x1]
    %v2710 = vlaneseq
    %v2711 = vshrl.u32 %v2710, 7
    %v2712 = vsub.s32 0, %v2711
    %v2713 = vrot.slane %v2708, %v2712
    %v2716 = vsel %vm663, %v2701, 0
    %2718 = vmatprep.subr.mxu0 0.0
    %2719 = vmatpush1.msra.mxu0 0.0
    %2720 = vmatprep.subr.mxu0 0.0
    %2721 = vmatpush1.msra.mxu0 0.0
    %2722 = vmatprep.subr.mxu0 0.0
    %2723 = vmatpush1.msra.mxu0 0.0
    %2724 = vmatprep.subr.mxu0 0.0
    %2725 = vmatpush1.msra.mxu0 0.0
    %2726 = vmatprep.subr.mxu0 0.0
    %2727 = vmatpush1.msra.mxu0 0.0
    %2728 = vmatprep.subr.mxu0 0.0
    %2729 = vmatpush1.msra.mxu0 0.0
    %2730 = vmatprep.subr.mxu0 0.0
    %2731 = vmatpush1.msra.mxu0 0.0
    %2732 = vmatprep.subr.mxu0 0.0
    %2733 = vmatpush1.msra.mxu0 0.0
    %2734 = vmatprep.subr.mxu0 0.0
    %2735 = vmatpush1.msra.mxu0 0.0
    %2736 = vmatprep.subr.mxu0 0.0
    %2737 = vmatpush1.msra.mxu0 0.0
    %2738 = vmatprep.subr.mxu0 0.0
    %2739 = vmatpush1.msra.mxu0 %v2707
    %2740 = vmatprep.subr.mxu0 0.0
    %2741 = vmatpush1.msra.mxu0 %v2706
    %2742 = vmatprep.subr.mxu0 0.0
    %2743 = vmatpush1.msra.mxu0 %v2705
    %2744 = vmatprep.subr.mxu0 0.0
    %2745 = vmatpush1.msra.mxu0 %v2704
    %2746 = vmatprep.subr.mxu0 0.0
    %2747 = vmatpush1.msra.mxu0 %v2703
    %2748 = vmatprep.subr.mxu0 0.0
    %2749 = vmatpush1.msra.mxu0 %v2702
    %2750 = vmatprep.subr.mxu0 0.0
    %2751 = vmatpush2.msra.mxu0 0.0
    %2752 = vmatprep.subr.mxu0 0.0
    %2753 = vmatpush2.msra.mxu0 0.0
    %2754 = vmatprep.subr.mxu0 0.0
    %2755 = vmatpush2.msra.mxu0 0.0
    %2756 = vmatprep.subr.mxu0 0.0
    %2757 = vmatpush2.msra.mxu0 0.0
    %2758 = vmatprep.subr.mxu0 0.0
    %2759 = vmatpush2.msra.mxu0 0.0
    %2760 = vmatprep.subr.mxu0 0.0
    %2761 = vmatpush2.msra.mxu0 0.0
    %2762 = vmatprep.subr.mxu0 0.0
    %2763 = vmatpush2.msra.mxu0 0.0
    %2764 = vmatprep.subr.mxu0 0.0
    %2765 = vmatpush2.msra.mxu0 0.0
    %2766 = vmatprep.subr.mxu0 0.0
    %2767 = vmatpush2.msra.mxu0 0.0
    %2768 = vmatprep.subr.mxu0 0.0
    %2769 = vmatpush2.msra.mxu0 0.0
    %2770 = vmatprep.subr.mxu0 0.0
    %2771 = vmatpush2.msra.mxu0 0.0
    %2772 = vmatprep.subr.mxu0 0.0
    %2773 = vmatpush2.msra.mxu0 0.0
    %2774 = vmatprep.subr.mxu0 0.0
    %2775 = vmatpush2.msra.mxu0 0.0
    %2776 = vmatprep.subr.mxu0 0.0
    %2777 = vmatpush2.msra.mxu0 0.0
    %2778 = vmatprep.subr.mxu0 0.0
    %2779 = vmatpush2.msra.mxu0 0.0
    %2780 = vmatprep.subr.mxu0 0.0
    %2781 = vmatpush2.msra.mxu0 0.0
    %2782 = vmatprep.mubr.f32.mxu0 0.0
    %2783 = vmatmul.mubr.f32.gmra.mxu0 %v2716
    %v2784 = vpop.f32.mrf.mxu0
    %v2785 = vadd.f32 %v2713, %v2784
    %v2786 = vpop.f32.mrf.mxu0
    %2787 = vdwg.mxu0
    %v2790 = vunpack.c.l.s4 1966171168
    %v2791 = vunpack.c.0.s8 %v2790
    %v2792 = vlaneseq
    %v2793 = vshrl.u32 %v2792, 7
    %v2794 = vsub.s32 %v2791, %v2793
    %v2795 = vrot.slane %v2785, %v2794
    %v2796 = vcombine.high %v2795, %v2795
    %v2798 = vunpack.c.l.s4 1966171168
    %v2799 = vunpack.c.0.s8 %v2798
    %v2800 = vlaneseq
    %v2801 = vshrl.u32 %v2800, 7
    %v2802 = vsub.s32 %v2799, %v2801
    %v2803 = vrot.slane %v2795, %v2802
    %v2805 = vunpack.c.l.s4 1966171168
    %v2806 = vunpack.c.0.s8 %v2805
    %v2807 = vlaneseq
    %v2808 = vshrl.u32 %v2807, 7
    %v2809 = vsub.s32 %v2806, %v2808
    %v2810 = vrot.slane %v2796, %v2809
    %2813 = vst.msk [vmem:[%s23 + $0x4] sm:$0x1] %vm1300, %v2803
    %2814 = vst.msk [vmem:[%s23 + $0xc] sm:$0x1] %vm1300, %v2810
    %2815 = vmatprep.subr.mxu0 0.0
    %2816 = vmatpush1.msra.mxu0 0.0
    %2817 = vmatprep.subr.mxu0 0.0
    %2818 = vmatpush1.msra.mxu0 0.0
    %2819 = vmatprep.subr.mxu0 0.0
    %2820 = vmatpush1.msra.mxu0 0.0
    %2821 = vmatprep.subr.mxu0 0.0
    %2822 = vmatpush1.msra.mxu0 0.0
    %2823 = vmatprep.subr.mxu0 0.0
    %2824 = vmatpush1.msra.mxu0 0.0
    %2825 = vmatprep.subr.mxu0 0.0
    %2826 = vmatpush1.msra.mxu0 0.0
    %2827 = vmatprep.subr.mxu0 0.0
    %2828 = vmatpush1.msra.mxu0 0.0
    %2829 = vmatprep.subr.mxu0 0.0
    %2830 = vmatpush1.msra.mxu0 0.0
    %2831 = vmatprep.subr.mxu0 0.0
    %2832 = vmatpush1.msra.mxu0 0.0
    %2833 = vmatprep.subr.mxu0 0.0
    %2834 = vmatpush1.msra.mxu0 0.0
    %2835 = vmatprep.subr.mxu0 0.0
    %2836 = vmatpush1.msra.mxu0 0.0
    %2837 = vmatprep.subr.mxu0 0.0
    %2838 = vmatpush1.msra.mxu0 0.0
    %2839 = vmatprep.subr.mxu0 0.0
    %2840 = vmatpush1.msra.mxu0 %v912
    %2841 = vmatprep.subr.mxu0 0.0
    %2842 = vmatpush1.msra.mxu0 %v911
    %2843 = vmatprep.subr.mxu0 0.0
    %2844 = vmatpush1.msra.mxu0 %v910
    %2845 = vmatprep.subr.mxu0 0.0
    %2846 = vmatpush1.msra.mxu0 %v909
    %2847 = vmatprep.subr.mxu0 0.0
    %2848 = vmatpush2.msra.mxu0 0.0
    %2849 = vmatprep.subr.mxu0 0.0
    %2850 = vmatpush2.msra.mxu0 0.0
    %2851 = vmatprep.subr.mxu0 0.0
    %2852 = vmatpush2.msra.mxu0 0.0
    %2853 = vmatprep.subr.mxu0 0.0
    %2854 = vmatpush2.msra.mxu0 0.0
    %2855 = vmatprep.subr.mxu0 0.0
    %2856 = vmatpush2.msra.mxu0 0.0
    %2857 = vmatprep.subr.mxu0 0.0
    %2858 = vmatpush2.msra.mxu0 0.0
    %2859 = vmatprep.subr.mxu0 0.0
    %2860 = vmatpush2.msra.mxu0 0.0
    %2861 = vmatprep.subr.mxu0 0.0
    %2862 = vmatpush2.msra.mxu0 0.0
    %2863 = vmatprep.subr.mxu0 0.0
    %2864 = vmatpush2.msra.mxu0 0.0
    %2865 = vmatprep.subr.mxu0 0.0
    %2866 = vmatpush2.msra.mxu0 0.0
    %2867 = vmatprep.subr.mxu0 0.0
    %2868 = vmatpush2.msra.mxu0 0.0
    %2869 = vmatprep.subr.mxu0 0.0
    %2870 = vmatpush2.msra.mxu0 0.0
    %2871 = vmatprep.subr.mxu0 0.0
    %2872 = vmatpush2.msra.mxu0 0.0
    %2873 = vmatprep.subr.mxu0 0.0
    %2874 = vmatpush2.msra.mxu0 0.0
    %2875 = vmatprep.subr.mxu0 0.0
    %2876 = vmatpush2.msra.mxu0 0.0
    %2877 = vmatprep.subr.mxu0 0.0
    %2878 = vmatpush2.msra.mxu0 0.0
    %2879 = vmatprep.mubr.f32.mxu0 0.0
    %2880 = vmatmul.mubr.f32.gmra.mxu0 %v2545
    %v2881 = vpop.f32.mrf.mxu0
    %v2882 = vadd.f32 0.0, %v2881
    %v2883 = vpop.f32.mrf.mxu0
    %2884 = vdwg.mxu0
    %v2885 = vadd.f32 %v906, %v2882
    %v2886 = vmul.f32 %v2885, 0.5
    %v2887 = vsel %vm917, %v2885, %v2886
    %v2888 = vtanh.pop %v2887
    %v2889 = vmul.f32 %v2888, 0.5
    %v2890 = vadd.f32 %v2889, 0.5
    %v2891 = vsel %vm917, %v2888, %v2890
    %v2892 = vmul.f32 %v2891, %v2524
    %2894 = vrot.lane.b32.xlu0 %v2891, 64
    %v2895 = vpop.permute.xlu0 %2894
    %v2897 = vmul.f32 %v2891, %v2895
    %2899 = vrot.lane.b32.xlu0 %v2897, 32
    %v2900 = vpop.permute.xlu0 %2899
    %v2902 = vadd.f32 %v2892, %v2900
    %v2903 = vtanh.pop %v2902
    %2905 = vrot.lane.b32.xlu0 %v2903, 64
    %v2906 = vpop.permute.xlu0 %2905
    %v2908 = vmul.f32 %v2891, %v2906
    %v2909 = vld [vmem:[%s17] sm:$0xff]
    %v2910 = vld [vmem:[%s17 + $0x8] sm:$0xff]
    %v2911 = vld [vmem:[%s17 + $0x10] sm:$0xff]
    %v2912 = vld [vmem:[%s17 + $0x18] sm:$0xff]
    %v2913 = vld [vmem:[#allocation19] sm:$0x1]
    %v2915 = vlaneseq
    %v2916 = vshrl.u32 %v2915, 7
    %v2917 = vsub.s32 0, %v2916
    %v2918 = vrot.slane %v2913, %v2917
    %2921 = vrot.lane.b32.xlu0 %v2908, 32
    %v2922 = vpop.permute.xlu0 %2921
    %v2923 = vsel %vm388, %v2922, 0
    %2925 = vmatprep.subr.mxu0 0.0
    %2926 = vmatpush1.msra.mxu0 0.0
    %2927 = vmatprep.subr.mxu0 0.0
    %2928 = vmatpush1.msra.mxu0 0.0
    %2929 = vmatprep.subr.mxu0 0.0
    %2930 = vmatpush1.msra.mxu0 0.0
    %2931 = vmatprep.subr.mxu0 0.0
    %2932 = vmatpush1.msra.mxu0 0.0
    %2933 = vmatprep.subr.mxu0 0.0
    %2934 = vmatpush1.msra.mxu0 0.0
    %2935 = vmatprep.subr.mxu0 0.0
    %2936 = vmatpush1.msra.mxu0 0.0
    %2937 = vmatprep.subr.mxu0 0.0
    %2938 = vmatpush1.msra.mxu0 0.0
    %2939 = vmatprep.subr.mxu0 0.0
    %2940 = vmatpush1.msra.mxu0 0.0
    %2941 = vmatprep.subr.mxu0 0.0
    %2942 = vmatpush1.msra.mxu0 0.0
    %2943 = vmatprep.subr.mxu0 0.0
    %2944 = vmatpush1.msra.mxu0 0.0
    %2945 = vmatprep.subr.mxu0 0.0
    %2946 = vmatpush1.msra.mxu0 0.0
    %2947 = vmatprep.subr.mxu0 0.0
    %2948 = vmatpush1.msra.mxu0 0.0
    %2949 = vmatprep.subr.mxu0 0.0
    %2950 = vmatpush1.msra.mxu0 %v2912
    %2951 = vmatprep.subr.mxu0 0.0
    %2952 = vmatpush1.msra.mxu0 %v2911
    %2953 = vmatprep.subr.mxu0 0.0
    %2954 = vmatpush1.msra.mxu0 %v2910
    %2955 = vmatprep.subr.mxu0 0.0
    %2956 = vmatpush1.msra.mxu0 %v2909
    %2957 = vmatprep.subr.mxu0 0.0
    %2958 = vmatpush2.msra.mxu0 0.0
    %2959 = vmatprep.subr.mxu0 0.0
    %2960 = vmatpush2.msra.mxu0 0.0
    %2961 = vmatprep.subr.mxu0 0.0
    %2962 = vmatpush2.msra.mxu0 0.0
    %2963 = vmatprep.subr.mxu0 0.0
    %2964 = vmatpush2.msra.mxu0 0.0
    %2965 = vmatprep.subr.mxu0 0.0
    %2966 = vmatpush2.msra.mxu0 0.0
    %2967 = vmatprep.subr.mxu0 0.0
    %2968 = vmatpush2.msra.mxu0 0.0
    %2969 = vmatprep.subr.mxu0 0.0
    %2970 = vmatpush2.msra.mxu0 0.0
    %2971 = vmatprep.subr.mxu0 0.0
    %2972 = vmatpush2.msra.mxu0 0.0
    %2973 = vmatprep.subr.mxu0 0.0
    %2974 = vmatpush2.msra.mxu0 0.0
    %2975 = vmatprep.subr.mxu0 0.0
    %2976 = vmatpush2.msra.mxu0 0.0
    %2977 = vmatprep.subr.mxu0 0.0
    %2978 = vmatpush2.msra.mxu0 0.0
    %2979 = vmatprep.subr.mxu0 0.0
    %2980 = vmatpush2.msra.mxu0 0.0
    %2981 = vmatprep.subr.mxu0 0.0
    %2982 = vmatpush2.msra.mxu0 0.0
    %2983 = vmatprep.subr.mxu0 0.0
    %2984 = vmatpush2.msra.mxu0 0.0
    %2985 = vmatprep.subr.mxu0 0.0
    %2986 = vmatpush2.msra.mxu0 0.0
    %2987 = vmatprep.subr.mxu0 0.0
    %2988 = vmatpush2.msra.mxu0 0.0
    %2989 = vmatprep.mubr.f32.mxu0 0.0
    %2990 = vmatmul.mubr.f32.gmra.mxu0 %v2923
    %v2991 = vpop.f32.mrf.mxu0
    %v2992 = vadd.f32 %v2918, %v2991
    %v2993 = vpop.f32.mrf.mxu0
    %2994 = vdwg.mxu0
    %v2995 = vmax.f32 %v2992, 0.0
    %v2996 = vld [vmem:[#allocation21] sm:$0xff]
    %v2997 = vld [vmem:[#allocation21 + $0x8] sm:$0xff]
    %v2998 = vld [vmem:[#allocation21 + $0x10] sm:$0xff]
    %v2999 = vld [vmem:[#allocation22] sm:$0x1]
    %v3001 = vlaneseq
    %v3002 = vshrl.u32 %v3001, 7
    %v3003 = vsub.s32 0, %v3002
    %v3004 = vrot.slane %v2999, %v3003
    %v3007 = vsel %vm748, %v2995, 0
    %3009 = vmatprep.subr.mxu0 0.0
    %3010 = vmatpush1.msra.mxu0 0.0
    %3011 = vmatprep.subr.mxu0 0.0
    %3012 = vmatpush1.msra.mxu0 0.0
    %3013 = vmatprep.subr.mxu0 0.0
    %3014 = vmatpush1.msra.mxu0 0.0
    %3015 = vmatprep.subr.mxu0 0.0
    %3016 = vmatpush1.msra.mxu0 0.0
    %3017 = vmatprep.subr.mxu0 0.0
    %3018 = vmatpush1.msra.mxu0 0.0
    %3019 = vmatprep.subr.mxu0 0.0
    %3020 = vmatpush1.msra.mxu0 0.0
    %3021 = vmatprep.subr.mxu0 0.0
    %3022 = vmatpush1.msra.mxu0 0.0
    %3023 = vmatprep.subr.mxu0 0.0
    %3024 = vmatpush1.msra.mxu0 0.0
    %3025 = vmatprep.subr.mxu0 0.0
    %3026 = vmatpush1.msra.mxu0 0.0
    %3027 = vmatprep.subr.mxu0 0.0
    %3028 = vmatpush1.msra.mxu0 0.0
    %3029 = vmatprep.subr.mxu0 0.0
    %3030 = vmatpush1.msra.mxu0 0.0
    %3031 = vmatprep.subr.mxu0 0.0
    %3032 = vmatpush1.msra.mxu0 0.0
    %3033 = vmatprep.subr.mxu0 0.0
    %3034 = vmatpush1.msra.mxu0 0.0
    %3035 = vmatprep.subr.mxu0 0.0
    %3036 = vmatpush1.msra.mxu0 %v2998
    %3037 = vmatprep.subr.mxu0 0.0
    %3038 = vmatpush1.msra.mxu0 %v2997
    %3039 = vmatprep.subr.mxu0 0.0
    %3040 = vmatpush1.msra.mxu0 %v2996
    %3041 = vmatprep.subr.mxu0 0.0
    %3042 = vmatpush2.msra.mxu0 0.0
    %3043 = vmatprep.subr.mxu0 0.0
    %3044 = vmatpush2.msra.mxu0 0.0
    %3045 = vmatprep.subr.mxu0 0.0
    %3046 = vmatpush2.msra.mxu0 0.0
    %3047 = vmatprep.subr.mxu0 0.0
    %3048 = vmatpush2.msra.mxu0 0.0
    %3049 = vmatprep.subr.mxu0 0.0
    %3050 = vmatpush2.msra.mxu0 0.0
    %3051 = vmatprep.subr.mxu0 0.0
    %3052 = vmatpush2.msra.mxu0 0.0
    %3053 = vmatprep.subr.mxu0 0.0
    %3054 = vmatpush2.msra.mxu0 0.0
    %3055 = vmatprep.subr.mxu0 0.0
    %3056 = vmatpush2.msra.mxu0 0.0
    %3057 = vmatprep.subr.mxu0 0.0
    %3058 = vmatpush2.msra.mxu0 0.0
    %3059 = vmatprep.subr.mxu0 0.0
    %3060 = vmatpush2.msra.mxu0 0.0
    %3061 = vmatprep.subr.mxu0 0.0
    %3062 = vmatpush2.msra.mxu0 0.0
    %3063 = vmatprep.subr.mxu0 0.0
    %3064 = vmatpush2.msra.mxu0 0.0
    %3065 = vmatprep.subr.mxu0 0.0
    %3066 = vmatpush2.msra.mxu0 0.0
    %3067 = vmatprep.subr.mxu0 0.0
    %3068 = vmatpush2.msra.mxu0 0.0
    %3069 = vmatprep.subr.mxu0 0.0
    %3070 = vmatpush2.msra.mxu0 0.0
    %3071 = vmatprep.subr.mxu0 0.0
    %3072 = vmatpush2.msra.mxu0 0.0
    %3073 = vmatprep.mubr.f32.mxu0 0.0
    %3074 = vmatmul.mubr.f32.gmra.mxu0 %v3007
    %v3075 = vpop.f32.mrf.mxu0
    %v3076 = vadd.f32 %v3004, %v3075
    %v3077 = vpop.f32.mrf.mxu0
    %3078 = vdwg.mxu0
    %v3079 = vmax.f32 %v3076, 0.0
    %v3080 = vld [vmem:[%s21] sm:$0xff]
    %v3081 = vld [vmem:[%s21 + $0x8] sm:$0xff]
    %v3082 = vld [vmem:[%s21 + $0x10] sm:$0xff]
    %v3083 = vld [vmem:[%s21 + $0x18] sm:$0xff]
    %v3084 = vld [vmem:[%s21 + $0x20] sm:$0xff]
    %v3085 = vld [vmem:[%s21 + $0x28] sm:$0xff]
    %v3086 = vld [vmem:[#allocation24] sm:$0x1]
    %v3088 = vlaneseq
    %v3089 = vshrl.u32 %v3088, 7
    %v3090 = vsub.s32 0, %v3089
    %v3091 = vrot.slane %v3086, %v3090
    %v3094 = vsel %vm663, %v3079, 0
    %3096 = vmatprep.subr.mxu0 0.0
    %3097 = vmatpush1.msra.mxu0 0.0
    %3098 = vmatprep.subr.mxu0 0.0
    %3099 = vmatpush1.msra.mxu0 0.0
    %3100 = vmatprep.subr.mxu0 0.0
    %3101 = vmatpush1.msra.mxu0 0.0
    %3102 = vmatprep.subr.mxu0 0.0
    %3103 = vmatpush1.msra.mxu0 0.0
    %3104 = vmatprep.subr.mxu0 0.0
    %3105 = vmatpush1.msra.mxu0 0.0
    %3106 = vmatprep.subr.mxu0 0.0
    %3107 = vmatpush1.msra.mxu0 0.0
    %3108 = vmatprep.subr.mxu0 0.0
    %3109 = vmatpush1.msra.mxu0 0.0
    %3110 = vmatprep.subr.mxu0 0.0
    %3111 = vmatpush1.msra.mxu0 0.0
    %3112 = vmatprep.subr.mxu0 0.0
    %3113 = vmatpush1.msra.mxu0 0.0
    %3114 = vmatprep.subr.mxu0 0.0
    %3115 = vmatpush1.msra.mxu0 0.0
    %3116 = vmatprep.subr.mxu0 0.0
    %3117 = vmatpush1.msra.mxu0 %v3085
    %3118 = vmatprep.subr.mxu0 0.0
    %3119 = vmatpush1.msra.mxu0 %v3084
    %3120 = vmatprep.subr.mxu0 0.0
    %3121 = vmatpush1.msra.mxu0 %v3083
    %3122 = vmatprep.subr.mxu0 0.0
    %3123 = vmatpush1.msra.mxu0 %v3082
    %3124 = vmatprep.subr.mxu0 0.0
    %3125 = vmatpush1.msra.mxu0 %v3081
    %3126 = vmatprep.subr.mxu0 0.0
    %3127 = vmatpush1.msra.mxu0 %v3080
    %3128 = vmatprep.subr.mxu0 0.0
    %3129 = vmatpush2.msra.mxu0 0.0
    %3130 = vmatprep.subr.mxu0 0.0
    %3131 = vmatpush2.msra.mxu0 0.0
    %3132 = vmatprep.subr.mxu0 0.0
    %3133 = vmatpush2.msra.mxu0 0.0
    %3134 = vmatprep.subr.mxu0 0.0
    %3135 = vmatpush2.msra.mxu0 0.0
    %3136 = vmatprep.subr.mxu0 0.0
    %3137 = vmatpush2.msra.mxu0 0.0
    %3138 = vmatprep.subr.mxu0 0.0
    %3139 = vmatpush2.msra.mxu0 0.0
    %3140 = vmatprep.subr.mxu0 0.0
    %3141 = vmatpush2.msra.mxu0 0.0
    %3142 = vmatprep.subr.mxu0 0.0
    %3143 = vmatpush2.msra.mxu0 0.0
    %3144 = vmatprep.subr.mxu0 0.0
    %3145 = vmatpush2.msra.mxu0 0.0
    %3146 = vmatprep.subr.mxu0 0.0
    %3147 = vmatpush2.msra.mxu0 0.0
    %3148 = vmatprep.subr.mxu0 0.0
    %3149 = vmatpush2.msra.mxu0 0.0
    %3150 = vmatprep.subr.mxu0 0.0
    %3151 = vmatpush2.msra.mxu0 0.0
    %3152 = vmatprep.subr.mxu0 0.0
    %3153 = vmatpush2.msra.mxu0 0.0
    %3154 = vmatprep.subr.mxu0 0.0
    %3155 = vmatpush2.msra.mxu0 0.0
    %3156 = vmatprep.subr.mxu0 0.0
    %3157 = vmatpush2.msra.mxu0 0.0
    %3158 = vmatprep.subr.mxu0 0.0
    %3159 = vmatpush2.msra.mxu0 0.0
    %3160 = vmatprep.mubr.f32.mxu0 0.0
    %3161 = vmatmul.mubr.f32.gmra.mxu0 %v3094
    %v3162 = vpop.f32.mrf.mxu0
    %v3163 = vadd.f32 %v3091, %v3162
    %v3164 = vpop.f32.mrf.mxu0
    %3165 = vdwg.mxu0
    %v3168 = vunpack.c.l.s4 1966171168
    %v3169 = vunpack.c.0.s8 %v3168
    %v3170 = vlaneseq
    %v3171 = vshrl.u32 %v3170, 7
    %v3172 = vsub.s32 %v3169, %v3171
    %v3173 = vrot.slane %v3163, %v3172
    %v3174 = vcombine.high %v3173, %v3173
    %v3176 = vunpack.c.l.s4 1966171168
    %v3177 = vunpack.c.0.s8 %v3176
    %v3178 = vlaneseq
    %v3179 = vshrl.u32 %v3178, 7
    %v3180 = vsub.s32 %v3177, %v3179
    %v3181 = vrot.slane %v3173, %v3180
    %v3183 = vunpack.c.l.s4 1966171168
    %v3184 = vunpack.c.0.s8 %v3183
    %v3185 = vlaneseq
    %v3186 = vshrl.u32 %v3185, 7
    %v3187 = vsub.s32 %v3184, %v3186
    %v3188 = vrot.slane %v3174, %v3187
    %3191 = vst.msk [vmem:[%s23 + $0x5] sm:$0x1] %vm1300, %v3181
    %3192 = vst.msk [vmem:[%s23 + $0xd] sm:$0x1] %vm1300, %v3188
    %3193 = vmatprep.subr.mxu0 0.0
    %3194 = vmatpush1.msra.mxu0 0.0
    %3195 = vmatprep.subr.mxu0 0.0
    %3196 = vmatpush1.msra.mxu0 0.0
    %3197 = vmatprep.subr.mxu0 0.0
    %3198 = vmatpush1.msra.mxu0 0.0
    %3199 = vmatprep.subr.mxu0 0.0
    %3200 = vmatpush1.msra.mxu0 0.0
    %3201 = vmatprep.subr.mxu0 0.0
    %3202 = vmatpush1.msra.mxu0 0.0
    %3203 = vmatprep.subr.mxu0 0.0
    %3204 = vmatpush1.msra.mxu0 0.0
    %3205 = vmatprep.subr.mxu0 0.0
    %3206 = vmatpush1.msra.mxu0 0.0
    %3207 = vmatprep.subr.mxu0 0.0
    %3208 = vmatpush1.msra.mxu0 0.0
    %3209 = vmatprep.subr.mxu0 0.0
    %3210 = vmatpush1.msra.mxu0 0.0
    %3211 = vmatprep.subr.mxu0 0.0
    %3212 = vmatpush1.msra.mxu0 0.0
    %3213 = vmatprep.subr.mxu0 0.0
    %3214 = vmatpush1.msra.mxu0 0.0
    %3215 = vmatprep.subr.mxu0 0.0
    %3216 = vmatpush1.msra.mxu0 0.0
    %3217 = vmatprep.subr.mxu0 0.0
    %3218 = vmatpush1.msra.mxu0 %v912
    %3219 = vmatprep.subr.mxu0 0.0
    %3220 = vmatpush1.msra.mxu0 %v911
    %3221 = vmatprep.subr.mxu0 0.0
    %3222 = vmatpush1.msra.mxu0 %v910
    %3223 = vmatprep.subr.mxu0 0.0
    %3224 = vmatpush1.msra.mxu0 %v909
    %3225 = vmatprep.subr.mxu0 0.0
    %3226 = vmatpush2.msra.mxu0 0.0
    %3227 = vmatprep.subr.mxu0 0.0
    %3228 = vmatpush2.msra.mxu0 0.0
    %3229 = vmatprep.subr.mxu0 0.0
    %3230 = vmatpush2.msra.mxu0 0.0
    %3231 = vmatprep.subr.mxu0 0.0
    %3232 = vmatpush2.msra.mxu0 0.0
    %3233 = vmatprep.subr.mxu0 0.0
    %3234 = vmatpush2.msra.mxu0 0.0
    %3235 = vmatprep.subr.mxu0 0.0
    %3236 = vmatpush2.msra.mxu0 0.0
    %3237 = vmatprep.subr.mxu0 0.0
    %3238 = vmatpush2.msra.mxu0 0.0
    %3239 = vmatprep.subr.mxu0 0.0
    %3240 = vmatpush2.msra.mxu0 0.0
    %3241 = vmatprep.subr.mxu0 0.0
    %3242 = vmatpush2.msra.mxu0 0.0
    %3243 = vmatprep.subr.mxu0 0.0
    %3244 = vmatpush2.msra.mxu0 0.0
    %3245 = vmatprep.subr.mxu0 0.0
    %3246 = vmatpush2.msra.mxu0 0.0
    %3247 = vmatprep.subr.mxu0 0.0
    %3248 = vmatpush2.msra.mxu0 0.0
    %3249 = vmatprep.subr.mxu0 0.0
    %3250 = vmatpush2.msra.mxu0 0.0
    %3251 = vmatprep.subr.mxu0 0.0
    %3252 = vmatpush2.msra.mxu0 0.0
    %3253 = vmatprep.subr.mxu0 0.0
    %3254 = vmatpush2.msra.mxu0 0.0
    %3255 = vmatprep.subr.mxu0 0.0
    %3256 = vmatpush2.msra.mxu0 0.0
    %3257 = vmatprep.mubr.f32.mxu0 0.0
    %3258 = vmatmul.mubr.f32.gmra.mxu0 %v2923
    %v3259 = vpop.f32.mrf.mxu0
    %v3260 = vadd.f32 0.0, %v3259
    %v3261 = vpop.f32.mrf.mxu0
    %3262 = vdwg.mxu0
    %v3263 = vadd.f32 %v906, %v3260
    %v3264 = vmul.f32 %v3263, 0.5
    %v3265 = vsel %vm917, %v3263, %v3264
    %v3266 = vtanh.pop %v3265
    %v3267 = vmul.f32 %v3266, 0.5
    %v3268 = vadd.f32 %v3267, 0.5
    %v3269 = vsel %vm917, %v3266, %v3268
    %v3270 = vmul.f32 %v3269, %v2902
    %3272 = vrot.lane.b32.xlu0 %v3269, 64
    %v3273 = vpop.permute.xlu0 %3272
    %v3275 = vmul.f32 %v3269, %v3273
    %3277 = vrot.lane.b32.xlu0 %v3275, 32
    %v3278 = vpop.permute.xlu0 %3277
    %v3280 = vadd.f32 %v3270, %v3278
    %v3281 = vtanh.pop %v3280
    %3283 = vrot.lane.b32.xlu0 %v3281, 64
    %v3284 = vpop.permute.xlu0 %3283
    %v3286 = vmul.f32 %v3269, %v3284
    %v3287 = vld [vmem:[%s17] sm:$0xff]
    %v3288 = vld [vmem:[%s17 + $0x8] sm:$0xff]
    %v3289 = vld [vmem:[%s17 + $0x10] sm:$0xff]
    %v3290 = vld [vmem:[%s17 + $0x18] sm:$0xff]
    %v3291 = vld [vmem:[#allocation19] sm:$0x1]
    %v3293 = vlaneseq
    %v3294 = vshrl.u32 %v3293, 7
    %v3295 = vsub.s32 0, %v3294
    %v3296 = vrot.slane %v3291, %v3295
    %3299 = vrot.lane.b32.xlu0 %v3286, 32
    %v3300 = vpop.permute.xlu0 %3299
    %v3301 = vsel %vm388, %v3300, 0
    %3303 = vmatprep.subr.mxu0 0.0
    %3304 = vmatpush1.msra.mxu0 0.0
    %3305 = vmatprep.subr.mxu0 0.0
    %3306 = vmatpush1.msra.mxu0 0.0
    %3307 = vmatprep.subr.mxu0 0.0
    %3308 = vmatpush1.msra.mxu0 0.0
    %3309 = vmatprep.subr.mxu0 0.0
    %3310 = vmatpush1.msra.mxu0 0.0
    %3311 = vmatprep.subr.mxu0 0.0
    %3312 = vmatpush1.msra.mxu0 0.0
    %3313 = vmatprep.subr.mxu0 0.0
    %3314 = vmatpush1.msra.mxu0 0.0
    %3315 = vmatprep.subr.mxu0 0.0
    %3316 = vmatpush1.msra.mxu0 0.0
    %3317 = vmatprep.subr.mxu0 0.0
    %3318 = vmatpush1.msra.mxu0 0.0
    %3319 = vmatprep.subr.mxu0 0.0
    %3320 = vmatpush1.msra.mxu0 0.0
    %3321 = vmatprep.subr.mxu0 0.0
    %3322 = vmatpush1.msra.mxu0 0.0
    %3323 = vmatprep.subr.mxu0 0.0
    %3324 = vmatpush1.msra.mxu0 0.0
    %3325 = vmatprep.subr.mxu0 0.0
    %3326 = vmatpush1.msra.mxu0 0.0
    %3327 = vmatprep.subr.mxu0 0.0
    %3328 = vmatpush1.msra.mxu0 %v3290
    %3329 = vmatprep.subr.mxu0 0.0
    %3330 = vmatpush1.msra.mxu0 %v3289
    %3331 = vmatprep.subr.mxu0 0.0
    %3332 = vmatpush1.msra.mxu0 %v3288
    %3333 = vmatprep.subr.mxu0 0.0
    %3334 = vmatpush1.msra.mxu0 %v3287
    %3335 = vmatprep.subr.mxu0 0.0
    %3336 = vmatpush2.msra.mxu0 0.0
    %3337 = vmatprep.subr.mxu0 0.0
    %3338 = vmatpush2.msra.mxu0 0.0
    %3339 = vmatprep.subr.mxu0 0.0
    %3340 = vmatpush2.msra.mxu0 0.0
    %3341 = vmatprep.subr.mxu0 0.0
    %3342 = vmatpush2.msra.mxu0 0.0
    %3343 = vmatprep.subr.mxu0 0.0
    %3344 = vmatpush2.msra.mxu0 0.0
    %3345 = vmatprep.subr.mxu0 0.0
    %3346 = vmatpush2.msra.mxu0 0.0
    %3347 = vmatprep.subr.mxu0 0.0
    %3348 = vmatpush2.msra.mxu0 0.0
    %3349 = vmatprep.subr.mxu0 0.0
    %3350 = vmatpush2.msra.mxu0 0.0
    %3351 = vmatprep.subr.mxu0 0.0
    %3352 = vmatpush2.msra.mxu0 0.0
    %3353 = vmatprep.subr.mxu0 0.0
    %3354 = vmatpush2.msra.mxu0 0.0
    %3355 = vmatprep.subr.mxu0 0.0
    %3356 = vmatpush2.msra.mxu0 0.0
    %3357 = vmatprep.subr.mxu0 0.0
    %3358 = vmatpush2.msra.mxu0 0.0
    %3359 = vmatprep.subr.mxu0 0.0
    %3360 = vmatpush2.msra.mxu0 0.0
    %3361 = vmatprep.subr.mxu0 0.0
    %3362 = vmatpush2.msra.mxu0 0.0
    %3363 = vmatprep.subr.mxu0 0.0
    %3364 = vmatpush2.msra.mxu0 0.0
    %3365 = vmatprep.subr.mxu0 0.0
    %3366 = vmatpush2.msra.mxu0 0.0
    %3367 = vmatprep.mubr.f32.mxu0 0.0
    %3368 = vmatmul.mubr.f32.gmra.mxu0 %v3301
    %v3369 = vpop.f32.mrf.mxu0
    %v3370 = vadd.f32 %v3296, %v3369
    %v3371 = vpop.f32.mrf.mxu0
    %3372 = vdwg.mxu0
    %v3373 = vmax.f32 %v3370, 0.0
    %v3374 = vld [vmem:[#allocation21] sm:$0xff]
    %v3375 = vld [vmem:[#allocation21 + $0x8] sm:$0xff]
    %v3376 = vld [vmem:[#allocation21 + $0x10] sm:$0xff]
    %v3377 = vld [vmem:[#allocation22] sm:$0x1]
    %v3379 = vlaneseq
    %v3380 = vshrl.u32 %v3379, 7
    %v3381 = vsub.s32 0, %v3380
    %v3382 = vrot.slane %v3377, %v3381
    %v3385 = vsel %vm748, %v3373, 0
    %3387 = vmatprep.subr.mxu0 0.0
    %3388 = vmatpush1.msra.mxu0 0.0
    %3389 = vmatprep.subr.mxu0 0.0
    %3390 = vmatpush1.msra.mxu0 0.0
    %3391 = vmatprep.subr.mxu0 0.0
    %3392 = vmatpush1.msra.mxu0 0.0
    %3393 = vmatprep.subr.mxu0 0.0
    %3394 = vmatpush1.msra.mxu0 0.0
    %3395 = vmatprep.subr.mxu0 0.0
    %3396 = vmatpush1.msra.mxu0 0.0
    %3397 = vmatprep.subr.mxu0 0.0
    %3398 = vmatpush1.msra.mxu0 0.0
    %3399 = vmatprep.subr.mxu0 0.0
    %3400 = vmatpush1.msra.mxu0 0.0
    %3401 = vmatprep.subr.mxu0 0.0
    %3402 = vmatpush1.msra.mxu0 0.0
    %3403 = vmatprep.subr.mxu0 0.0
    %3404 = vmatpush1.msra.mxu0 0.0
    %3405 = vmatprep.subr.mxu0 0.0
    %3406 = vmatpush1.msra.mxu0 0.0
    %3407 = vmatprep.subr.mxu0 0.0
    %3408 = vmatpush1.msra.mxu0 0.0
    %3409 = vmatprep.subr.mxu0 0.0
    %3410 = vmatpush1.msra.mxu0 0.0
    %3411 = vmatprep.subr.mxu0 0.0
    %3412 = vmatpush1.msra.mxu0 0.0
    %3413 = vmatprep.subr.mxu0 0.0
    %3414 = vmatpush1.msra.mxu0 %v3376
    %3415 = vmatprep.subr.mxu0 0.0
    %3416 = vmatpush1.msra.mxu0 %v3375
    %3417 = vmatprep.subr.mxu0 0.0
    %3418 = vmatpush1.msra.mxu0 %v3374
    %3419 = vmatprep.subr.mxu0 0.0
    %3420 = vmatpush2.msra.mxu0 0.0
    %3421 = vmatprep.subr.mxu0 0.0
    %3422 = vmatpush2.msra.mxu0 0.0
    %3423 = vmatprep.subr.mxu0 0.0
    %3424 = vmatpush2.msra.mxu0 0.0
    %3425 = vmatprep.subr.mxu0 0.0
    %3426 = vmatpush2.msra.mxu0 0.0
    %3427 = vmatprep.subr.mxu0 0.0
    %3428 = vmatpush2.msra.mxu0 0.0
    %3429 = vmatprep.subr.mxu0 0.0
    %3430 = vmatpush2.msra.mxu0 0.0
    %3431 = vmatprep.subr.mxu0 0.0
    %3432 = vmatpush2.msra.mxu0 0.0
    %3433 = vmatprep.subr.mxu0 0.0
    %3434 = vmatpush2.msra.mxu0 0.0
    %3435 = vmatprep.subr.mxu0 0.0
    %3436 = vmatpush2.msra.mxu0 0.0
    %3437 = vmatprep.subr.mxu0 0.0
    %3438 = vmatpush2.msra.mxu0 0.0
    %3439 = vmatprep.subr.mxu0 0.0
    %3440 = vmatpush2.msra.mxu0 0.0
    %3441 = vmatprep.subr.mxu0 0.0
    %3442 = vmatpush2.msra.mxu0 0.0
    %3443 = vmatprep.subr.mxu0 0.0
    %3444 = vmatpush2.msra.mxu0 0.0
    %3445 = vmatprep.subr.mxu0 0.0
    %3446 = vmatpush2.msra.mxu0 0.0
    %3447 = vmatprep.subr.mxu0 0.0
    %3448 = vmatpush2.msra.mxu0 0.0
    %3449 = vmatprep.subr.mxu0 0.0
    %3450 = vmatpush2.msra.mxu0 0.0
    %3451 = vmatprep.mubr.f32.mxu0 0.0
    %3452 = vmatmul.mubr.f32.gmra.mxu0 %v3385
    %v3453 = vpop.f32.mrf.mxu0
    %v3454 = vadd.f32 %v3382, %v3453
    %v3455 = vpop.f32.mrf.mxu0
    %3456 = vdwg.mxu0
    %v3457 = vmax.f32 %v3454, 0.0
    %v3458 = vld [vmem:[%s21] sm:$0xff]
    %v3459 = vld [vmem:[%s21 + $0x8] sm:$0xff]
    %v3460 = vld [vmem:[%s21 + $0x10] sm:$0xff]
    %v3461 = vld [vmem:[%s21 + $0x18] sm:$0xff]
    %v3462 = vld [vmem:[%s21 + $0x20] sm:$0xff]
    %v3463 = vld [vmem:[%s21 + $0x28] sm:$0xff]
    %v3464 = vld [vmem:[#allocation24] sm:$0x1]
    %v3466 = vlaneseq
    %v3467 = vshrl.u32 %v3466, 7
    %v3468 = vsub.s32 0, %v3467
    %v3469 = vrot.slane %v3464, %v3468
    %v3472 = vsel %vm663, %v3457, 0
    %3474 = vmatprep.subr.mxu0 0.0
    %3475 = vmatpush1.msra.mxu0 0.0
    %3476 = vmatprep.subr.mxu0 0.0
    %3477 = vmatpush1.msra.mxu0 0.0
    %3478 = vmatprep.subr.mxu0 0.0
    %3479 = vmatpush1.msra.mxu0 0.0
    %3480 = vmatprep.subr.mxu0 0.0
    %3481 = vmatpush1.msra.mxu0 0.0
    %3482 = vmatprep.subr.mxu0 0.0
    %3483 = vmatpush1.msra.mxu0 0.0
    %3484 = vmatprep.subr.mxu0 0.0
    %3485 = vmatpush1.msra.mxu0 0.0
    %3486 = vmatprep.subr.mxu0 0.0
    %3487 = vmatpush1.msra.mxu0 0.0
    %3488 = vmatprep.subr.mxu0 0.0
    %3489 = vmatpush1.msra.mxu0 0.0
    %3490 = vmatprep.subr.mxu0 0.0
    %3491 = vmatpush1.msra.mxu0 0.0
    %3492 = vmatprep.subr.mxu0 0.0
    %3493 = vmatpush1.msra.mxu0 0.0
    %3494 = vmatprep.subr.mxu0 0.0
    %3495 = vmatpush1.msra.mxu0 %v3463
    %3496 = vmatprep.subr.mxu0 0.0
    %3497 = vmatpush1.msra.mxu0 %v3462
    %3498 = vmatprep.subr.mxu0 0.0
    %3499 = vmatpush1.msra.mxu0 %v3461
    %3500 = vmatprep.subr.mxu0 0.0
    %3501 = vmatpush1.msra.mxu0 %v3460
    %3502 = vmatprep.subr.mxu0 0.0
    %3503 = vmatpush1.msra.mxu0 %v3459
    %3504 = vmatprep.subr.mxu0 0.0
    %3505 = vmatpush1.msra.mxu0 %v3458
    %3506 = vmatprep.subr.mxu0 0.0
    %3507 = vmatpush2.msra.mxu0 0.0
    %3508 = vmatprep.subr.mxu0 0.0
    %3509 = vmatpush2.msra.mxu0 0.0
    %3510 = vmatprep.subr.mxu0 0.0
    %3511 = vmatpush2.msra.mxu0 0.0
    %3512 = vmatprep.subr.mxu0 0.0
    %3513 = vmatpush2.msra.mxu0 0.0
    %3514 = vmatprep.subr.mxu0 0.0
    %3515 = vmatpush2.msra.mxu0 0.0
    %3516 = vmatprep.subr.mxu0 0.0
    %3517 = vmatpush2.msra.mxu0 0.0
    %3518 = vmatprep.subr.mxu0 0.0
    %3519 = vmatpush2.msra.mxu0 0.0
    %3520 = vmatprep.subr.mxu0 0.0
    %3521 = vmatpush2.msra.mxu0 0.0
    %3522 = vmatprep.subr.mxu0 0.0
    %3523 = vmatpush2.msra.mxu0 0.0
    %3524 = vmatprep.subr.mxu0 0.0
    %3525 = vmatpush2.msra.mxu0 0.0
    %3526 = vmatprep.subr.mxu0 0.0
    %3527 = vmatpush2.msra.mxu0 0.0
    %3528 = vmatprep.subr.mxu0 0.0
    %3529 = vmatpush2.msra.mxu0 0.0
    %3530 = vmatprep.subr.mxu0 0.0
    %3531 = vmatpush2.msra.mxu0 0.0
    %3532 = vmatprep.subr.mxu0 0.0
    %3533 = vmatpush2.msra.mxu0 0.0
    %3534 = vmatprep.subr.mxu0 0.0
    %3535 = vmatpush2.msra.mxu0 0.0
    %3536 = vmatprep.subr.mxu0 0.0
    %3537 = vmatpush2.msra.mxu0 0.0
    %3538 = vmatprep.mubr.f32.mxu0 0.0
    %3539 = vmatmul.mubr.f32.gmra.mxu0 %v3472
    %v3540 = vpop.f32.mrf.mxu0
    %v3541 = vadd.f32 %v3469, %v3540
    %v3542 = vpop.f32.mrf.mxu0
    %3543 = vdwg.mxu0
    %v3546 = vunpack.c.l.s4 1966171168
    %v3547 = vunpack.c.0.s8 %v3546
    %v3548 = vlaneseq
    %v3549 = vshrl.u32 %v3548, 7
    %v3550 = vsub.s32 %v3547, %v3549
    %v3551 = vrot.slane %v3541, %v3550
    %v3552 = vcombine.high %v3551, %v3551
    %v3554 = vunpack.c.l.s4 1966171168
    %v3555 = vunpack.c.0.s8 %v3554
    %v3556 = vlaneseq
    %v3557 = vshrl.u32 %v3556, 7
    %v3558 = vsub.s32 %v3555, %v3557
    %v3559 = vrot.slane %v3551, %v3558
    %v3561 = vunpack.c.l.s4 1966171168
    %v3562 = vunpack.c.0.s8 %v3561
    %v3563 = vlaneseq
    %v3564 = vshrl.u32 %v3563, 7
    %v3565 = vsub.s32 %v3562, %v3564
    %v3566 = vrot.slane %v3552, %v3565
    %3569 = vst.msk [vmem:[%s23 + $0x6] sm:$0x1] %vm1300, %v3559
    %3570 = vst.msk [vmem:[%s23 + $0xe] sm:$0x1] %vm1300, %v3566
    %3571 = vmatprep.subr.mxu0 0.0
    %3572 = vmatpush1.msra.mxu0 0.0
    %3573 = vmatprep.subr.mxu0 0.0
    %3574 = vmatpush1.msra.mxu0 0.0
    %3575 = vmatprep.subr.mxu0 0.0
    %3576 = vmatpush1.msra.mxu0 0.0
    %3577 = vmatprep.subr.mxu0 0.0
    %3578 = vmatpush1.msra.mxu0 0.0
    %3579 = vmatprep.subr.mxu0 0.0
    %3580 = vmatpush1.msra.mxu0 0.0
    %3581 = vmatprep.subr.mxu0 0.0
    %3582 = vmatpush1.msra.mxu0 0.0
    %3583 = vmatprep.subr.mxu0 0.0
    %3584 = vmatpush1.msra.mxu0 0.0
    %3585 = vmatprep.subr.mxu0 0.0
    %3586 = vmatpush1.msra.mxu0 0.0
    %3587 = vmatprep.subr.mxu0 0.0
    %3588 = vmatpush1.msra.mxu0 0.0
    %3589 = vmatprep.subr.mxu0 0.0
    %3590 = vmatpush1.msra.mxu0 0.0
    %3591 = vmatprep.subr.mxu0 0.0
    %3592 = vmatpush1.msra.mxu0 0.0
    %3593 = vmatprep.subr.mxu0 0.0
    %3594 = vmatpush1.msra.mxu0 0.0
    %3595 = vmatprep.subr.mxu0 0.0
    %3596 = vmatpush1.msra.mxu0 %v912
    %3597 = vmatprep.subr.mxu0 0.0
    %3598 = vmatpush1.msra.mxu0 %v911
    %3599 = vmatprep.subr.mxu0 0.0
    %3600 = vmatpush1.msra.mxu0 %v910
    %3601 = vmatprep.subr.mxu0 0.0
    %3602 = vmatpush1.msra.mxu0 %v909
    %3603 = vmatprep.subr.mxu0 0.0
    %3604 = vmatpush2.msra.mxu0 0.0
    %3605 = vmatprep.subr.mxu0 0.0
    %3606 = vmatpush2.msra.mxu0 0.0
    %3607 = vmatprep.subr.mxu0 0.0
    %3608 = vmatpush2.msra.mxu0 0.0
    %3609 = vmatprep.subr.mxu0 0.0
    %3610 = vmatpush2.msra.mxu0 0.0
    %3611 = vmatprep.subr.mxu0 0.0
    %3612 = vmatpush2.msra.mxu0 0.0
    %3613 = vmatprep.subr.mxu0 0.0
    %3614 = vmatpush2.msra.mxu0 0.0
    %3615 = vmatprep.subr.mxu0 0.0
    %3616 = vmatpush2.msra.mxu0 0.0
    %3617 = vmatprep.subr.mxu0 0.0
    %3618 = vmatpush2.msra.mxu0 0.0
    %3619 = vmatprep.subr.mxu0 0.0
    %3620 = vmatpush2.msra.mxu0 0.0
    %3621 = vmatprep.subr.mxu0 0.0
    %3622 = vmatpush2.msra.mxu0 0.0
    %3623 = vmatprep.subr.mxu0 0.0
    %3624 = vmatpush2.msra.mxu0 0.0
    %3625 = vmatprep.subr.mxu0 0.0
    %3626 = vmatpush2.msra.mxu0 0.0
    %3627 = vmatprep.subr.mxu0 0.0
    %3628 = vmatpush2.msra.mxu0 0.0
    %3629 = vmatprep.subr.mxu0 0.0
    %3630 = vmatpush2.msra.mxu0 0.0
    %3631 = vmatprep.subr.mxu0 0.0
    %3632 = vmatpush2.msra.mxu0 0.0
    %3633 = vmatprep.subr.mxu0 0.0
    %3634 = vmatpush2.msra.mxu0 0.0
    %3635 = vmatprep.mubr.f32.mxu0 0.0
    %3636 = vmatmul.mubr.f32.gmra.mxu0 %v3301
    %v3637 = vpop.f32.mrf.mxu0
    %v3638 = vadd.f32 0.0, %v3637
    %v3639 = vpop.f32.mrf.mxu0
    %3640 = vdwg.mxu0
    %v3641 = vadd.f32 %v906, %v3638
    %v3642 = vmul.f32 %v3641, 0.5
    %v3643 = vsel %vm917, %v3641, %v3642
    %v3644 = vtanh.pop %v3643
    %v3645 = vmul.f32 %v3644, 0.5
    %v3646 = vadd.f32 %v3645, 0.5
    %v3647 = vsel %vm917, %v3644, %v3646
    %v3648 = vmul.f32 %v3647, %v3280
    %3650 = vrot.lane.b32.xlu0 %v3647, 64
    %v3651 = vpop.permute.xlu0 %3650
    %v3653 = vmul.f32 %v3647, %v3651
    %3655 = vrot.lane.b32.xlu0 %v3653, 32
    %v3656 = vpop.permute.xlu0 %3655
    %v3658 = vadd.f32 %v3648, %v3656
    %v3659 = vtanh.pop %v3658
    %3661 = vrot.lane.b32.xlu0 %v3659, 64
    %v3662 = vpop.permute.xlu0 %3661
    %v3664 = vmul.f32 %v3647, %v3662
    %v3665 = vld [vmem:[%s17] sm:$0xff]
    %v3666 = vld [vmem:[%s17 + $0x8] sm:$0xff]
    %v3667 = vld [vmem:[%s17 + $0x10] sm:$0xff]
    %v3668 = vld [vmem:[%s17 + $0x18] sm:$0xff]
    %v3669 = vld [vmem:[#allocation19] sm:$0x1]
    %v3671 = vlaneseq
    %v3672 = vshrl.u32 %v3671, 7
    %v3673 = vsub.s32 0, %v3672
    %v3674 = vrot.slane %v3669, %v3673
    %3677 = vrot.lane.b32.xlu0 %v3664, 32
    %v3678 = vpop.permute.xlu0 %3677
    %v3679 = vsel %vm388, %v3678, 0
    %3681 = vmatprep.subr.mxu0 0.0
    %3682 = vmatpush1.msra.mxu0 0.0
    %3683 = vmatprep.subr.mxu0 0.0
    %3684 = vmatpush1.msra.mxu0 0.0
    %3685 = vmatprep.subr.mxu0 0.0
    %3686 = vmatpush1.msra.mxu0 0.0
    %3687 = vmatprep.subr.mxu0 0.0
    %3688 = vmatpush1.msra.mxu0 0.0
    %3689 = vmatprep.subr.mxu0 0.0
    %3690 = vmatpush1.msra.mxu0 0.0
    %3691 = vmatprep.subr.mxu0 0.0
    %3692 = vmatpush1.msra.mxu0 0.0
    %3693 = vmatprep.subr.mxu0 0.0
    %3694 = vmatpush1.msra.mxu0 0.0
    %3695 = vmatprep.subr.mxu0 0.0
    %3696 = vmatpush1.msra.mxu0 0.0
    %3697 = vmatprep.subr.mxu0 0.0
    %3698 = vmatpush1.msra.mxu0 0.0
    %3699 = vmatprep.subr.mxu0 0.0
    %3700 = vmatpush1.msra.mxu0 0.0
    %3701 = vmatprep.subr.mxu0 0.0
    %3702 = vmatpush1.msra.mxu0 0.0
    %3703 = vmatprep.subr.mxu0 0.0
    %3704 = vmatpush1.msra.mxu0 0.0
    %3705 = vmatprep.subr.mxu0 0.0
    %3706 = vmatpush1.msra.mxu0 %v3668
    %3707 = vmatprep.subr.mxu0 0.0
    %3708 = vmatpush1.msra.mxu0 %v3667
    %3709 = vmatprep.subr.mxu0 0.0
    %3710 = vmatpush1.msra.mxu0 %v3666
    %3711 = vmatprep.subr.mxu0 0.0
    %3712 = vmatpush1.msra.mxu0 %v3665
    %3713 = vmatprep.subr.mxu0 0.0
    %3714 = vmatpush2.msra.mxu0 0.0
    %3715 = vmatprep.subr.mxu0 0.0
    %3716 = vmatpush2.msra.mxu0 0.0
    %3717 = vmatprep.subr.mxu0 0.0
    %3718 = vmatpush2.msra.mxu0 0.0
    %3719 = vmatprep.subr.mxu0 0.0
    %3720 = vmatpush2.msra.mxu0 0.0
    %3721 = vmatprep.subr.mxu0 0.0
    %3722 = vmatpush2.msra.mxu0 0.0
    %3723 = vmatprep.subr.mxu0 0.0
    %3724 = vmatpush2.msra.mxu0 0.0
    %3725 = vmatprep.subr.mxu0 0.0
    %3726 = vmatpush2.msra.mxu0 0.0
    %3727 = vmatprep.subr.mxu0 0.0
    %3728 = vmatpush2.msra.mxu0 0.0
    %3729 = vmatprep.subr.mxu0 0.0
    %3730 = vmatpush2.msra.mxu0 0.0
    %3731 = vmatprep.subr.mxu0 0.0
    %3732 = vmatpush2.msra.mxu0 0.0
    %3733 = vmatprep.subr.mxu0 0.0
    %3734 = vmatpush2.msra.mxu0 0.0
    %3735 = vmatprep.subr.mxu0 0.0
    %3736 = vmatpush2.msra.mxu0 0.0
    %3737 = vmatprep.subr.mxu0 0.0
    %3738 = vmatpush2.msra.mxu0 0.0
    %3739 = vmatprep.subr.mxu0 0.0
    %3740 = vmatpush2.msra.mxu0 0.0
    %3741 = vmatprep.subr.mxu0 0.0
    %3742 = vmatpush2.msra.mxu0 0.0
    %3743 = vmatprep.subr.mxu0 0.0
    %3744 = vmatpush2.msra.mxu0 0.0
    %3745 = vmatprep.mubr.f32.mxu0 0.0
    %3746 = vmatmul.mubr.f32.gmra.mxu0 %v3679
    %v3747 = vpop.f32.mrf.mxu0
    %v3748 = vadd.f32 %v3674, %v3747
    %v3749 = vpop.f32.mrf.mxu0
    %3750 = vdwg.mxu0
    %v3751 = vmax.f32 %v3748, 0.0
    %v3752 = vld [vmem:[#allocation21] sm:$0xff]
    %v3753 = vld [vmem:[#allocation21 + $0x8] sm:$0xff]
    %v3754 = vld [vmem:[#allocation21 + $0x10] sm:$0xff]
    %v3755 = vld [vmem:[#allocation22] sm:$0x1]
    %v3757 = vlaneseq
    %v3758 = vshrl.u32 %v3757, 7
    %v3759 = vsub.s32 0, %v3758
    %v3760 = vrot.slane %v3755, %v3759
    %v3763 = vsel %vm748, %v3751, 0
    %3765 = vmatprep.subr.mxu0 0.0
    %3766 = vmatpush1.msra.mxu0 0.0
    %3767 = vmatprep.subr.mxu0 0.0
    %3768 = vmatpush1.msra.mxu0 0.0
    %3769 = vmatprep.subr.mxu0 0.0
    %3770 = vmatpush1.msra.mxu0 0.0
    %3771 = vmatprep.subr.mxu0 0.0
    %3772 = vmatpush1.msra.mxu0 0.0
    %3773 = vmatprep.subr.mxu0 0.0
    %3774 = vmatpush1.msra.mxu0 0.0
    %3775 = vmatprep.subr.mxu0 0.0
    %3776 = vmatpush1.msra.mxu0 0.0
    %3777 = vmatprep.subr.mxu0 0.0
    %3778 = vmatpush1.msra.mxu0 0.0
    %3779 = vmatprep.subr.mxu0 0.0
    %3780 = vmatpush1.msra.mxu0 0.0
    %3781 = vmatprep.subr.mxu0 0.0
    %3782 = vmatpush1.msra.mxu0 0.0
    %3783 = vmatprep.subr.mxu0 0.0
    %3784 = vmatpush1.msra.mxu0 0.0
    %3785 = vmatprep.subr.mxu0 0.0
    %3786 = vmatpush1.msra.mxu0 0.0
    %3787 = vmatprep.subr.mxu0 0.0
    %3788 = vmatpush1.msra.mxu0 0.0
    %3789 = vmatprep.subr.mxu0 0.0
    %3790 = vmatpush1.msra.mxu0 0.0
    %3791 = vmatprep.subr.mxu0 0.0
    %3792 = vmatpush1.msra.mxu0 %v3754
    %3793 = vmatprep.subr.mxu0 0.0
    %3794 = vmatpush1.msra.mxu0 %v3753
    %3795 = vmatprep.subr.mxu0 0.0
    %3796 = vmatpush1.msra.mxu0 %v3752
    %3797 = vmatprep.subr.mxu0 0.0
    %3798 = vmatpush2.msra.mxu0 0.0
    %3799 = vmatprep.subr.mxu0 0.0
    %3800 = vmatpush2.msra.mxu0 0.0
    %3801 = vmatprep.subr.mxu0 0.0
    %3802 = vmatpush2.msra.mxu0 0.0
    %3803 = vmatprep.subr.mxu0 0.0
    %3804 = vmatpush2.msra.mxu0 0.0
    %3805 = vmatprep.subr.mxu0 0.0
    %3806 = vmatpush2.msra.mxu0 0.0
    %3807 = vmatprep.subr.mxu0 0.0
    %3808 = vmatpush2.msra.mxu0 0.0
    %3809 = vmatprep.subr.mxu0 0.0
    %3810 = vmatpush2.msra.mxu0 0.0
    %3811 = vmatprep.subr.mxu0 0.0
    %3812 = vmatpush2.msra.mxu0 0.0
    %3813 = vmatprep.subr.mxu0 0.0
    %3814 = vmatpush2.msra.mxu0 0.0
    %3815 = vmatprep.subr.mxu0 0.0
    %3816 = vmatpush2.msra.mxu0 0.0
    %3817 = vmatprep.subr.mxu0 0.0
    %3818 = vmatpush2.msra.mxu0 0.0
    %3819 = vmatprep.subr.mxu0 0.0
    %3820 = vmatpush2.msra.mxu0 0.0
    %3821 = vmatprep.subr.mxu0 0.0
    %3822 = vmatpush2.msra.mxu0 0.0
    %3823 = vmatprep.subr.mxu0 0.0
    %3824 = vmatpush2.msra.mxu0 0.0
    %3825 = vmatprep.subr.mxu0 0.0
    %3826 = vmatpush2.msra.mxu0 0.0
    %3827 = vmatprep.subr.mxu0 0.0
    %3828 = vmatpush2.msra.mxu0 0.0
    %3829 = vmatprep.mubr.f32.mxu0 0.0
    %3830 = vmatmul.mubr.f32.gmra.mxu0 %v3763
    %v3831 = vpop.f32.mrf.mxu0
    %v3832 = vadd.f32 %v3760, %v3831
    %v3833 = vpop.f32.mrf.mxu0
    %3834 = vdwg.mxu0
    %v3835 = vmax.f32 %v3832, 0.0
    %v3836 = vld [vmem:[%s21] sm:$0xff]
    %v3837 = vld [vmem:[%s21 + $0x8] sm:$0xff]
    %v3838 = vld [vmem:[%s21 + $0x10] sm:$0xff]
    %v3839 = vld [vmem:[%s21 + $0x18] sm:$0xff]
    %v3840 = vld [vmem:[%s21 + $0x20] sm:$0xff]
    %v3841 = vld [vmem:[%s21 + $0x28] sm:$0xff]
    %v3842 = vld [vmem:[#allocation24] sm:$0x1]
    %v3844 = vlaneseq
    %v3845 = vshrl.u32 %v3844, 7
    %v3846 = vsub.s32 0, %v3845
    %v3847 = vrot.slane %v3842, %v3846
    %v3850 = vsel %vm663, %v3835, 0
    %3852 = vmatprep.subr.mxu0 0.0
    %3853 = vmatpush1.msra.mxu0 0.0
    %3854 = vmatprep.subr.mxu0 0.0
    %3855 = vmatpush1.msra.mxu0 0.0
    %3856 = vmatprep.subr.mxu0 0.0
    %3857 = vmatpush1.msra.mxu0 0.0
    %3858 = vmatprep.subr.mxu0 0.0
    %3859 = vmatpush1.msra.mxu0 0.0
    %3860 = vmatprep.subr.mxu0 0.0
    %3861 = vmatpush1.msra.mxu0 0.0
    %3862 = vmatprep.subr.mxu0 0.0
    %3863 = vmatpush1.msra.mxu0 0.0
    %3864 = vmatprep.subr.mxu0 0.0
    %3865 = vmatpush1.msra.mxu0 0.0
    %3866 = vmatprep.subr.mxu0 0.0
    %3867 = vmatpush1.msra.mxu0 0.0
    %3868 = vmatprep.subr.mxu0 0.0
    %3869 = vmatpush1.msra.mxu0 0.0
    %3870 = vmatprep.subr.mxu0 0.0
    %3871 = vmatpush1.msra.mxu0 0.0
    %3872 = vmatprep.subr.mxu0 0.0
    %3873 = vmatpush1.msra.mxu0 %v3841
    %3874 = vmatprep.subr.mxu0 0.0
    %3875 = vmatpush1.msra.mxu0 %v3840
    %3876 = vmatprep.subr.mxu0 0.0
    %3877 = vmatpush1.msra.mxu0 %v3839
    %3878 = vmatprep.subr.mxu0 0.0
    %3879 = vmatpush1.msra.mxu0 %v3838
    %3880 = vmatprep.subr.mxu0 0.0
    %3881 = vmatpush1.msra.mxu0 %v3837
    %3882 = vmatprep.subr.mxu0 0.0
    %3883 = vmatpush1.msra.mxu0 %v3836
    %3884 = vmatprep.subr.mxu0 0.0
    %3885 = vmatpush2.msra.mxu0 0.0
    %3886 = vmatprep.subr.mxu0 0.0
    %3887 = vmatpush2.msra.mxu0 0.0
    %3888 = vmatprep.subr.mxu0 0.0
    %3889 = vmatpush2.msra.mxu0 0.0
    %3890 = vmatprep.subr.mxu0 0.0
    %3891 = vmatpush2.msra.mxu0 0.0
    %3892 = vmatprep.subr.mxu0 0.0
    %3893 = vmatpush2.msra.mxu0 0.0
    %3894 = vmatprep.subr.mxu0 0.0
    %3895 = vmatpush2.msra.mxu0 0.0
    %3896 = vmatprep.subr.mxu0 0.0
    %3897 = vmatpush2.msra.mxu0 0.0
    %3898 = vmatprep.subr.mxu0 0.0
    %3899 = vmatpush2.msra.mxu0 0.0
    %3900 = vmatprep.subr.mxu0 0.0
    %3901 = vmatpush2.msra.mxu0 0.0
    %3902 = vmatprep.subr.mxu0 0.0
    %3903 = vmatpush2.msra.mxu0 0.0
    %3904 = vmatprep.subr.mxu0 0.0
    %3905 = vmatpush2.msra.mxu0 0.0
    %3906 = vmatprep.subr.mxu0 0.0
    %3907 = vmatpush2.msra.mxu0 0.0
    %3908 = vmatprep.subr.mxu0 0.0
    %3909 = vmatpush2.msra.mxu0 0.0
    %3910 = vmatprep.subr.mxu0 0.0
    %3911 = vmatpush2.msra.mxu0 0.0
    %3912 = vmatprep.subr.mxu0 0.0
    %3913 = vmatpush2.msra.mxu0 0.0
    %3914 = vmatprep.subr.mxu0 0.0
    %3915 = vmatpush2.msra.mxu0 0.0
    %3916 = vmatprep.mubr.f32.mxu0 0.0
    %3917 = vmatmul.mubr.f32.gmra.mxu0 %v3850
    %v3918 = vpop.f32.mrf.mxu0
    %v3919 = vadd.f32 %v3847, %v3918
    %v3920 = vpop.f32.mrf.mxu0
    %3921 = vdwg.mxu0
    %v3924 = vunpack.c.l.s4 1966171168
    %v3925 = vunpack.c.0.s8 %v3924
    %v3926 = vlaneseq
    %v3927 = vshrl.u32 %v3926, 7
    %v3928 = vsub.s32 %v3925, %v3927
    %v3929 = vrot.slane %v3919, %v3928
    %v3930 = vcombine.high %v3929, %v3929
    %v3932 = vunpack.c.l.s4 1966171168
    %v3933 = vunpack.c.0.s8 %v3932
    %v3934 = vlaneseq
    %v3935 = vshrl.u32 %v3934, 7
    %v3936 = vsub.s32 %v3933, %v3935
    %v3937 = vrot.slane %v3929, %v3936
    %v3939 = vunpack.c.l.s4 1966171168
    %v3940 = vunpack.c.0.s8 %v3939
    %v3941 = vlaneseq
    %v3942 = vshrl.u32 %v3941, 7
    %v3943 = vsub.s32 %v3940, %v3942
    %v3944 = vrot.slane %v3930, %v3943
    %3947 = vst.msk [vmem:[%s23 + $0x7] sm:$0x1] %vm1300, %v3937
    %3948 = vst.msk [vmem:[%s23 + $0xf] sm:$0x1] %vm1300, %v3944
    // Predicated region
    $region154: #{forward.1} parent=1 // pred_check
      _
    $region155: #{forward.1} parent=1 // pred_check_branch
      %3950 = sbr.rel (0) target = $region157
    $region156: #{forward.1} parent=1 // pred_region
      _
    $region157: #{forward.1} parent=1 // pred_fallthru
      _
    // Predicated region
    $region158: #{forward.1} parent=1 // pred_check
      _
    $region159: #{forward.1} parent=1 // pred_check_branch
      %3952 = sbr.rel (0) target = $region161
    $region160: #{forward.1} parent=1 // pred_region
      _
    $region161: #{forward.1} parent=1 // pred_fallthru
      _
    %3953 = vsyncpa [#allocation3], 1
    %3954 = vsyncpa [#allocation5], 1
    %3955 = vsyncpa [#allocation8], 1
    %3956 = vsyncpa [#allocation11], 1
    %3957 = vsyncpa [#allocation14], 1
    %3958 = vsyncpa [#allocation17], 1
    %3959 = vsyncpa [#allocation20], 1
    %3960 = vsyncpa [#allocation23], 1

</llo_original>
